<compile_context>
chip_gen: v7x
topology: tpu7x:2x2x1
jax: 0.10.0
libtpu: 0.0.40
codegen_flags: <defaults>
</compile_context>

<pallas_src>
import functools
import math

import jax
import jax.numpy as jnp
from jax.experimental import pallas as pl
from jax.experimental.pallas import tpu as pltpu


def _layer_norm_torch(x, a, b, eps=1e-6):
    """PyTorch-style LayerNorm (unbiased std, std+eps), two-pass centered stats.

    x: (M, D) f32; a, b: (1, D) f32.
    """
    d = x.shape[-1]
    mean = jnp.mean(x, axis=-1, keepdims=True)
    c = x - mean
    var_unbiased = jnp.sum(c * c, axis=-1, keepdims=True) * (1.0 / (d - 1))
    std = jnp.sqrt(var_unbiased)
    # Exact divide: LN inverse-std feeds the residual stream; EUP is not the
    # binding slot in this MXU-dominated kernel, so the exact op is free.
    return a * c / (std + eps) + b


def encoder_layer_kernel(
    x_ref, mask_ref,
    ln1a_ref, ln1b_ref,
    wq_ref, bq_ref, wk_ref, bk_ref, wv_ref, bv_ref, wo_ref, bo_ref,
    ln2a_ref, ln2b_ref,
    w1_ref, b1_ref, w2_ref, b2_ref,
    o_ref,
    *, num_heads,
):
    Bt = mask_ref.shape[0]          # batch rows in this block
    S = mask_ref.shape[2]           # sequence length
    M, D = x_ref.shape              # M = Bt * S (batch folded into matmul rows)
    H = num_heads
    dk = D // H
    scale = 1.0 / math.sqrt(dk)

    x = x_ref[...].astype(jnp.float32)                                    # (M, D) f32

    # Additive mask bias, computed once per block (hoisted out of the head loop).
    mask_bias = jnp.where(mask_ref[...] == 0.0,
                          jnp.float32(-1e9), jnp.float32(0.0))            # (Bt, 1, S)

    # ---------------- sublayer 0: LN -> self-attention -> residual ----------------
    xn = _layer_norm_torch(x, ln1a_ref[...], ln1b_ref[...]).astype(jnp.bfloat16)

    # Full-width batch-folded projections: bf16 operands, f32 accumulation.
    q = ((jnp.dot(xn, wq_ref[...], preferred_element_type=jnp.float32)
          + bq_ref[...]) * scale).astype(jnp.bfloat16)                    # scale folded into q
    k = (jnp.dot(xn, wk_ref[...], preferred_element_type=jnp.float32)
         + bk_ref[...]).astype(jnp.bfloat16)
    v = (jnp.dot(xn, wv_ref[...], preferred_element_type=jnp.float32)
         + bv_ref[...]).astype(jnp.bfloat16)

    ctx_heads = []
    for h in range(H):                       # static, small (typically 4-16 heads)
        cols = slice(h * dk, (h + 1) * dk)   # static lane slice, no stack/copy loop
        qh = q[:, cols].reshape(Bt, S, dk)   # leading-dim split: free relayout
        kh = k[:, cols].reshape(Bt, S, dk)
        vh = v[:, cols].reshape(Bt, S, dk)

        # Bt-batched score matmul (leading batch dim, contraction on last dim).
        s = jnp.einsum("bqd,bkd->bqk", qh, kh,
                       preferred_element_type=jnp.float32)                # (Bt, S, S) f32
        s = s + mask_bias                                                 # (Bt, 1, S) bias

        # softmax in f32, reciprocal on the EUP (approx is harmless here).
        mmax = jnp.max(s, axis=-1, keepdims=True)
        p = jnp.exp(s - mmax)
        p = p * pl.reciprocal(jnp.sum(p, axis=-1, keepdims=True), approx=True)

        ctx = jnp.einsum("bqk,bkd->bqd", p.astype(jnp.bfloat16), vh,
                         preferred_element_type=jnp.float32)              # (Bt, S, dk) f32
        ctx_heads.append(ctx.reshape(M, dk).astype(jnp.bfloat16))

    attn = jnp.concatenate(ctx_heads, axis=-1)                            # (M, D) bf16

    attn_out = jnp.dot(attn, wo_ref[...], preferred_element_type=jnp.float32) + bo_ref[...]
    x = x + attn_out                          # residual (dropout is identity)

    # ---------------- sublayer 1: LN -> feed-forward -> residual ----------------
    xn2 = _layer_norm_torch(x, ln2a_ref[...], ln2b_ref[...]).astype(jnp.bfloat16)
    h1 = jnp.dot(xn2, w1_ref[...], preferred_element_type=jnp.float32) + b1_ref[...]
    h1 = jnp.maximum(h1, 0.0).astype(jnp.bfloat16)
    ff = jnp.dot(h1, w2_ref[...], preferred_element_type=jnp.float32) + b2_ref[...]

    o_ref[...] = (x + ff).astype(o_ref.dtype)


def _vmem_capacity_bytes():
    """Physical per-core VMEM; conservative 64 MiB fallback (v7x) if query fails."""
    try:
        info = pltpu.get_tpu_info()
        cap = getattr(info, "vmem_capacity_bytes", None)
        if cap:
            return int(cap)
    except Exception:
        pass
    return 64 * 1024 * 1024


def _estimate_vmem_bytes(block_b, S, D, d_ff, H, single_buffer_weights):
    """Rough per-step VMEM requirement with margin."""
    M = block_b * S
    wbuf = 1 if single_buffer_weights else 2
    weights = (4 * D * D + 2 * D * d_ff) * 2 * wbuf               # bf16 weight tiles
    small = (8 * D + 2 * d_ff) * 4 * wbuf                         # f32 biases + LN params
    io = 2 * 2 * M * D * 4 + 2 * block_b * S * 4                  # x/out double-buffered + mask
    live = (14 * M * D + 3 * M * d_ff + 4 * block_b * S * S) * 4  # activations + scores
    return int(1.5 * (weights + small + io + live))


def _choose_block_b(B, S, D, d_ff, H, budget):
    """Largest block_b dividing B that fits the VMEM budget, keeps grid >= 2,
    and stops once M = block_b*S >= 512 (MXU M dim filled)."""
    best = 1
    for bb in range(1, B + 1):
        if B % bb:
            continue
        if bb > 1 and S % 8:
            break
        if B // bb < 2 <= B:
            continue          # keep grid >= 2 for megacore sharding / pipeline overlap
        if _estimate_vmem_bytes(bb, S, D, d_ff, H, True) > budget:
            break
        best = bb
        if bb * S >= 512:
            break
    return best


def encoder_layer(x, mask, params, *, num_heads, block_b=None):
    """x: (B, S, D) f32, mask: (B, 1, S) f32 (nonzero = keep)."""
    B, S, D = x.shape
    d_ff = params["w1"].shape[1]
    assert D % num_heads == 0

    capacity = _vmem_capacity_bytes()
    budget_cap = int(0.85 * capacity)       # leave Mosaic scratch headroom below physical

    if block_b is None:
        block_b = _choose_block_b(B, S, D, d_ff, num_heads, budget_cap)
    assert B % block_b == 0, "block_b must divide B"
    if block_b > 1:
        assert S % 8 == 0, "S must be a multiple of 8 to fold batch into matmul rows"
    grid_b = B // block_b
    M = block_b * S

    # Fold batch into the matmul M dimension; lane-dense (., D) output blocks.
    x2d = x.reshape(B * S, D)

    # bf16 weights: half the DMA bytes and VMEM footprint, native MXU dtype.
    wq = params["wq"].astype(jnp.bfloat16)
    wk = params["wk"].astype(jnp.bfloat16)
    wv = params["wv"].astype(jnp.bfloat16)
    wo = params["wo"].astype(jnp.bfloat16)
    w1 = params["w1"].astype(jnp.bfloat16)
    w2 = params["w2"].astype(jnp.bfloat16)

    vmem_limit = min(
        max(_estimate_vmem_bytes(block_b, S, D, d_ff, num_heads, True), 16 * 1024 * 1024),
        budget_cap,
    )

    kernel = functools.partial(encoder_layer_kernel, num_heads=num_heads)

    def run(single_buffer_weights):
        def const_spec(shape):
            # Grid-invariant operand (weights / biases / LN params).
            idx = lambda i: tuple(0 for _ in shape)
            if single_buffer_weights:
                return pl.BlockSpec(shape, idx, pipeline_mode=pl.Buffered(1))
            return pl.BlockSpec(shape, idx)

        in_specs = [
            pl.BlockSpec((M, D), lambda i: (i, 0)),              # x (batch-folded rows)
            pl.BlockSpec((block_b, 1, S), lambda i: (i, 0, 0)),  # mask
            const_spec((1, D)), const_spec((1, D)),              # ln1 a, b
            const_spec((D, D)), const_spec((1, D)),              # wq, bq
            const_spec((D, D)), const_spec((1, D)),              # wk, bk
            const_spec((D, D)), const_spec((1, D)),              # wv, bv
            const_spec((D, D)), const_spec((1, D)),              # wo, bo
            const_spec((1, D)), const_spec((1, D)),              # ln2 a, b
            const_spec((D, d_ff)), const_spec((1, d_ff)),        # w1, b1
            const_spec((d_ff, D)), const_spec((1, D)),           # w2, b2
        ]

        return pl.pallas_call(
            kernel,
            out_shape=jax.ShapeDtypeStruct((B * S, D), x.dtype),
            grid_spec=pltpu.PrefetchScalarGridSpec(
                num_scalar_prefetch=0,
                grid=(grid_b,),
                in_specs=in_specs,
                out_specs=pl.BlockSpec((M, D), lambda i: (i, 0)),
            ),
            compiler_params=pltpu.CompilerParams(
                dimension_semantics=("parallel",),   # independent batch blocks (v7x: 2 TCs)
                vmem_limit_bytes=vmem_limit,
            ),
        )(
            x2d, mask,
            params["ln1_a"], params["ln1_b"],
            wq, params["bq"], wk, params["bk"],
            wv, params["bv"], wo, params["bo"],
            params["ln2_a"], params["ln2_b"],
            w1, params["b1"], w2, params["b2"],
        )

    try:
        out2d = run(True)
    except Exception:
        # pl.Buffered(1) / pipeline_mode unsupported on this jax version -> default buffering.
        out2d = run(False)
    return out2d.reshape(B, S, D)


def encoder_layer_ref(x, mask, p, *, num_heads):
    """Pure-JAX f32 reference mirroring the PyTorch forward (dropout=identity)."""
    B, S, D = x.shape
    dk = D // num_heads

    def ln(z, a, b, eps=1e-6):
        mean = jnp.mean(z, axis=-1, keepdims=True)
        std = jnp.sqrt(jnp.sum((z - mean) ** 2, axis=-1, keepdims=True) / (D - 1))
        return a * (z - mean) / (std + eps) + b

    xn = ln(x, p["ln1_a"], p["ln1_b"])
    q = xn @ p["wq"] + p["bq"]
    k = xn @ p["wk"] + p["bk"]
    v = xn @ p["wv"] + p["bv"]
    q = q.reshape(B, S, num_heads, dk).transpose(0, 2, 1, 3)
    k = k.reshape(B, S, num_heads, dk).transpose(0, 2, 1, 3)
    v = v.reshape(B, S, num_heads, dk).transpose(0, 2, 1, 3)
    scores = jnp.einsum("bhqd,bhkd->bhqk", q, k) / math.sqrt(dk)
    m = mask[:, None, :, :]  # (B,1,1,S)
    scores = jnp.where(m == 0.0, -1e9, scores)
    attn = jax.nn.softmax(scores, axis=-1)
    o = jnp.einsum("bhqk,bhkd->bhqd", attn, v).transpose(0, 2, 1, 3).reshape(B, S, D)
    x = x + (o @ p["wo"] + p["bo"])
    xn2 = ln(x, p["ln2_a"], p["ln2_b"])
    ff = jnp.maximum(xn2 @ p["w1"] + p["b1"], 0.0) @ p["w2"] + p["b2"]
    return x + ff


def make_params(key, d_model, d_ff):
    keys = jax.random.split(key, 8)
    scale = 0.1
    return {
        "ln1_a": jnp.ones((1, d_model), jnp.float32),
        "ln1_b": jnp.zeros((1, d_model), jnp.float32),
        "ln2_a": jnp.ones((1, d_model), jnp.float32),
        "ln2_b": jnp.zeros((1, d_model), jnp.float32),
        "wq": scale * jax.random.normal(keys[0], (d_model, d_model), jnp.float32),
        "wk": scale * jax.random.normal(keys[1], (d_model, d_model), jnp.float32),
        "wv": scale * jax.random.normal(keys[2], (d_model, d_model), jnp.float32),
        "wo": scale * jax.random.normal(keys[3], (d_model, d_model), jnp.float32),
        "bq": scale * jax.random.normal(keys[4], (1, d_model), jnp.float32),
        "bk": jnp.zeros((1, d_model), jnp.float32),
        "bv": jnp.zeros((1, d_model), jnp.float32),
        "bo": scale * jax.random.normal(keys[5], (1, d_model), jnp.float32),
        "w1": scale * jax.random.normal(keys[6], (d_model, d_ff), jnp.float32),
        "b1": jnp.zeros((1, d_ff), jnp.float32),
        "w2": scale * jax.random.normal(keys[7], (d_ff, d_model), jnp.float32),
        "b2": jnp.zeros((1, d_model), jnp.float32),
    }


if __name__ == "__main__":
    # NOTE: toy sizes. For real models keep D / d_ff multiples of 128 and S a
    # multiple of 8 so tiles are lane/sublane aligned.
    B, S, D, H, D_FF = 4, 8, 32, 4, 64

    key = jax.random.PRNGKey(0)
    kx, kp = jax.random.split(key)
    x = jax.random.normal(kx, (B, S, D), jnp.float32)

    # mask: (B, 1, S); batches 1 and 3 have trailing positions masked out.
    mask = jnp.ones((B, 1, S), jnp.float32)
    mask = mask.at[1, 0, S - 2:].set(0.0)
    mask = mask.at[3, 0, S - 3:].set(0.0)

    params = make_params(kp, D, D_FF)

    out = encoder_layer(x, mask, params, num_heads=H, block_b=None)
    out = jax.block_until_ready(out)

    ref = encoder_layer_ref(x, mask, params, num_heads=H)
    assert out.shape == (B, S, D)
    max_err = float(jnp.max(jnp.abs(out - ref)))
    # bf16 matmul operands + approx softmax reciprocal -> bf16-appropriate tolerance.
    assert jnp.allclose(out, ref, atol=5e-2, rtol=5e-2), f"mismatch vs reference (max abs err {max_err})"

    print("KERNEL_OK")
</pallas_src>

<mosaic_0001>
module attributes {stable_mosaic.version = 11 : i64} {
  func.func @encoder_layer_kernel(%arg0: i32, %arg1: memref<16x32xf32, #tpu.memory_space<vmem>>, %arg2: memref<2x1x8xf32, #tpu.memory_space<vmem>>, %arg3: memref<1x32xf32, #tpu.memory_space<vmem>>, %arg4: memref<1x32xf32, #tpu.memory_space<vmem>>, %arg5: memref<32x32xbf16, #tpu.memory_space<vmem>>, %arg6: memref<1x32xf32, #tpu.memory_space<vmem>>, %arg7: memref<32x32xbf16, #tpu.memory_space<vmem>>, %arg8: memref<1x32xf32, #tpu.memory_space<vmem>>, %arg9: memref<32x32xbf16, #tpu.memory_space<vmem>>, %arg10: memref<1x32xf32, #tpu.memory_space<vmem>>, %arg11: memref<32x32xbf16, #tpu.memory_space<vmem>>, %arg12: memref<1x32xf32, #tpu.memory_space<vmem>>, %arg13: memref<1x32xf32, #tpu.memory_space<vmem>>, %arg14: memref<1x32xf32, #tpu.memory_space<vmem>>, %arg15: memref<32x64xbf16, #tpu.memory_space<vmem>>, %arg16: memref<1x64xf32, #tpu.memory_space<vmem>>, %arg17: memref<64x32xbf16, #tpu.memory_space<vmem>>, %arg18: memref<1x32xf32, #tpu.memory_space<vmem>>, %arg19: memref<16x32xf32, #tpu.memory_space<vmem>>) attributes {dimension_semantics = [#tpu.dimension_semantics<parallel>], iteration_bounds = array<i64: 2>, scalar_prefetch = 0 : i64, scratch_operands = 0 : i64, tpu.core_type = #tpu.core_type<tc>, window_params = [{transform_indices = @transform_0, window_bounds = array<i64: 16, 32>}, {transform_indices = @transform_1, window_bounds = array<i64: 2, 1, 8>}, {pipeline_mode = #tpu.pipeline_mode<synchronous>, transform_indices = @transform_2, window_bounds = array<i64: 1, 32>}, {pipeline_mode = #tpu.pipeline_mode<synchronous>, transform_indices = @transform_3, window_bounds = array<i64: 1, 32>}, {pipeline_mode = #tpu.pipeline_mode<synchronous>, transform_indices = @transform_4, window_bounds = array<i64: 32, 32>}, {pipeline_mode = #tpu.pipeline_mode<synchronous>, transform_indices = @transform_5, window_bounds = array<i64: 1, 32>}, {pipeline_mode = #tpu.pipeline_mode<synchronous>, transform_indices = @transform_6, window_bounds = array<i64: 32, 32>}, {pipeline_mode = #tpu.pipeline_mode<synchronous>, transform_indices = @transform_7, window_bounds = array<i64: 1, 32>}, {pipeline_mode = #tpu.pipeline_mode<synchronous>, transform_indices = @transform_8, window_bounds = array<i64: 32, 32>}, {pipeline_mode = #tpu.pipeline_mode<synchronous>, transform_indices = @transform_9, window_bounds = array<i64: 1, 32>}, {pipeline_mode = #tpu.pipeline_mode<synchronous>, transform_indices = @transform_10, window_bounds = array<i64: 32, 32>}, {pipeline_mode = #tpu.pipeline_mode<synchronous>, transform_indices = @transform_11, window_bounds = array<i64: 1, 32>}, {pipeline_mode = #tpu.pipeline_mode<synchronous>, transform_indices = @transform_12, window_bounds = array<i64: 1, 32>}, {pipeline_mode = #tpu.pipeline_mode<synchronous>, transform_indices = @transform_13, window_bounds = array<i64: 1, 32>}, {pipeline_mode = #tpu.pipeline_mode<synchronous>, transform_indices = @transform_14, window_bounds = array<i64: 32, 64>}, {pipeline_mode = #tpu.pipeline_mode<synchronous>, transform_indices = @transform_15, window_bounds = array<i64: 1, 64>}, {pipeline_mode = #tpu.pipeline_mode<synchronous>, transform_indices = @transform_16, window_bounds = array<i64: 64, 32>}, {pipeline_mode = #tpu.pipeline_mode<synchronous>, transform_indices = @transform_17, window_bounds = array<i64: 1, 32>}, {transform_indices = @transform_18, window_bounds = array<i64: 16, 32>}]} {
    %c0 = arith.constant 0 : index
    %c0_0 = arith.constant 0 : index
    %0 = vector.load %arg1[%c0, %c0_0] : memref<16x32xf32, #tpu.memory_space<vmem>>, vector<16x32xf32>
    %c0_1 = arith.constant 0 : index
    %c0_2 = arith.constant 0 : index
    %c0_3 = arith.constant 0 : index
    %1 = vector.load %arg2[%c0_1, %c0_2, %c0_3] : memref<2x1x8xf32, #tpu.memory_space<vmem>>, vector<2x1x8xf32>
    %cst = arith.constant 0.000000e+00 : f32
    %2 = vector.broadcast %cst : f32 to vector<2x1x8xf32>
    %3 = arith.cmpf oeq, %1, %2 : vector<2x1x8xf32>
    %cst_4 = arith.constant -1.000000e+09 : f32
    %cst_5 = arith.constant 0.000000e+00 : f32
    %4 = vector.broadcast %cst_4 : f32 to vector<2x1x8xf32>
    %5 = vector.broadcast %cst_5 : f32 to vector<2x1x8xf32>
    %6 = arith.select %3, %4, %5 : vector<2x1x8xi1>, vector<2x1x8xf32>
    %c0_6 = arith.constant 0 : index
    %c0_7 = arith.constant 0 : index
    %7 = vector.load %arg3[%c0_6, %c0_7] : memref<1x32xf32, #tpu.memory_space<vmem>>, vector<1x32xf32>
    %c0_8 = arith.constant 0 : index
    %c0_9 = arith.constant 0 : index
    %8 = vector.load %arg4[%c0_8, %c0_9] : memref<1x32xf32, #tpu.memory_space<vmem>>, vector<1x32xf32>
    %cst_10 = arith.constant dense<0.000000e+00> : vector<16xf32>
    %9 = vector.multi_reduction <add>, %0, %cst_10 [1] : vector<16x32xf32> to vector<16xf32>
    %10 = vector.shape_cast %9 : vector<16xf32> to vector<16x1xf32>
    %cst_11 = arith.constant 3.200000e+01 : f32
    %11 = vector.broadcast %cst_11 : f32 to vector<16x1xf32>
    %12 = arith.divf %10, %11 : vector<16x1xf32>
    %13 = vector.broadcast %12 : vector<16x1xf32> to vector<16x32xf32>
    %14 = arith.subf %0, %13 : vector<16x32xf32>
    %15 = arith.mulf %14, %14 : vector<16x32xf32>
    %cst_12 = arith.constant dense<0.000000e+00> : vector<16xf32>
    %16 = vector.multi_reduction <add>, %15, %cst_12 [1] : vector<16x32xf32> to vector<16xf32>
    %17 = vector.shape_cast %16 : vector<16xf32> to vector<16x1xf32>
    %cst_13 = arith.constant 0.0322580636 : f32
    %18 = vector.broadcast %cst_13 : f32 to vector<16x1xf32>
    %19 = arith.mulf %17, %18 : vector<16x1xf32>
    %20 = math.sqrt %19 : vector<16x1xf32>
    %21 = vector.broadcast %7 : vector<1x32xf32> to vector<16x32xf32>
    %22 = arith.mulf %21, %14 : vector<16x32xf32>
    %cst_14 = arith.constant 9.99999997E-7 : f32
    %23 = vector.broadcast %cst_14 : f32 to vector<16x1xf32>
    %24 = arith.addf %20, %23 : vector<16x1xf32>
    %25 = vector.broadcast %24 : vector<16x1xf32> to vector<16x32xf32>
    %26 = arith.divf %22, %25 : vector<16x32xf32>
    %27 = vector.broadcast %8 : vector<1x32xf32> to vector<16x32xf32>
    %28 = arith.addf %26, %27 : vector<16x32xf32>
    %29 = arith.truncf %28 : vector<16x32xf32> to vector<16x32xbf16>
    %c0_15 = arith.constant 0 : index
    %c0_16 = arith.constant 0 : index
    %30 = vector.load %arg5[%c0_15, %c0_16] : memref<32x32xbf16, #tpu.memory_space<vmem>>, vector<32x32xbf16>
    %cst_17 = arith.constant dense<0.000000e+00> : vector<16x32xf32>
    %31 = tpu.matmul %29, %30, %cst_17 {dimension_numbers = #tpu.dot_dimension_numbers<[1], [0], [0], [1], [0, 0, 1, 1], [], []>} : vector<16x32xbf16>, vector<32x32xbf16>, vector<16x32xf32> -> vector<16x32xf32>
    %c0_18 = arith.constant 0 : index
    %c0_19 = arith.constant 0 : index
    %32 = vector.load %arg6[%c0_18, %c0_19] : memref<1x32xf32, #tpu.memory_space<vmem>>, vector<1x32xf32>
    %33 = vector.broadcast %32 : vector<1x32xf32> to vector<16x32xf32>
    %34 = arith.addf %31, %33 : vector<16x32xf32>
    %cst_20 = arith.constant 0.353553385 : f32
    %35 = vector.broadcast %cst_20 : f32 to vector<16x32xf32>
    %36 = arith.mulf %34, %35 : vector<16x32xf32>
    %37 = arith.truncf %36 : vector<16x32xf32> to vector<16x32xbf16>
    %c0_21 = arith.constant 0 : index
    %c0_22 = arith.constant 0 : index
    %38 = vector.load %arg7[%c0_21, %c0_22] : memref<32x32xbf16, #tpu.memory_space<vmem>>, vector<32x32xbf16>
    %cst_23 = arith.constant dense<0.000000e+00> : vector<16x32xf32>
    %39 = tpu.matmul %29, %38, %cst_23 {dimension_numbers = #tpu.dot_dimension_numbers<[1], [0], [0], [1], [0, 0, 1, 1], [], []>} : vector<16x32xbf16>, vector<32x32xbf16>, vector<16x32xf32> -> vector<16x32xf32>
    %c0_24 = arith.constant 0 : index
    %c0_25 = arith.constant 0 : index
    %40 = vector.load %arg8[%c0_24, %c0_25] : memref<1x32xf32, #tpu.memory_space<vmem>>, vector<1x32xf32>
    %41 = vector.broadcast %40 : vector<1x32xf32> to vector<16x32xf32>
    %42 = arith.addf %39, %41 : vector<16x32xf32>
    %43 = arith.truncf %42 : vector<16x32xf32> to vector<16x32xbf16>
    %c0_26 = arith.constant 0 : index
    %c0_27 = arith.constant 0 : index
    %44 = vector.load %arg9[%c0_26, %c0_27] : memref<32x32xbf16, #tpu.memory_space<vmem>>, vector<32x32xbf16>
    %cst_28 = arith.constant dense<0.000000e+00> : vector<16x32xf32>
    %45 = tpu.matmul %29, %44, %cst_28 {dimension_numbers = #tpu.dot_dimension_numbers<[1], [0], [0], [1], [0, 0, 1, 1], [], []>} : vector<16x32xbf16>, vector<32x32xbf16>, vector<16x32xf32> -> vector<16x32xf32>
    %c0_29 = arith.constant 0 : index
    %c0_30 = arith.constant 0 : index
    %46 = vector.load %arg10[%c0_29, %c0_30] : memref<1x32xf32, #tpu.memory_space<vmem>>, vector<1x32xf32>
    %47 = vector.broadcast %46 : vector<1x32xf32> to vector<16x32xf32>
    %48 = arith.addf %45, %47 : vector<16x32xf32>
    %49 = arith.truncf %48 : vector<16x32xf32> to vector<16x32xbf16>
    %50 = vector.extract_strided_slice %37 {offsets = [0, 0], sizes = [16, 8], strides = [1, 1]} : vector<16x32xbf16> to vector<16x8xbf16>
    %51 = vector.shape_cast %50 : vector<16x8xbf16> to vector<2x8x8xbf16>
    %52 = vector.extract_strided_slice %43 {offsets = [0, 0], sizes = [16, 8], strides = [1, 1]} : vector<16x32xbf16> to vector<16x8xbf16>
    %53 = vector.shape_cast %52 : vector<16x8xbf16> to vector<2x8x8xbf16>
    %54 = vector.extract_strided_slice %49 {offsets = [0, 0], sizes = [16, 8], strides = [1, 1]} : vector<16x32xbf16> to vector<16x8xbf16>
    %55 = vector.shape_cast %54 : vector<16x8xbf16> to vector<2x8x8xbf16>
    "tpu.trace_start"() <{level = 10 : i32, message = "bqd,bkd->bqk"}> : () -> ()
    %cst_31 = arith.constant dense<0.000000e+00> : vector<2x8x8xf32>
    %56 = tpu.matmul %51, %53, %cst_31 {dimension_numbers = #tpu.dot_dimension_numbers<[2], [2], [1], [1], [0, 0, 0, 1, 1, 1], [0], [0]>} : vector<2x8x8xbf16>, vector<2x8x8xbf16>, vector<2x8x8xf32> -> vector<2x8x8xf32>
    "tpu.trace_stop"() : () -> ()
    %57 = vector.broadcast %6 : vector<2x1x8xf32> to vector<2x8x8xf32>
    %58 = arith.addf %56, %57 : vector<2x8x8xf32>
    %cst_32 = arith.constant dense<0xFF800000> : vector<2x8xf32>
    %59 = vector.multi_reduction <maximumf>, %58, %cst_32 [2] : vector<2x8x8xf32> to vector<2x8xf32>
    %60 = vector.shape_cast %59 : vector<2x8xf32> to vector<2x8x1xf32>
    %61 = vector.broadcast %60 : vector<2x8x1xf32> to vector<2x8x8xf32>
    %62 = arith.subf %58, %61 : vector<2x8x8xf32>
    %63 = math.exp %62 : vector<2x8x8xf32>
    %cst_33 = arith.constant dense<0.000000e+00> : vector<2x8xf32>
    %64 = vector.multi_reduction <add>, %63, %cst_33 [2] : vector<2x8x8xf32> to vector<2x8xf32>
    %65 = vector.shape_cast %64 : vector<2x8xf32> to vector<2x8x1xf32>
    %66 = tpu.reciprocal %65 {approx = true} : vector<2x8x1xf32> -> vector<2x8x1xf32>
    %67 = vector.broadcast %66 : vector<2x8x1xf32> to vector<2x8x8xf32>
    %68 = arith.mulf %63, %67 : vector<2x8x8xf32>
    %69 = arith.truncf %68 : vector<2x8x8xf32> to vector<2x8x8xbf16>
    "tpu.trace_start"() <{level = 10 : i32, message = "bqk,bkd->bqd"}> : () -> ()
    %cst_34 = arith.constant dense<0.000000e+00> : vector<2x8x8xf32>
    %70 = tpu.matmul %69, %55, %cst_34 {dimension_numbers = #tpu.dot_dimension_numbers<[2], [1], [1], [2], [0, 0, 0, 1, 1, 2], [0], [0]>} : vector<2x8x8xbf16>, vector<2x8x8xbf16>, vector<2x8x8xf32> -> vector<2x8x8xf32>
    "tpu.trace_stop"() : () -> ()
    %71 = vector.shape_cast %70 : vector<2x8x8xf32> to vector<16x8xf32>
    %72 = arith.truncf %71 : vector<16x8xf32> to vector<16x8xbf16>
    %73 = vector.extract_strided_slice %37 {offsets = [0, 8], sizes = [16, 8], strides = [1, 1]} : vector<16x32xbf16> to vector<16x8xbf16>
    %74 = vector.shape_cast %73 : vector<16x8xbf16> to vector<2x8x8xbf16>
    %75 = vector.extract_strided_slice %43 {offsets = [0, 8], sizes = [16, 8], strides = [1, 1]} : vector<16x32xbf16> to vector<16x8xbf16>
    %76 = vector.shape_cast %75 : vector<16x8xbf16> to vector<2x8x8xbf16>
    %77 = vector.extract_strided_slice %49 {offsets = [0, 8], sizes = [16, 8], strides = [1, 1]} : vector<16x32xbf16> to vector<16x8xbf16>
    %78 = vector.shape_cast %77 : vector<16x8xbf16> to vector<2x8x8xbf16>
    "tpu.trace_start"() <{level = 10 : i32, message = "bqd,bkd->bqk"}> : () -> ()
    %cst_35 = arith.constant dense<0.000000e+00> : vector<2x8x8xf32>
    %79 = tpu.matmul %74, %76, %cst_35 {dimension_numbers = #tpu.dot_dimension_numbers<[2], [2], [1], [1], [0, 0, 0, 1, 1, 1], [0], [0]>} : vector<2x8x8xbf16>, vector<2x8x8xbf16>, vector<2x8x8xf32> -> vector<2x8x8xf32>
    "tpu.trace_stop"() : () -> ()
    %80 = vector.broadcast %6 : vector<2x1x8xf32> to vector<2x8x8xf32>
    %81 = arith.addf %79, %80 : vector<2x8x8xf32>
    %cst_36 = arith.constant dense<0xFF800000> : vector<2x8xf32>
    %82 = vector.multi_reduction <maximumf>, %81, %cst_36 [2] : vector<2x8x8xf32> to vector<2x8xf32>
    %83 = vector.shape_cast %82 : vector<2x8xf32> to vector<2x8x1xf32>
    %84 = vector.broadcast %83 : vector<2x8x1xf32> to vector<2x8x8xf32>
    %85 = arith.subf %81, %84 : vector<2x8x8xf32>
    %86 = math.exp %85 : vector<2x8x8xf32>
    %cst_37 = arith.constant dense<0.000000e+00> : vector<2x8xf32>
    %87 = vector.multi_reduction <add>, %86, %cst_37 [2] : vector<2x8x8xf32> to vector<2x8xf32>
    %88 = vector.shape_cast %87 : vector<2x8xf32> to vector<2x8x1xf32>
    %89 = tpu.reciprocal %88 {approx = true} : vector<2x8x1xf32> -> vector<2x8x1xf32>
    %90 = vector.broadcast %89 : vector<2x8x1xf32> to vector<2x8x8xf32>
    %91 = arith.mulf %86, %90 : vector<2x8x8xf32>
    %92 = arith.truncf %91 : vector<2x8x8xf32> to vector<2x8x8xbf16>
    "tpu.trace_start"() <{level = 10 : i32, message = "bqk,bkd->bqd"}> : () -> ()
    %cst_38 = arith.constant dense<0.000000e+00> : vector<2x8x8xf32>
    %93 = tpu.matmul %92, %78, %cst_38 {dimension_numbers = #tpu.dot_dimension_numbers<[2], [1], [1], [2], [0, 0, 0, 1, 1, 2], [0], [0]>} : vector<2x8x8xbf16>, vector<2x8x8xbf16>, vector<2x8x8xf32> -> vector<2x8x8xf32>
    "tpu.trace_stop"() : () -> ()
    %94 = vector.shape_cast %93 : vector<2x8x8xf32> to vector<16x8xf32>
    %95 = arith.truncf %94 : vector<16x8xf32> to vector<16x8xbf16>
    %96 = vector.extract_strided_slice %37 {offsets = [0, 16], sizes = [16, 8], strides = [1, 1]} : vector<16x32xbf16> to vector<16x8xbf16>
    %97 = vector.shape_cast %96 : vector<16x8xbf16> to vector<2x8x8xbf16>
    %98 = vector.extract_strided_slice %43 {offsets = [0, 16], sizes = [16, 8], strides = [1, 1]} : vector<16x32xbf16> to vector<16x8xbf16>
    %99 = vector.shape_cast %98 : vector<16x8xbf16> to vector<2x8x8xbf16>
    %100 = vector.extract_strided_slice %49 {offsets = [0, 16], sizes = [16, 8], strides = [1, 1]} : vector<16x32xbf16> to vector<16x8xbf16>
    %101 = vector.shape_cast %100 : vector<16x8xbf16> to vector<2x8x8xbf16>
    "tpu.trace_start"() <{level = 10 : i32, message = "bqd,bkd->bqk"}> : () -> ()
    %cst_39 = arith.constant dense<0.000000e+00> : vector<2x8x8xf32>
    %102 = tpu.matmul %97, %99, %cst_39 {dimension_numbers = #tpu.dot_dimension_numbers<[2], [2], [1], [1], [0, 0, 0, 1, 1, 1], [0], [0]>} : vector<2x8x8xbf16>, vector<2x8x8xbf16>, vector<2x8x8xf32> -> vector<2x8x8xf32>
    "tpu.trace_stop"() : () -> ()
    %103 = vector.broadcast %6 : vector<2x1x8xf32> to vector<2x8x8xf32>
    %104 = arith.addf %102, %103 : vector<2x8x8xf32>
    %cst_40 = arith.constant dense<0xFF800000> : vector<2x8xf32>
    %105 = vector.multi_reduction <maximumf>, %104, %cst_40 [2] : vector<2x8x8xf32> to vector<2x8xf32>
    %106 = vector.shape_cast %105 : vector<2x8xf32> to vector<2x8x1xf32>
    %107 = vector.broadcast %106 : vector<2x8x1xf32> to vector<2x8x8xf32>
    %108 = arith.subf %104, %107 : vector<2x8x8xf32>
    %109 = math.exp %108 : vector<2x8x8xf32>
    %cst_41 = arith.constant dense<0.000000e+00> : vector<2x8xf32>
    %110 = vector.multi_reduction <add>, %109, %cst_41 [2] : vector<2x8x8xf32> to vector<2x8xf32>
    %111 = vector.shape_cast %110 : vector<2x8xf32> to vector<2x8x1xf32>
    %112 = tpu.reciprocal %111 {approx = true} : vector<2x8x1xf32> -> vector<2x8x1xf32>
    %113 = vector.broadcast %112 : vector<2x8x1xf32> to vector<2x8x8xf32>
    %114 = arith.mulf %109, %113 : vector<2x8x8xf32>
    %115 = arith.truncf %114 : vector<2x8x8xf32> to vector<2x8x8xbf16>
    "tpu.trace_start"() <{level = 10 : i32, message = "bqk,bkd->bqd"}> : () -> ()
    %cst_42 = arith.constant dense<0.000000e+00> : vector<2x8x8xf32>
    %116 = tpu.matmul %115, %101, %cst_42 {dimension_numbers = #tpu.dot_dimension_numbers<[2], [1], [1], [2], [0, 0, 0, 1, 1, 2], [0], [0]>} : vector<2x8x8xbf16>, vector<2x8x8xbf16>, vector<2x8x8xf32> -> vector<2x8x8xf32>
    "tpu.trace_stop"() : () -> ()
    %117 = vector.shape_cast %116 : vector<2x8x8xf32> to vector<16x8xf32>
    %118 = arith.truncf %117 : vector<16x8xf32> to vector<16x8xbf16>
    %119 = vector.extract_strided_slice %37 {offsets = [0, 24], sizes = [16, 8], strides = [1, 1]} : vector<16x32xbf16> to vector<16x8xbf16>
    %120 = vector.shape_cast %119 : vector<16x8xbf16> to vector<2x8x8xbf16>
    %121 = vector.extract_strided_slice %43 {offsets = [0, 24], sizes = [16, 8], strides = [1, 1]} : vector<16x32xbf16> to vector<16x8xbf16>
    %122 = vector.shape_cast %121 : vector<16x8xbf16> to vector<2x8x8xbf16>
    %123 = vector.extract_strided_slice %49 {offsets = [0, 24], sizes = [16, 8], strides = [1, 1]} : vector<16x32xbf16> to vector<16x8xbf16>
    %124 = vector.shape_cast %123 : vector<16x8xbf16> to vector<2x8x8xbf16>
    "tpu.trace_start"() <{level = 10 : i32, message = "bqd,bkd->bqk"}> : () -> ()
    %cst_43 = arith.constant dense<0.000000e+00> : vector<2x8x8xf32>
    %125 = tpu.matmul %120, %122, %cst_43 {dimension_numbers = #tpu.dot_dimension_numbers<[2], [2], [1], [1], [0, 0, 0, 1, 1, 1], [0], [0]>} : vector<2x8x8xbf16>, vector<2x8x8xbf16>, vector<2x8x8xf32> -> vector<2x8x8xf32>
    "tpu.trace_stop"() : () -> ()
    %126 = vector.broadcast %6 : vector<2x1x8xf32> to vector<2x8x8xf32>
    %127 = arith.addf %125, %126 : vector<2x8x8xf32>
    %cst_44 = arith.constant dense<0xFF800000> : vector<2x8xf32>
    %128 = vector.multi_reduction <maximumf>, %127, %cst_44 [2] : vector<2x8x8xf32> to vector<2x8xf32>
    %129 = vector.shape_cast %128 : vector<2x8xf32> to vector<2x8x1xf32>
    %130 = vector.broadcast %129 : vector<2x8x1xf32> to vector<2x8x8xf32>
    %131 = arith.subf %127, %130 : vector<2x8x8xf32>
    %132 = math.exp %131 : vector<2x8x8xf32>
    %cst_45 = arith.constant dense<0.000000e+00> : vector<2x8xf32>
    %133 = vector.multi_reduction <add>, %132, %cst_45 [2] : vector<2x8x8xf32> to vector<2x8xf32>
    %134 = vector.shape_cast %133 : vector<2x8xf32> to vector<2x8x1xf32>
    %135 = tpu.reciprocal %134 {approx = true} : vector<2x8x1xf32> -> vector<2x8x1xf32>
    %136 = vector.broadcast %135 : vector<2x8x1xf32> to vector<2x8x8xf32>
    %137 = arith.mulf %132, %136 : vector<2x8x8xf32>
    %138 = arith.truncf %137 : vector<2x8x8xf32> to vector<2x8x8xbf16>
    "tpu.trace_start"() <{level = 10 : i32, message = "bqk,bkd->bqd"}> : () -> ()
    %cst_46 = arith.constant dense<0.000000e+00> : vector<2x8x8xf32>
    %139 = tpu.matmul %138, %124, %cst_46 {dimension_numbers = #tpu.dot_dimension_numbers<[2], [1], [1], [2], [0, 0, 0, 1, 1, 2], [0], [0]>} : vector<2x8x8xbf16>, vector<2x8x8xbf16>, vector<2x8x8xf32> -> vector<2x8x8xf32>
    "tpu.trace_stop"() : () -> ()
    %140 = vector.shape_cast %139 : vector<2x8x8xf32> to vector<16x8xf32>
    %141 = arith.truncf %140 : vector<16x8xf32> to vector<16x8xbf16>
    %142 = tpu.concatenate %72, %95, %118, %141 in 1 : vector<16x8xbf16>, vector<16x8xbf16>, vector<16x8xbf16>, vector<16x8xbf16> -> vector<16x32xbf16>
    %c0_47 = arith.constant 0 : index
    %c0_48 = arith.constant 0 : index
    %143 = vector.load %arg11[%c0_47, %c0_48] : memref<32x32xbf16, #tpu.memory_space<vmem>>, vector<32x32xbf16>
    %cst_49 = arith.constant dense<0.000000e+00> : vector<16x32xf32>
    %144 = tpu.matmul %142, %143, %cst_49 {dimension_numbers = #tpu.dot_dimension_numbers<[1], [0], [0], [1], [0, 0, 1, 1], [], []>} : vector<16x32xbf16>, vector<32x32xbf16>, vector<16x32xf32> -> vector<16x32xf32>
    %c0_50 = arith.constant 0 : index
    %c0_51 = arith.constant 0 : index
    %145 = vector.load %arg12[%c0_50, %c0_51] : memref<1x32xf32, #tpu.memory_space<vmem>>, vector<1x32xf32>
    %146 = vector.broadcast %145 : vector<1x32xf32> to vector<16x32xf32>
    %147 = arith.addf %144, %146 : vector<16x32xf32>
    %148 = arith.addf %0, %147 : vector<16x32xf32>
    %c0_52 = arith.constant 0 : index
    %c0_53 = arith.constant 0 : index
    %149 = vector.load %arg13[%c0_52, %c0_53] : memref<1x32xf32, #tpu.memory_space<vmem>>, vector<1x32xf32>
    %c0_54 = arith.constant 0 : index
    %c0_55 = arith.constant 0 : index
    %150 = vector.load %arg14[%c0_54, %c0_55] : memref<1x32xf32, #tpu.memory_space<vmem>>, vector<1x32xf32>
    %cst_56 = arith.constant dense<0.000000e+00> : vector<16xf32>
    %151 = vector.multi_reduction <add>, %148, %cst_56 [1] : vector<16x32xf32> to vector<16xf32>
    %152 = vector.shape_cast %151 : vector<16xf32> to vector<16x1xf32>
    %cst_57 = arith.constant 3.200000e+01 : f32
    %153 = vector.broadcast %cst_57 : f32 to vector<16x1xf32>
    %154 = arith.divf %152, %153 : vector<16x1xf32>
    %155 = vector.broadcast %154 : vector<16x1xf32> to vector<16x32xf32>
    %156 = arith.subf %148, %155 : vector<16x32xf32>
    %157 = arith.mulf %156, %156 : vector<16x32xf32>
    %cst_58 = arith.constant dense<0.000000e+00> : vector<16xf32>
    %158 = vector.multi_reduction <add>, %157, %cst_58 [1] : vector<16x32xf32> to vector<16xf32>
    %159 = vector.shape_cast %158 : vector<16xf32> to vector<16x1xf32>
    %cst_59 = arith.constant 0.0322580636 : f32
    %160 = vector.broadcast %cst_59 : f32 to vector<16x1xf32>
    %161 = arith.mulf %159, %160 : vector<16x1xf32>
    %162 = math.sqrt %161 : vector<16x1xf32>
    %163 = vector.broadcast %149 : vector<1x32xf32> to vector<16x32xf32>
    %164 = arith.mulf %163, %156 : vector<16x32xf32>
    %cst_60 = arith.constant 9.99999997E-7 : f32
    %165 = vector.broadcast %cst_60 : f32 to vector<16x1xf32>
    %166 = arith.addf %162, %165 : vector<16x1xf32>
    %167 = vector.broadcast %166 : vector<16x1xf32> to vector<16x32xf32>
    %168 = arith.divf %164, %167 : vector<16x32xf32>
    %169 = vector.broadcast %150 : vector<1x32xf32> to vector<16x32xf32>
    %170 = arith.addf %168, %169 : vector<16x32xf32>
    %171 = arith.truncf %170 : vector<16x32xf32> to vector<16x32xbf16>
    %c0_61 = arith.constant 0 : index
    %c0_62 = arith.constant 0 : index
    %172 = vector.load %arg15[%c0_61, %c0_62] : memref<32x64xbf16, #tpu.memory_space<vmem>>, vector<32x64xbf16>
    %cst_63 = arith.constant dense<0.000000e+00> : vector<16x64xf32>
    %173 = tpu.matmul %171, %172, %cst_63 {dimension_numbers = #tpu.dot_dimension_numbers<[1], [0], [0], [1], [0, 0, 1, 1], [], []>} : vector<16x32xbf16>, vector<32x64xbf16>, vector<16x64xf32> -> vector<16x64xf32>
    %c0_64 = arith.constant 0 : index
    %c0_65 = arith.constant 0 : index
    %174 = vector.load %arg16[%c0_64, %c0_65] : memref<1x64xf32, #tpu.memory_space<vmem>>, vector<1x64xf32>
    %175 = vector.broadcast %174 : vector<1x64xf32> to vector<16x64xf32>
    %176 = arith.addf %173, %175 : vector<16x64xf32>
    %cst_66 = arith.constant 0.000000e+00 : f32
    %177 = vector.broadcast %cst_66 : f32 to vector<16x64xf32>
    %178 = arith.maximumf %176, %177 : vector<16x64xf32>
    %179 = arith.truncf %178 : vector<16x64xf32> to vector<16x64xbf16>
    %c0_67 = arith.constant 0 : index
    %c0_68 = arith.constant 0 : index
    %180 = vector.load %arg17[%c0_67, %c0_68] : memref<64x32xbf16, #tpu.memory_space<vmem>>, vector<64x32xbf16>
    %cst_69 = arith.constant dense<0.000000e+00> : vector<16x32xf32>
    %181 = tpu.matmul %179, %180, %cst_69 {dimension_numbers = #tpu.dot_dimension_numbers<[1], [0], [0], [1], [0, 0, 1, 1], [], []>} : vector<16x64xbf16>, vector<64x32xbf16>, vector<16x32xf32> -> vector<16x32xf32>
    %c0_70 = arith.constant 0 : index
    %c0_71 = arith.constant 0 : index
    %182 = vector.load %arg18[%c0_70, %c0_71] : memref<1x32xf32, #tpu.memory_space<vmem>>, vector<1x32xf32>
    %183 = vector.broadcast %182 : vector<1x32xf32> to vector<16x32xf32>
    %184 = arith.addf %181, %183 : vector<16x32xf32>
    %185 = arith.addf %148, %184 : vector<16x32xf32>
    %c0_72 = arith.constant 0 : index
    %c0_73 = arith.constant 0 : index
    %186 = vector.load %arg19[%c0_72, %c0_73] : memref<16x32xf32, #tpu.memory_space<vmem>>, vector<16x32xf32>
    tpu.vector_store %arg19[%c0_72, %c0_73], %185 {strides = array<i32>} : memref<16x32xf32, #tpu.memory_space<vmem>>, vector<16x32xf32>,
    return
  }
  func.func @transform_0(%arg0: i32) -> (i32, i32) {
    %c0_i32 = arith.constant 0 : i32
    %c0_i32_0 = arith.constant 0 : i32
    return %arg0, %c0_i32 : i32, i32
  }
  func.func @transform_1(%arg0: i32) -> (i32, i32, i32) {
    %c0_i32 = arith.constant 0 : i32
    %c0_i32_0 = arith.constant 0 : i32
    %c0_i32_1 = arith.constant 0 : i32
    return %arg0, %c0_i32, %c0_i32_0 : i32, i32, i32
  }
  func.func @transform_2(%arg0: i32) -> (i32, i32) {
    %c0_i32 = arith.constant 0 : i32
    %c0_i32_0 = arith.constant 0 : i32
    %c0_i32_1 = arith.constant 0 : i32
    return %c0_i32, %c0_i32_0 : i32, i32
  }
  func.func @transform_3(%arg0: i32) -> (i32, i32) {
    %c0_i32 = arith.constant 0 : i32
    %c0_i32_0 = arith.constant 0 : i32
    %c0_i32_1 = arith.constant 0 : i32
    return %c0_i32, %c0_i32_0 : i32, i32
  }
  func.func @transform_4(%arg0: i32) -> (i32, i32) {
    %c0_i32 = arith.constant 0 : i32
    %c0_i32_0 = arith.constant 0 : i32
    %c0_i32_1 = arith.constant 0 : i32
    return %c0_i32, %c0_i32_0 : i32, i32
  }
  func.func @transform_5(%arg0: i32) -> (i32, i32) {
    %c0_i32 = arith.constant 0 : i32
    %c0_i32_0 = arith.constant 0 : i32
    %c0_i32_1 = arith.constant 0 : i32
    return %c0_i32, %c0_i32_0 : i32, i32
  }
  func.func @transform_6(%arg0: i32) -> (i32, i32) {
    %c0_i32 = arith.constant 0 : i32
    %c0_i32_0 = arith.constant 0 : i32
    %c0_i32_1 = arith.constant 0 : i32
    return %c0_i32, %c0_i32_0 : i32, i32
  }
  func.func @transform_7(%arg0: i32) -> (i32, i32) {
    %c0_i32 = arith.constant 0 : i32
    %c0_i32_0 = arith.constant 0 : i32
    %c0_i32_1 = arith.constant 0 : i32
    return %c0_i32, %c0_i32_0 : i32, i32
  }
  func.func @transform_8(%arg0: i32) -> (i32, i32) {
    %c0_i32 = arith.constant 0 : i32
    %c0_i32_0 = arith.constant 0 : i32
    %c0_i32_1 = arith.constant 0 : i32
    return %c0_i32, %c0_i32_0 : i32, i32
  }
  func.func @transform_9(%arg0: i32) -> (i32, i32) {
    %c0_i32 = arith.constant 0 : i32
    %c0_i32_0 = arith.constant 0 : i32
    %c0_i32_1 = arith.constant 0 : i32
    return %c0_i32, %c0_i32_0 : i32, i32
  }
  func.func @transform_10(%arg0: i32) -> (i32, i32) {
    %c0_i32 = arith.constant 0 : i32
    %c0_i32_0 = arith.constant 0 : i32
    %c0_i32_1 = arith.constant 0 : i32
    return %c0_i32, %c0_i32_0 : i32, i32
  }
  func.func @transform_11(%arg0: i32) -> (i32, i32) {
    %c0_i32 = arith.constant 0 : i32
    %c0_i32_0 = arith.constant 0 : i32
    %c0_i32_1 = arith.constant 0 : i32
    return %c0_i32, %c0_i32_0 : i32, i32
  }
  func.func @transform_12(%arg0: i32) -> (i32, i32) {
    %c0_i32 = arith.constant 0 : i32
    %c0_i32_0 = arith.constant 0 : i32
    %c0_i32_1 = arith.constant 0 : i32
    return %c0_i32, %c0_i32_0 : i32, i32
  }
  func.func @transform_13(%arg0: i32) -> (i32, i32) {
    %c0_i32 = arith.constant 0 : i32
    %c0_i32_0 = arith.constant 0 : i32
    %c0_i32_1 = arith.constant 0 : i32
    return %c0_i32, %c0_i32_0 : i32, i32
  }
  func.func @transform_14(%arg0: i32) -> (i32, i32) {
    %c0_i32 = arith.constant 0 : i32
    %c0_i32_0 = arith.constant 0 : i32
    %c0_i32_1 = arith.constant 0 : i32
    return %c0_i32, %c0_i32_0 : i32, i32
  }
  func.func @transform_15(%arg0: i32) -> (i32, i32) {
    %c0_i32 = arith.constant 0 : i32
    %c0_i32_0 = arith.constant 0 : i32
    %c0_i32_1 = arith.constant 0 : i32
    return %c0_i32, %c0_i32_0 : i32, i32
  }
  func.func @transform_16(%arg0: i32) -> (i32, i32) {
    %c0_i32 = arith.constant 0 : i32
    %c0_i32_0 = arith.constant 0 : i32
    %c0_i32_1 = arith.constant 0 : i32
    return %c0_i32, %c0_i32_0 : i32, i32
  }
  func.func @transform_17(%arg0: i32) -> (i32, i32) {
    %c0_i32 = arith.constant 0 : i32
    %c0_i32_0 = arith.constant 0 : i32
    %c0_i32_1 = arith.constant 0 : i32
    return %c0_i32, %c0_i32_0 : i32, i32
  }
  func.func @transform_18(%arg0: i32) -> (i32, i32) {
    %c0_i32 = arith.constant 0 : i32
    %c0_i32_0 = arith.constant 0 : i32
    return %arg0, %c0_i32 : i32, i32
  }
}

module attributes {stable_mosaic.version = 11 : i64} {
  func.func @encoder_layer_kernel(%arg0: i32, %arg1: memref<16x32xf32, #tpu.memory_space<vmem>>, %arg2: memref<2x1x8xf32, #tpu.memory_space<vmem>>, %arg3: memref<1x32xf32, #tpu.memory_space<vmem>>, %arg4: memref<1x32xf32, #tpu.memory_space<vmem>>, %arg5: memref<32x32xbf16, #tpu.memory_space<vmem>>, %arg6: memref<1x32xf32, #tpu.memory_space<vmem>>, %arg7: memref<32x32xbf16, #tpu.memory_space<vmem>>, %arg8: memref<1x32xf32, #tpu.memory_space<vmem>>, %arg9: memref<32x32xbf16, #tpu.memory_space<vmem>>, %arg10: memref<1x32xf32, #tpu.memory_space<vmem>>, %arg11: memref<32x32xbf16, #tpu.memory_space<vmem>>, %arg12: memref<1x32xf32, #tpu.memory_space<vmem>>, %arg13: memref<1x32xf32, #tpu.memory_space<vmem>>, %arg14: memref<1x32xf32, #tpu.memory_space<vmem>>, %arg15: memref<32x64xbf16, #tpu.memory_space<vmem>>, %arg16: memref<1x64xf32, #tpu.memory_space<vmem>>, %arg17: memref<64x32xbf16, #tpu.memory_space<vmem>>, %arg18: memref<1x32xf32, #tpu.memory_space<vmem>>, %arg19: memref<16x32xf32, #tpu.memory_space<vmem>>) attributes {dimension_semantics = [#tpu.dimension_semantics<parallel>], iteration_bounds = array<i64: 2>, scalar_prefetch = 0 : i64, scratch_operands = 0 : i64, tpu.core_type = #tpu.core_type<tc>, window_params = [{transform_indices = @transform_0, window_bounds = array<i64: 16, 32>}, {transform_indices = @transform_1, window_bounds = array<i64: 2, 1, 8>}, {pipeline_mode = #tpu.pipeline_mode<synchronous>, transform_indices = @transform_2, window_bounds = array<i64: 1, 32>}, {pipeline_mode = #tpu.pipeline_mode<synchronous>, transform_indices = @transform_3, window_bounds = array<i64: 1, 32>}, {pipeline_mode = #tpu.pipeline_mode<synchronous>, transform_indices = @transform_4, window_bounds = array<i64: 32, 32>}, {pipeline_mode = #tpu.pipeline_mode<synchronous>, transform_indices = @transform_5, window_bounds = array<i64: 1, 32>}, {pipeline_mode = #tpu.pipeline_mode<synchronous>, transform_indices = @transform_6, window_bounds = array<i64: 32, 32>}, {pipeline_mode = #tpu.pipeline_mode<synchronous>, transform_indices = @transform_7, window_bounds = array<i64: 1, 32>}, {pipeline_mode = #tpu.pipeline_mode<synchronous>, transform_indices = @transform_8, window_bounds = array<i64: 32, 32>}, {pipeline_mode = #tpu.pipeline_mode<synchronous>, transform_indices = @transform_9, window_bounds = array<i64: 1, 32>}, {pipeline_mode = #tpu.pipeline_mode<synchronous>, transform_indices = @transform_10, window_bounds = array<i64: 32, 32>}, {pipeline_mode = #tpu.pipeline_mode<synchronous>, transform_indices = @transform_11, window_bounds = array<i64: 1, 32>}, {pipeline_mode = #tpu.pipeline_mode<synchronous>, transform_indices = @transform_12, window_bounds = array<i64: 1, 32>}, {pipeline_mode = #tpu.pipeline_mode<synchronous>, transform_indices = @transform_13, window_bounds = array<i64: 1, 32>}, {pipeline_mode = #tpu.pipeline_mode<synchronous>, transform_indices = @transform_14, window_bounds = array<i64: 32, 64>}, {pipeline_mode = #tpu.pipeline_mode<synchronous>, transform_indices = @transform_15, window_bounds = array<i64: 1, 64>}, {pipeline_mode = #tpu.pipeline_mode<synchronous>, transform_indices = @transform_16, window_bounds = array<i64: 64, 32>}, {pipeline_mode = #tpu.pipeline_mode<synchronous>, transform_indices = @transform_17, window_bounds = array<i64: 1, 32>}, {transform_indices = @transform_18, window_bounds = array<i64: 16, 32>}]} {
    %c0 = arith.constant 0 : index
    %c0_0 = arith.constant 0 : index
    %0 = vector.load %arg1[%c0, %c0_0] : memref<16x32xf32, #tpu.memory_space<vmem>>, vector<16x32xf32>
    %c0_1 = arith.constant 0 : index
    %c0_2 = arith.constant 0 : index
    %c0_3 = arith.constant 0 : index
    %1 = vector.load %arg2[%c0_1, %c0_2, %c0_3] : memref<2x1x8xf32, #tpu.memory_space<vmem>>, vector<2x1x8xf32>
    %cst = arith.constant 0.000000e+00 : f32
    %2 = vector.broadcast %cst : f32 to vector<2x1x8xf32>
    %3 = arith.cmpf oeq, %1, %2 : vector<2x1x8xf32>
    %cst_4 = arith.constant -1.000000e+09 : f32
    %cst_5 = arith.constant 0.000000e+00 : f32
    %4 = vector.broadcast %cst_4 : f32 to vector<2x1x8xf32>
    %5 = vector.broadcast %cst_5 : f32 to vector<2x1x8xf32>
    %6 = arith.select %3, %4, %5 : vector<2x1x8xi1>, vector<2x1x8xf32>
    %c0_6 = arith.constant 0 : index
    %c0_7 = arith.constant 0 : index
    %7 = vector.load %arg3[%c0_6, %c0_7] : memref<1x32xf32, #tpu.memory_space<vmem>>, vector<1x32xf32>
    %c0_8 = arith.constant 0 : index
    %c0_9 = arith.constant 0 : index
    %8 = vector.load %arg4[%c0_8, %c0_9] : memref<1x32xf32, #tpu.memory_space<vmem>>, vector<1x32xf32>
    %cst_10 = arith.constant dense<0.000000e+00> : vector<16xf32>
    %9 = vector.multi_reduction <add>, %0, %cst_10 [1] : vector<16x32xf32> to vector<16xf32>
    %10 = vector.shape_cast %9 : vector<16xf32> to vector<16x1xf32>
    %cst_11 = arith.constant 3.200000e+01 : f32
    %11 = vector.broadcast %cst_11 : f32 to vector<16x1xf32>
    %12 = arith.divf %10, %11 : vector<16x1xf32>
    %13 = vector.broadcast %12 : vector<16x1xf32> to vector<16x32xf32>
    %14 = arith.subf %0, %13 : vector<16x32xf32>
    %15 = arith.mulf %14, %14 : vector<16x32xf32>
    %cst_12 = arith.constant dense<0.000000e+00> : vector<16xf32>
    %16 = vector.multi_reduction <add>, %15, %cst_12 [1] : vector<16x32xf32> to vector<16xf32>
    %17 = vector.shape_cast %16 : vector<16xf32> to vector<16x1xf32>
    %cst_13 = arith.constant 0.0322580636 : f32
    %18 = vector.broadcast %cst_13 : f32 to vector<16x1xf32>
    %19 = arith.mulf %17, %18 : vector<16x1xf32>
    %20 = math.sqrt %19 : vector<16x1xf32>
    %21 = vector.broadcast %7 : vector<1x32xf32> to vector<16x32xf32>
    %22 = arith.mulf %21, %14 : vector<16x32xf32>
    %cst_14 = arith.constant 9.99999997E-7 : f32
    %23 = vector.broadcast %cst_14 : f32 to vector<16x1xf32>
    %24 = arith.addf %20, %23 : vector<16x1xf32>
    %25 = vector.broadcast %24 : vector<16x1xf32> to vector<16x32xf32>
    %26 = arith.divf %22, %25 : vector<16x32xf32>
    %27 = vector.broadcast %8 : vector<1x32xf32> to vector<16x32xf32>
    %28 = arith.addf %26, %27 : vector<16x32xf32>
    %29 = arith.truncf %28 : vector<16x32xf32> to vector<16x32xbf16>
    %c0_15 = arith.constant 0 : index
    %c0_16 = arith.constant 0 : index
    %30 = vector.load %arg5[%c0_15, %c0_16] : memref<32x32xbf16, #tpu.memory_space<vmem>>, vector<32x32xbf16>
    %cst_17 = arith.constant dense<0.000000e+00> : vector<16x32xf32>
    %31 = tpu.matmul %29, %30, %cst_17 {dimension_numbers = #tpu.dot_dimension_numbers<[1], [0], [0], [1], [0, 0, 1, 1], [], []>} : vector<16x32xbf16>, vector<32x32xbf16>, vector<16x32xf32> -> vector<16x32xf32>
    %c0_18 = arith.constant 0 : index
    %c0_19 = arith.constant 0 : index
    %32 = vector.load %arg6[%c0_18, %c0_19] : memref<1x32xf32, #tpu.memory_space<vmem>>, vector<1x32xf32>
    %33 = vector.broadcast %32 : vector<1x32xf32> to vector<16x32xf32>
    %34 = arith.addf %31, %33 : vector<16x32xf32>
    %cst_20 = arith.constant 0.353553385 : f32
    %35 = vector.broadcast %cst_20 : f32 to vector<16x32xf32>
    %36 = arith.mulf %34, %35 : vector<16x32xf32>
    %37 = arith.truncf %36 : vector<16x32xf32> to vector<16x32xbf16>
    %c0_21 = arith.constant 0 : index
    %c0_22 = arith.constant 0 : index
    %38 = vector.load %arg7[%c0_21, %c0_22] : memref<32x32xbf16, #tpu.memory_space<vmem>>, vector<32x32xbf16>
    %cst_23 = arith.constant dense<0.000000e+00> : vector<16x32xf32>
    %39 = tpu.matmul %29, %38, %cst_23 {dimension_numbers = #tpu.dot_dimension_numbers<[1], [0], [0], [1], [0, 0, 1, 1], [], []>} : vector<16x32xbf16>, vector<32x32xbf16>, vector<16x32xf32> -> vector<16x32xf32>
    %c0_24 = arith.constant 0 : index
    %c0_25 = arith.constant 0 : index
    %40 = vector.load %arg8[%c0_24, %c0_25] : memref<1x32xf32, #tpu.memory_space<vmem>>, vector<1x32xf32>
    %41 = vector.broadcast %40 : vector<1x32xf32> to vector<16x32xf32>
    %42 = arith.addf %39, %41 : vector<16x32xf32>
    %43 = arith.truncf %42 : vector<16x32xf32> to vector<16x32xbf16>
    %c0_26 = arith.constant 0 : index
    %c0_27 = arith.constant 0 : index
    %44 = vector.load %arg9[%c0_26, %c0_27] : memref<32x32xbf16, #tpu.memory_space<vmem>>, vector<32x32xbf16>
    %cst_28 = arith.constant dense<0.000000e+00> : vector<16x32xf32>
    %45 = tpu.matmul %29, %44, %cst_28 {dimension_numbers = #tpu.dot_dimension_numbers<[1], [0], [0], [1], [0, 0, 1, 1], [], []>} : vector<16x32xbf16>, vector<32x32xbf16>, vector<16x32xf32> -> vector<16x32xf32>
    %c0_29 = arith.constant 0 : index
    %c0_30 = arith.constant 0 : index
    %46 = vector.load %arg10[%c0_29, %c0_30] : memref<1x32xf32, #tpu.memory_space<vmem>>, vector<1x32xf32>
    %47 = vector.broadcast %46 : vector<1x32xf32> to vector<16x32xf32>
    %48 = arith.addf %45, %47 : vector<16x32xf32>
    %49 = arith.truncf %48 : vector<16x32xf32> to vector<16x32xbf16>
    %50 = vector.extract_strided_slice %37 {offsets = [0, 0], sizes = [16, 8], strides = [1, 1]} : vector<16x32xbf16> to vector<16x8xbf16>
    %51 = vector.shape_cast %50 : vector<16x8xbf16> to vector<2x8x8xbf16>
    %52 = vector.extract_strided_slice %43 {offsets = [0, 0], sizes = [16, 8], strides = [1, 1]} : vector<16x32xbf16> to vector<16x8xbf16>
    %53 = vector.shape_cast %52 : vector<16x8xbf16> to vector<2x8x8xbf16>
    %54 = vector.extract_strided_slice %49 {offsets = [0, 0], sizes = [16, 8], strides = [1, 1]} : vector<16x32xbf16> to vector<16x8xbf16>
    %55 = vector.shape_cast %54 : vector<16x8xbf16> to vector<2x8x8xbf16>
    "tpu.trace_start"() <{level = 10 : i32, message = "bqd,bkd->bqk"}> : () -> ()
    %cst_31 = arith.constant dense<0.000000e+00> : vector<2x8x8xf32>
    %56 = tpu.matmul %51, %53, %cst_31 {dimension_numbers = #tpu.dot_dimension_numbers<[2], [2], [1], [1], [0, 0, 0, 1, 1, 1], [0], [0]>} : vector<2x8x8xbf16>, vector<2x8x8xbf16>, vector<2x8x8xf32> -> vector<2x8x8xf32>
    "tpu.trace_stop"() : () -> ()
    %57 = vector.broadcast %6 : vector<2x1x8xf32> to vector<2x8x8xf32>
    %58 = arith.addf %56, %57 : vector<2x8x8xf32>
    %cst_32 = arith.constant dense<0xFF800000> : vector<2x8xf32>
    %59 = vector.multi_reduction <maximumf>, %58, %cst_32 [2] : vector<2x8x8xf32> to vector<2x8xf32>
    %60 = vector.shape_cast %59 : vector<2x8xf32> to vector<2x8x1xf32>
    %61 = vector.broadcast %60 : vector<2x8x1xf32> to vector<2x8x8xf32>
    %62 = arith.subf %58, %61 : vector<2x8x8xf32>
    %63 = math.exp %62 : vector<2x8x8xf32>
    %cst_33 = arith.constant dense<0.000000e+00> : vector<2x8xf32>
    %64 = vector.multi_reduction <add>, %63, %cst_33 [2] : vector<2x8x8xf32> to vector<2x8xf32>
    %65 = vector.shape_cast %64 : vector<2x8xf32> to vector<2x8x1xf32>
    %66 = tpu.reciprocal %65 {approx = true} : vector<2x8x1xf32> -> vector<2x8x1xf32>
    %67 = vector.broadcast %66 : vector<2x8x1xf32> to vector<2x8x8xf32>
    %68 = arith.mulf %63, %67 : vector<2x8x8xf32>
    %69 = arith.truncf %68 : vector<2x8x8xf32> to vector<2x8x8xbf16>
    "tpu.trace_start"() <{level = 10 : i32, message = "bqk,bkd->bqd"}> : () -> ()
    %cst_34 = arith.constant dense<0.000000e+00> : vector<2x8x8xf32>
    %70 = tpu.matmul %69, %55, %cst_34 {dimension_numbers = #tpu.dot_dimension_numbers<[2], [1], [1], [2], [0, 0, 0, 1, 1, 2], [0], [0]>} : vector<2x8x8xbf16>, vector<2x8x8xbf16>, vector<2x8x8xf32> -> vector<2x8x8xf32>
    "tpu.trace_stop"() : () -> ()
    %71 = vector.shape_cast %70 : vector<2x8x8xf32> to vector<16x8xf32>
    %72 = arith.truncf %71 : vector<16x8xf32> to vector<16x8xbf16>
    %73 = vector.extract_strided_slice %37 {offsets = [0, 8], sizes = [16, 8], strides = [1, 1]} : vector<16x32xbf16> to vector<16x8xbf16>
    %74 = vector.shape_cast %73 : vector<16x8xbf16> to vector<2x8x8xbf16>
    %75 = vector.extract_strided_slice %43 {offsets = [0, 8], sizes = [16, 8], strides = [1, 1]} : vector<16x32xbf16> to vector<16x8xbf16>
    %76 = vector.shape_cast %75 : vector<16x8xbf16> to vector<2x8x8xbf16>
    %77 = vector.extract_strided_slice %49 {offsets = [0, 8], sizes = [16, 8], strides = [1, 1]} : vector<16x32xbf16> to vector<16x8xbf16>
    %78 = vector.shape_cast %77 : vector<16x8xbf16> to vector<2x8x8xbf16>
    "tpu.trace_start"() <{level = 10 : i32, message = "bqd,bkd->bqk"}> : () -> ()
    %cst_35 = arith.constant dense<0.000000e+00> : vector<2x8x8xf32>
    %79 = tpu.matmul %74, %76, %cst_35 {dimension_numbers = #tpu.dot_dimension_numbers<[2], [2], [1], [1], [0, 0, 0, 1, 1, 1], [0], [0]>} : vector<2x8x8xbf16>, vector<2x8x8xbf16>, vector<2x8x8xf32> -> vector<2x8x8xf32>
    "tpu.trace_stop"() : () -> ()
    %80 = vector.broadcast %6 : vector<2x1x8xf32> to vector<2x8x8xf32>
    %81 = arith.addf %79, %80 : vector<2x8x8xf32>
    %cst_36 = arith.constant dense<0xFF800000> : vector<2x8xf32>
    %82 = vector.multi_reduction <maximumf>, %81, %cst_36 [2] : vector<2x8x8xf32> to vector<2x8xf32>
    %83 = vector.shape_cast %82 : vector<2x8xf32> to vector<2x8x1xf32>
    %84 = vector.broadcast %83 : vector<2x8x1xf32> to vector<2x8x8xf32>
    %85 = arith.subf %81, %84 : vector<2x8x8xf32>
    %86 = math.exp %85 : vector<2x8x8xf32>
    %cst_37 = arith.constant dense<0.000000e+00> : vector<2x8xf32>
    %87 = vector.multi_reduction <add>, %86, %cst_37 [2] : vector<2x8x8xf32> to vector<2x8xf32>
    %88 = vector.shape_cast %87 : vector<2x8xf32> to vector<2x8x1xf32>
    %89 = tpu.reciprocal %88 {approx = true} : vector<2x8x1xf32> -> vector<2x8x1xf32>
    %90 = vector.broadcast %89 : vector<2x8x1xf32> to vector<2x8x8xf32>
    %91 = arith.mulf %86, %90 : vector<2x8x8xf32>
    %92 = arith.truncf %91 : vector<2x8x8xf32> to vector<2x8x8xbf16>
    "tpu.trace_start"() <{level = 10 : i32, message = "bqk,bkd->bqd"}> : () -> ()
    %cst_38 = arith.constant dense<0.000000e+00> : vector<2x8x8xf32>
    %93 = tpu.matmul %92, %78, %cst_38 {dimension_numbers = #tpu.dot_dimension_numbers<[2], [1], [1], [2], [0, 0, 0, 1, 1, 2], [0], [0]>} : vector<2x8x8xbf16>, vector<2x8x8xbf16>, vector<2x8x8xf32> -> vector<2x8x8xf32>
    "tpu.trace_stop"() : () -> ()
    %94 = vector.shape_cast %93 : vector<2x8x8xf32> to vector<16x8xf32>
    %95 = arith.truncf %94 : vector<16x8xf32> to vector<16x8xbf16>
    %96 = vector.extract_strided_slice %37 {offsets = [0, 16], sizes = [16, 8], strides = [1, 1]} : vector<16x32xbf16> to vector<16x8xbf16>
    %97 = vector.shape_cast %96 : vector<16x8xbf16> to vector<2x8x8xbf16>
    %98 = vector.extract_strided_slice %43 {offsets = [0, 16], sizes = [16, 8], strides = [1, 1]} : vector<16x32xbf16> to vector<16x8xbf16>
    %99 = vector.shape_cast %98 : vector<16x8xbf16> to vector<2x8x8xbf16>
    %100 = vector.extract_strided_slice %49 {offsets = [0, 16], sizes = [16, 8], strides = [1, 1]} : vector<16x32xbf16> to vector<16x8xbf16>
    %101 = vector.shape_cast %100 : vector<16x8xbf16> to vector<2x8x8xbf16>
    "tpu.trace_start"() <{level = 10 : i32, message = "bqd,bkd->bqk"}> : () -> ()
    %cst_39 = arith.constant dense<0.000000e+00> : vector<2x8x8xf32>
    %102 = tpu.matmul %97, %99, %cst_39 {dimension_numbers = #tpu.dot_dimension_numbers<[2], [2], [1], [1], [0, 0, 0, 1, 1, 1], [0], [0]>} : vector<2x8x8xbf16>, vector<2x8x8xbf16>, vector<2x8x8xf32> -> vector<2x8x8xf32>
    "tpu.trace_stop"() : () -> ()
    %103 = vector.broadcast %6 : vector<2x1x8xf32> to vector<2x8x8xf32>
    %104 = arith.addf %102, %103 : vector<2x8x8xf32>
    %cst_40 = arith.constant dense<0xFF800000> : vector<2x8xf32>
    %105 = vector.multi_reduction <maximumf>, %104, %cst_40 [2] : vector<2x8x8xf32> to vector<2x8xf32>
    %106 = vector.shape_cast %105 : vector<2x8xf32> to vector<2x8x1xf32>
    %107 = vector.broadcast %106 : vector<2x8x1xf32> to vector<2x8x8xf32>
    %108 = arith.subf %104, %107 : vector<2x8x8xf32>
    %109 = math.exp %108 : vector<2x8x8xf32>
    %cst_41 = arith.constant dense<0.000000e+00> : vector<2x8xf32>
    %110 = vector.multi_reduction <add>, %109, %cst_41 [2] : vector<2x8x8xf32> to vector<2x8xf32>
    %111 = vector.shape_cast %110 : vector<2x8xf32> to vector<2x8x1xf32>
    %112 = tpu.reciprocal %111 {approx = true} : vector<2x8x1xf32> -> vector<2x8x1xf32>
    %113 = vector.broadcast %112 : vector<2x8x1xf32> to vector<2x8x8xf32>
    %114 = arith.mulf %109, %113 : vector<2x8x8xf32>
    %115 = arith.truncf %114 : vector<2x8x8xf32> to vector<2x8x8xbf16>
    "tpu.trace_start"() <{level = 10 : i32, message = "bqk,bkd->bqd"}> : () -> ()
    %cst_42 = arith.constant dense<0.000000e+00> : vector<2x8x8xf32>
    %116 = tpu.matmul %115, %101, %cst_42 {dimension_numbers = #tpu.dot_dimension_numbers<[2], [1], [1], [2], [0, 0, 0, 1, 1, 2], [0], [0]>} : vector<2x8x8xbf16>, vector<2x8x8xbf16>, vector<2x8x8xf32> -> vector<2x8x8xf32>
    "tpu.trace_stop"() : () -> ()
    %117 = vector.shape_cast %116 : vector<2x8x8xf32> to vector<16x8xf32>
    %118 = arith.truncf %117 : vector<16x8xf32> to vector<16x8xbf16>
    %119 = vector.extract_strided_slice %37 {offsets = [0, 24], sizes = [16, 8], strides = [1, 1]} : vector<16x32xbf16> to vector<16x8xbf16>
    %120 = vector.shape_cast %119 : vector<16x8xbf16> to vector<2x8x8xbf16>
    %121 = vector.extract_strided_slice %43 {offsets = [0, 24], sizes = [16, 8], strides = [1, 1]} : vector<16x32xbf16> to vector<16x8xbf16>
    %122 = vector.shape_cast %121 : vector<16x8xbf16> to vector<2x8x8xbf16>
    %123 = vector.extract_strided_slice %49 {offsets = [0, 24], sizes = [16, 8], strides = [1, 1]} : vector<16x32xbf16> to vector<16x8xbf16>
    %124 = vector.shape_cast %123 : vector<16x8xbf16> to vector<2x8x8xbf16>
    "tpu.trace_start"() <{level = 10 : i32, message = "bqd,bkd->bqk"}> : () -> ()
    %cst_43 = arith.constant dense<0.000000e+00> : vector<2x8x8xf32>
    %125 = tpu.matmul %120, %122, %cst_43 {dimension_numbers = #tpu.dot_dimension_numbers<[2], [2], [1], [1], [0, 0, 0, 1, 1, 1], [0], [0]>} : vector<2x8x8xbf16>, vector<2x8x8xbf16>, vector<2x8x8xf32> -> vector<2x8x8xf32>
    "tpu.trace_stop"() : () -> ()
    %126 = vector.broadcast %6 : vector<2x1x8xf32> to vector<2x8x8xf32>
    %127 = arith.addf %125, %126 : vector<2x8x8xf32>
    %cst_44 = arith.constant dense<0xFF800000> : vector<2x8xf32>
    %128 = vector.multi_reduction <maximumf>, %127, %cst_44 [2] : vector<2x8x8xf32> to vector<2x8xf32>
    %129 = vector.shape_cast %128 : vector<2x8xf32> to vector<2x8x1xf32>
    %130 = vector.broadcast %129 : vector<2x8x1xf32> to vector<2x8x8xf32>
    %131 = arith.subf %127, %130 : vector<2x8x8xf32>
    %132 = math.exp %131 : vector<2x8x8xf32>
    %cst_45 = arith.constant dense<0.000000e+00> : vector<2x8xf32>
    %133 = vector.multi_reduction <add>, %132, %cst_45 [2] : vector<2x8x8xf32> to vector<2x8xf32>
    %134 = vector.shape_cast %133 : vector<2x8xf32> to vector<2x8x1xf32>
    %135 = tpu.reciprocal %134 {approx = true} : vector<2x8x1xf32> -> vector<2x8x1xf32>
    %136 = vector.broadcast %135 : vector<2x8x1xf32> to vector<2x8x8xf32>
    %137 = arith.mulf %132, %136 : vector<2x8x8xf32>
    %138 = arith.truncf %137 : vector<2x8x8xf32> to vector<2x8x8xbf16>
    "tpu.trace_start"() <{level = 10 : i32, message = "bqk,bkd->bqd"}> : () -> ()
    %cst_46 = arith.constant dense<0.000000e+00> : vector<2x8x8xf32>
    %139 = tpu.matmul %138, %124, %cst_46 {dimension_numbers = #tpu.dot_dimension_numbers<[2], [1], [1], [2], [0, 0, 0, 1, 1, 2], [0], [0]>} : vector<2x8x8xbf16>, vector<2x8x8xbf16>, vector<2x8x8xf32> -> vector<2x8x8xf32>
    "tpu.trace_stop"() : () -> ()
    %140 = vector.shape_cast %139 : vector<2x8x8xf32> to vector<16x8xf32>
    %141 = arith.truncf %140 : vector<16x8xf32> to vector<16x8xbf16>
    %142 = tpu.concatenate %72, %95, %118, %141 in 1 : vector<16x8xbf16>, vector<16x8xbf16>, vector<16x8xbf16>, vector<16x8xbf16> -> vector<16x32xbf16>
    %c0_47 = arith.constant 0 : index
    %c0_48 = arith.constant 0 : index
    %143 = vector.load %arg11[%c0_47, %c0_48] : memref<32x32xbf16, #tpu.memory_space<vmem>>, vector<32x32xbf16>
    %cst_49 = arith.constant dense<0.000000e+00> : vector<16x32xf32>
    %144 = tpu.matmul %142, %143, %cst_49 {dimension_numbers = #tpu.dot_dimension_numbers<[1], [0], [0], [1], [0, 0, 1, 1], [], []>} : vector<16x32xbf16>, vector<32x32xbf16>, vector<16x32xf32> -> vector<16x32xf32>
    %c0_50 = arith.constant 0 : index
    %c0_51 = arith.constant 0 : index
    %145 = vector.load %arg12[%c0_50, %c0_51] : memref<1x32xf32, #tpu.memory_space<vmem>>, vector<1x32xf32>
    %146 = vector.broadcast %145 : vector<1x32xf32> to vector<16x32xf32>
    %147 = arith.addf %144, %146 : vector<16x32xf32>
    %148 = arith.addf %0, %147 : vector<16x32xf32>
    %c0_52 = arith.constant 0 : index
    %c0_53 = arith.constant 0 : index
    %149 = vector.load %arg13[%c0_52, %c0_53] : memref<1x32xf32, #tpu.memory_space<vmem>>, vector<1x32xf32>
    %c0_54 = arith.constant 0 : index
    %c0_55 = arith.constant 0 : index
    %150 = vector.load %arg14[%c0_54, %c0_55] : memref<1x32xf32, #tpu.memory_space<vmem>>, vector<1x32xf32>
    %cst_56 = arith.constant dense<0.000000e+00> : vector<16xf32>
    %151 = vector.multi_reduction <add>, %148, %cst_56 [1] : vector<16x32xf32> to vector<16xf32>
    %152 = vector.shape_cast %151 : vector<16xf32> to vector<16x1xf32>
    %cst_57 = arith.constant 3.200000e+01 : f32
    %153 = vector.broadcast %cst_57 : f32 to vector<16x1xf32>
    %154 = arith.divf %152, %153 : vector<16x1xf32>
    %155 = vector.broadcast %154 : vector<16x1xf32> to vector<16x32xf32>
    %156 = arith.subf %148, %155 : vector<16x32xf32>
    %157 = arith.mulf %156, %156 : vector<16x32xf32>
    %cst_58 = arith.constant dense<0.000000e+00> : vector<16xf32>
    %158 = vector.multi_reduction <add>, %157, %cst_58 [1] : vector<16x32xf32> to vector<16xf32>
    %159 = vector.shape_cast %158 : vector<16xf32> to vector<16x1xf32>
    %cst_59 = arith.constant 0.0322580636 : f32
    %160 = vector.broadcast %cst_59 : f32 to vector<16x1xf32>
    %161 = arith.mulf %159, %160 : vector<16x1xf32>
    %162 = math.sqrt %161 : vector<16x1xf32>
    %163 = vector.broadcast %149 : vector<1x32xf32> to vector<16x32xf32>
    %164 = arith.mulf %163, %156 : vector<16x32xf32>
    %cst_60 = arith.constant 9.99999997E-7 : f32
    %165 = vector.broadcast %cst_60 : f32 to vector<16x1xf32>
    %166 = arith.addf %162, %165 : vector<16x1xf32>
    %167 = vector.broadcast %166 : vector<16x1xf32> to vector<16x32xf32>
    %168 = arith.divf %164, %167 : vector<16x32xf32>
    %169 = vector.broadcast %150 : vector<1x32xf32> to vector<16x32xf32>
    %170 = arith.addf %168, %169 : vector<16x32xf32>
    %171 = arith.truncf %170 : vector<16x32xf32> to vector<16x32xbf16>
    %c0_61 = arith.constant 0 : index
    %c0_62 = arith.constant 0 : index
    %172 = vector.load %arg15[%c0_61, %c0_62] : memref<32x64xbf16, #tpu.memory_space<vmem>>, vector<32x64xbf16>
    %cst_63 = arith.constant dense<0.000000e+00> : vector<16x64xf32>
    %173 = tpu.matmul %171, %172, %cst_63 {dimension_numbers = #tpu.dot_dimension_numbers<[1], [0], [0], [1], [0, 0, 1, 1], [], []>} : vector<16x32xbf16>, vector<32x64xbf16>, vector<16x64xf32> -> vector<16x64xf32>
    %c0_64 = arith.constant 0 : index
    %c0_65 = arith.constant 0 : index
    %174 = vector.load %arg16[%c0_64, %c0_65] : memref<1x64xf32, #tpu.memory_space<vmem>>, vector<1x64xf32>
    %175 = vector.broadcast %174 : vector<1x64xf32> to vector<16x64xf32>
    %176 = arith.addf %173, %175 : vector<16x64xf32>
    %cst_66 = arith.constant 0.000000e+00 : f32
    %177 = vector.broadcast %cst_66 : f32 to vector<16x64xf32>
    %178 = arith.maximumf %176, %177 : vector<16x64xf32>
    %179 = arith.truncf %178 : vector<16x64xf32> to vector<16x64xbf16>
    %c0_67 = arith.constant 0 : index
    %c0_68 = arith.constant 0 : index
    %180 = vector.load %arg17[%c0_67, %c0_68] : memref<64x32xbf16, #tpu.memory_space<vmem>>, vector<64x32xbf16>
    %cst_69 = arith.constant dense<0.000000e+00> : vector<16x32xf32>
    %181 = tpu.matmul %179, %180, %cst_69 {dimension_numbers = #tpu.dot_dimension_numbers<[1], [0], [0], [1], [0, 0, 1, 1], [], []>} : vector<16x64xbf16>, vector<64x32xbf16>, vector<16x32xf32> -> vector<16x32xf32>
    %c0_70 = arith.constant 0 : index
    %c0_71 = arith.constant 0 : index
    %182 = vector.load %arg18[%c0_70, %c0_71] : memref<1x32xf32, #tpu.memory_space<vmem>>, vector<1x32xf32>
    %183 = vector.broadcast %182 : vector<1x32xf32> to vector<16x32xf32>
    %184 = arith.addf %181, %183 : vector<16x32xf32>
    %185 = arith.addf %148, %184 : vector<16x32xf32>
    %c0_72 = arith.constant 0 : index
    %c0_73 = arith.constant 0 : index
    %186 = vector.load %arg19[%c0_72, %c0_73] : memref<16x32xf32, #tpu.memory_space<vmem>>, vector<16x32xf32>
    tpu.vector_store %arg19[%c0_72, %c0_73], %185 {strides = array<i32>} : memref<16x32xf32, #tpu.memory_space<vmem>>, vector<16x32xf32>,
    return
  }
  func.func @transform_0(%arg0: i32) -> (i32, i32) {
    %c0_i32 = arith.constant 0 : i32
    %c0_i32_0 = arith.constant 0 : i32
    return %arg0, %c0_i32 : i32, i32
  }
  func.func @transform_1(%arg0: i32) -> (i32, i32, i32) {
    %c0_i32 = arith.constant 0 : i32
    %c0_i32_0 = arith.constant 0 : i32
    %c0_i32_1 = arith.constant 0 : i32
    return %arg0, %c0_i32, %c0_i32_0 : i32, i32, i32
  }
  func.func @transform_2(%arg0: i32) -> (i32, i32) {
    %c0_i32 = arith.constant 0 : i32
    %c0_i32_0 = arith.constant 0 : i32
    %c0_i32_1 = arith.constant 0 : i32
    return %c0_i32, %c0_i32_0 : i32, i32
  }
  func.func @transform_3(%arg0: i32) -> (i32, i32) {
    %c0_i32 = arith.constant 0 : i32
    %c0_i32_0 = arith.constant 0 : i32
    %c0_i32_1 = arith.constant 0 : i32
    return %c0_i32, %c0_i32_0 : i32, i32
  }
  func.func @transform_4(%arg0: i32) -> (i32, i32) {
    %c0_i32 = arith.constant 0 : i32
    %c0_i32_0 = arith.constant 0 : i32
    %c0_i32_1 = arith.constant 0 : i32
    return %c0_i32, %c0_i32_0 : i32, i32
  }
  func.func @transform_5(%arg0: i32) -> (i32, i32) {
    %c0_i32 = arith.constant 0 : i32
    %c0_i32_0 = arith.constant 0 : i32
    %c0_i32_1 = arith.constant 0 : i32
    return %c0_i32, %c0_i32_0 : i32, i32
  }
  func.func @transform_6(%arg0: i32) -> (i32, i32) {
    %c0_i32 = arith.constant 0 : i32
    %c0_i32_0 = arith.constant 0 : i32
    %c0_i32_1 = arith.constant 0 : i32
    return %c0_i32, %c0_i32_0 : i32, i32
  }
  func.func @transform_7(%arg0: i32) -> (i32, i32) {
    %c0_i32 = arith.constant 0 : i32
    %c0_i32_0 = arith.constant 0 : i32
    %c0_i32_1 = arith.constant 0 : i32
    return %c0_i32, %c0_i32_0 : i32, i32
  }
  func.func @transform_8(%arg0: i32) -> (i32, i32) {
    %c0_i32 = arith.constant 0 : i32
    %c0_i32_0 = arith.constant 0 : i32
    %c0_i32_1 = arith.constant 0 : i32
    return %c0_i32, %c0_i32_0 : i32, i32
  }
  func.func @transform_9(%arg0: i32) -> (i32, i32) {
    %c0_i32 = arith.constant 0 : i32
    %c0_i32_0 = arith.constant 0 : i32
    %c0_i32_1 = arith.constant 0 : i32
    return %c0_i32, %c0_i32_0 : i32, i32
  }
  func.func @transform_10(%arg0: i32) -> (i32, i32) {
    %c0_i32 = arith.constant 0 : i32
    %c0_i32_0 = arith.constant 0 : i32
    %c0_i32_1 = arith.constant 0 : i32
    return %c0_i32, %c0_i32_0 : i32, i32
  }
  func.func @transform_11(%arg0: i32) -> (i32, i32) {
    %c0_i32 = arith.constant 0 : i32
    %c0_i32_0 = arith.constant 0 : i32
    %c0_i32_1 = arith.constant 0 : i32
    return %c0_i32, %c0_i32_0 : i32, i32
  }
  func.func @transform_12(%arg0: i32) -> (i32, i32) {
    %c0_i32 = arith.constant 0 : i32
    %c0_i32_0 = arith.constant 0 : i32
    %c0_i32_1 = arith.constant 0 : i32
    return %c0_i32, %c0_i32_0 : i32, i32
  }
  func.func @transform_13(%arg0: i32) -> (i32, i32) {
    %c0_i32 = arith.constant 0 : i32
    %c0_i32_0 = arith.constant 0 : i32
    %c0_i32_1 = arith.constant 0 : i32
    return %c0_i32, %c0_i32_0 : i32, i32
  }
  func.func @transform_14(%arg0: i32) -> (i32, i32) {
    %c0_i32 = arith.constant 0 : i32
    %c0_i32_0 = arith.constant 0 : i32
    %c0_i32_1 = arith.constant 0 : i32
    return %c0_i32, %c0_i32_0 : i32, i32
  }
  func.func @transform_15(%arg0: i32) -> (i32, i32) {
    %c0_i32 = arith.constant 0 : i32
    %c0_i32_0 = arith.constant 0 : i32
    %c0_i32_1 = arith.constant 0 : i32
    return %c0_i32, %c0_i32_0 : i32, i32
  }
  func.func @transform_16(%arg0: i32) -> (i32, i32) {
    %c0_i32 = arith.constant 0 : i32
    %c0_i32_0 = arith.constant 0 : i32
    %c0_i32_1 = arith.constant 0 : i32
    return %c0_i32, %c0_i32_0 : i32, i32
  }
  func.func @transform_17(%arg0: i32) -> (i32, i32) {
    %c0_i32 = arith.constant 0 : i32
    %c0_i32_0 = arith.constant 0 : i32
    %c0_i32_1 = arith.constant 0 : i32
    return %c0_i32, %c0_i32_0 : i32, i32
  }
  func.func @transform_18(%arg0: i32) -> (i32, i32) {
    %c0_i32 = arith.constant 0 : i32
    %c0_i32_0 = arith.constant 0 : i32
    return %arg0, %c0_i32 : i32, i32
  }
}

</mosaic_0001>

<llo_original>
// kernel: tpu_custom_call.1
$region0: #{tpu_custom_call.1}
  #allocation0 [shape = 'u32[]', space=smem, size = 0x4, offset = 0x4, fixed_abs, tag = 'smem constant byte address 0x4 - core index']
  #allocation1 [shape = 'u32[144,128]{1,0:T(1,128)}', space=vmem, size = 0x12000, scoped, tag = 'internal scratch']
  %s0 = inlined_call_operand.vmem [shape: f32[32,32], index: 0, kind: input, shape index: {}]
  %s1 = inlined_call_operand.hbm [shape: f32[4,1,8], index: 1, kind: input, shape index: {}]
  %s2 = inlined_call_operand.vmem [shape: f32[1,32], index: 2, kind: input, shape index: {}]
  %s3 = inlined_call_operand.hbm [shape: f32[1,32], index: 3, kind: input, shape index: {}]
  %s4 = inlined_call_operand.vmem [shape: bf16[32,32], index: 4, kind: input, shape index: {}]
  %s5 = inlined_call_operand.hbm [shape: f32[1,32], index: 5, kind: input, shape index: {}]
  %s6 = inlined_call_operand.hbm [shape: bf16[32,32], index: 6, kind: input, shape index: {}]
  %s7 = inlined_call_operand.hbm [shape: f32[1,32], index: 7, kind: input, shape index: {}]
  %s8 = inlined_call_operand.hbm [shape: bf16[32,32], index: 8, kind: input, shape index: {}]
  %s9 = inlined_call_operand.hbm [shape: f32[1,32], index: 9, kind: input, shape index: {}]
  %s10 = inlined_call_operand.vmem [shape: bf16[32,32], index: 10, kind: input, shape index: {}]
  %s11 = inlined_call_operand.hbm [shape: f32[1,32], index: 11, kind: input, shape index: {}]
  %s12 = inlined_call_operand.hbm [shape: f32[1,32], index: 12, kind: input, shape index: {}]
  %s13 = inlined_call_operand.hbm [shape: f32[1,32], index: 13, kind: input, shape index: {}]
  %s14 = inlined_call_operand.vmem [shape: bf16[32,64], index: 14, kind: input, shape index: {}]
  %s15 = inlined_call_operand.vmem [shape: f32[1,64], index: 15, kind: input, shape index: {}]
  %s16 = inlined_call_operand.vmem [shape: bf16[64,32], index: 16, kind: input, shape index: {}]
  %s17 = inlined_call_operand.vmem [shape: f32[1,32], index: 17, kind: input, shape index: {}]
  %s18 = inlined_call_operand.hbm [shape: f32[32,32], index: 18, kind: output, shape index: {}]
  %s19 = sld [smem:[#allocation0]]
  $region145: #{tpu_custom_call.1} parent=0
    _
  %s21 = ssub.s32 1, %s19
  %s22 = scalar_select 0, %s21, %s19
  $region1: #{tpu_custom_call.1} parent=0
    #allocation2 [shape = 'u8[2048]{0}', space=vmem, size = 0x800, scoped, tag = 'input window, operand 1']
    #allocation3 [shape = 's32[2]{0}', space=sflag, size = 0x8, scoped, tag = 'scoped memory for tpu_custom_call.1']
    #allocation4 [shape = 's32[2]{0}', space=sflag, size = 0x8, scoped, tag = 'scoped memory for tpu_custom_call.1']
    #allocation5 [shape = 'u8[512]{0}', space=vmem, size = 0x400, scoped, tag = 'input window, operand 3, single buffered']
    #allocation6 [shape = 's32[1]{0}', space=sflag, size = 0x4, scoped, tag = 'scoped memory for tpu_custom_call.1']
    #allocation7 [shape = 'u8[512]{0}', space=vmem, size = 0x400, scoped, tag = 'input window, operand 5, single buffered']
    #allocation8 [shape = 'u8[8192]{0}', space=vmem, size = 0x2000, scoped, tag = 'input window, operand 6, single buffered']
    #allocation9 [shape = 's32[1]{0}', space=sflag, size = 0x4, scoped, tag = 'scoped memory for tpu_custom_call.1']
    #allocation10 [shape = 'u8[512]{0}', space=vmem, size = 0x400, scoped, tag = 'input window, operand 7, single buffered']
    #allocation11 [shape = 'u8[8192]{0}', space=vmem, size = 0x2000, scoped, tag = 'input window, operand 8, single buffered']
    #allocation12 [shape = 's32[1]{0}', space=sflag, size = 0x4, scoped, tag = 'scoped memory for tpu_custom_call.1']
    #allocation13 [shape = 'u8[512]{0}', space=vmem, size = 0x400, scoped, tag = 'input window, operand 9, single buffered']
    #allocation14 [shape = 'u8[512]{0}', space=vmem, size = 0x400, scoped, tag = 'input window, operand 11, single buffered']
    #allocation15 [shape = 's32[1]{0}', space=sflag, size = 0x4, scoped, tag = 'scoped memory for tpu_custom_call.1']
    #allocation16 [shape = 'u8[512]{0}', space=vmem, size = 0x400, scoped, tag = 'input window, operand 12, single buffered']
    #allocation17 [shape = 'u8[512]{0}', space=vmem, size = 0x400, scoped, tag = 'input window, operand 13, single buffered']
    #allocation18 [shape = 's32[1]{0}', space=sflag, size = 0x4, scoped, tag = 'scoped memory for tpu_custom_call.1']
    #allocation19 [shape = 'u8[16384]{0}', space=vmem, size = 0x4000, scoped, tag = 'output window, operand 0']
    %23 = vsyncpa [#allocation3], 0
    %s24 = scalar_lea.sflag [#allocation3], 1
    %25 = vsyncpa %s24, 0
    %26 = vsyncpa [#allocation6], 0
    %27 = vsyncpa [#allocation9], 0
    %28 = vsyncpa [#allocation12], 0
    %29 = vsyncpa [#allocation15], 0
    %30 = vsyncpa [#allocation18], 0
    %31 = vsyncpa [#allocation4], 0
    %s32 = scalar_lea.sflag [#allocation4], 1
    %33 = vsyncpa %s32, 0
    loop: start=0, step=1, limit=4
    $region2: #{tpu_custom_call.1} parent=1 // loop_pre_header
      _
    $region3: #{tpu_custom_call.1} parent=1 // loop_header
      %s35 = sphi 0, %s39
      %p36 = scmp.ge.s32.totalorder %s35, 4
      %s45 = sphi 0, %s47
      %s48 = sphi 0, %s45
      %s49 = sphi 0, %s48
      %s65 = sphi 0, %s49
      %s71 = sphi 0, %s73
      %s74 = sphi 0, %s71
      %s75 = sphi 0, %s74
      %s91 = sphi 0, %s75
      %s95 = sphi 0, %s95
      %s97 = sphi 0, %s95
      %s98 = sphi 0, %s97
      %s112 = sphi 0, %s98
      %s116 = sphi 0, %s116
      %s118 = sphi 0, %s116
      %s119 = sphi 0, %s118
      %s133 = sphi 0, %s119
      %s137 = sphi 0, %s137
      %s139 = sphi 0, %s137
      %s140 = sphi 0, %s139
      %s154 = sphi 0, %s140
      %s158 = sphi 0, %s158
      %s160 = sphi 0, %s158
      %s161 = sphi 0, %s160
      %s175 = sphi 0, %s161
      %s179 = sphi 0, %s179
      %s181 = sphi 0, %s179
      %s182 = sphi 0, %s181
      %s196 = sphi 0, %s182
      %s200 = sphi 0, %s200
      %s202 = sphi 0, %s200
      %s203 = sphi 0, %s202
      %s217 = sphi 0, %s203
      %s221 = sphi 0, %s221
      %s223 = sphi 0, %s221
      %s224 = sphi 0, %s223
      %s238 = sphi 0, %s224
      %s242 = sphi 0, %s242
      %s244 = sphi 0, %s242
      %s245 = sphi 0, %s244
      %s259 = sphi 0, %s245
      %s263 = sphi 0, %s263
      %s265 = sphi 0, %s263
      %s266 = sphi 0, %s265
      %s280 = sphi 0, %s266
      %s284 = sphi 0, %s284
      %s286 = sphi 0, %s284
      %s287 = sphi 0, %s286
      %s301 = sphi 0, %s287
      %s305 = sphi 0, %s305
      %s307 = sphi 0, %s305
      %s308 = sphi 0, %s307
      %s322 = sphi 0, %s308
      %s326 = sphi 0, %s326
      %s328 = sphi 0, %s326
      %s329 = sphi 0, %s328
      %s343 = sphi 0, %s329
      %s347 = sphi 0, %s347
      %s349 = sphi 0, %s347
      %s350 = sphi 0, %s349
      %s364 = sphi 0, %s350
      %s368 = sphi 0, %s368
      %s370 = sphi 0, %s368
      %s371 = sphi 0, %s370
      %s385 = sphi 0, %s371
      %s389 = sphi 0, %s389
      %s391 = sphi 0, %s389
      %s392 = sphi 0, %s391
      %s406 = sphi 0, %s392
      %s410 = sphi 0, %s410
      %s412 = sphi 0, %s410
      %s413 = sphi 0, %s412
      %s427 = sphi 0, %s413
      %s433 = sphi 0, %s435
      %s436 = sphi 0, %s433
      %s437 = sphi 0, %s436
      %s453 = sphi 0, %s437
    $region4: #{tpu_custom_call.1} parent=1 // loop_header_branch
      %38 = sbr.rel (%p36) target = $region8
    $region5: #{tpu_custom_call.1} parent=1 // loop_body
      %s40 = ssub.s32 %s35, 1
      %s41 = ssub.s32 %s35, 2
      %s42 = sadd.s32 %s35, 1
      %s43 = ssub.s32 %s35, %s42
      %p44 = scmp.eq.s32.totalorder %s43, 0
      %s46 = sadd.s32 %s45, 1
      %s47 = scalar_select %p44, %s45, %s46
      %p50 = pneg %p44
      %p51 = scmp.eq.s32.totalorder %s35, 1
      %p52 = por %p50, %p51
      %p53 = scmp.ne.s32.totalorder %s45, %s48
      %p54 = scmp.eq.s32.totalorder %s35, 0
      %p55 = por %p53, %p54
      %p56 = scmp.ne.s32.totalorder %s45, %s48
      %p57 = scmp.eq.s32.totalorder %s40, 1
      %p58 = por %p56, %p57
      %p59 = scmp.ne.s32.totalorder %s48, %s49
      %p60 = scmp.eq.s32.totalorder %s40, 0
      %p61 = por %p59, %p60
      %p62 = scmp.ne.s32.totalorder %s48, %s49
      %p63 = scmp.eq.s32.totalorder %s41, 1
      %p64 = por %p62, %p63
      %p66 = scmp.ne.s32.totalorder %s49, %s65
      %p67 = scmp.eq.s32.totalorder %s41, 0
      %p68 = por %p66, %p67
      %s69 = ssub.s32 %s35, %s42
      %p70 = scmp.eq.s32.totalorder %s69, 0
      %s72 = sadd.s32 %s71, 1
      %s73 = scalar_select %p70, %s71, %s72
      %p76 = pneg %p70
      %p77 = scmp.eq.s32.totalorder %s35, 1
      %p78 = por %p76, %p77
      %p79 = scmp.ne.s32.totalorder %s71, %s74
      %p80 = scmp.eq.s32.totalorder %s35, 0
      %p81 = por %p79, %p80
      %p82 = scmp.ne.s32.totalorder %s71, %s74
      %p83 = scmp.eq.s32.totalorder %s40, 1
      %p84 = por %p82, %p83
      %p85 = scmp.ne.s32.totalorder %s74, %s75
      %p86 = scmp.eq.s32.totalorder %s40, 0
      %p87 = por %p85, %p86
      %p88 = scmp.ne.s32.totalorder %s74, %s75
      %p89 = scmp.eq.s32.totalorder %s41, 1
      %p90 = por %p88, %p89
      %p92 = scmp.ne.s32.totalorder %s75, %s91
      %p93 = scmp.eq.s32.totalorder %s41, 0
      %p94 = por %p92, %p93
      %s96 = sadd.s32 %s95, 1
      %p99 = scmp.eq.s32.totalorder %s35, 1
      %p100 = scmp.ne.s32.totalorder %s95, %s97
      %p101 = scmp.eq.s32.totalorder %s35, 0
      %p102 = por %p100, %p101
      %p103 = scmp.ne.s32.totalorder %s95, %s97
      %p104 = scmp.eq.s32.totalorder %s40, 1
      %p105 = por %p103, %p104
      %p106 = scmp.ne.s32.totalorder %s97, %s98
      %p107 = scmp.eq.s32.totalorder %s40, 0
      %p108 = por %p106, %p107
      %p109 = scmp.ne.s32.totalorder %s97, %s98
      %p110 = scmp.eq.s32.totalorder %s41, 1
      %p111 = por %p109, %p110
      %p113 = scmp.ne.s32.totalorder %s98, %s112
      %p114 = scmp.eq.s32.totalorder %s41, 0
      %p115 = por %p113, %p114
      %s117 = sadd.s32 %s116, 1
      %p120 = scmp.eq.s32.totalorder %s35, 1
      %p121 = scmp.ne.s32.totalorder %s116, %s118
      %p122 = scmp.eq.s32.totalorder %s35, 0
      %p123 = por %p121, %p122
      %p124 = scmp.ne.s32.totalorder %s116, %s118
      %p125 = scmp.eq.s32.totalorder %s40, 1
      %p126 = por %p124, %p125
      %p127 = scmp.ne.s32.totalorder %s118, %s119
      %p128 = scmp.eq.s32.totalorder %s40, 0
      %p129 = por %p127, %p128
      %p130 = scmp.ne.s32.totalorder %s118, %s119
      %p131 = scmp.eq.s32.totalorder %s41, 1
      %p132 = por %p130, %p131
      %p134 = scmp.ne.s32.totalorder %s119, %s133
      %p135 = scmp.eq.s32.totalorder %s41, 0
      %p136 = por %p134, %p135
      %s138 = sadd.s32 %s137, 1
      %p141 = scmp.eq.s32.totalorder %s35, 1
      %p142 = scmp.ne.s32.totalorder %s137, %s139
      %p143 = scmp.eq.s32.totalorder %s35, 0
      %p144 = por %p142, %p143
      %p145 = scmp.ne.s32.totalorder %s137, %s139
      %p146 = scmp.eq.s32.totalorder %s40, 1
      %p147 = por %p145, %p146
      %p148 = scmp.ne.s32.totalorder %s139, %s140
      %p149 = scmp.eq.s32.totalorder %s40, 0
      %p150 = por %p148, %p149
      %p151 = scmp.ne.s32.totalorder %s139, %s140
      %p152 = scmp.eq.s32.totalorder %s41, 1
      %p153 = por %p151, %p152
      %p155 = scmp.ne.s32.totalorder %s140, %s154
      %p156 = scmp.eq.s32.totalorder %s41, 0
      %p157 = por %p155, %p156
      %s159 = sadd.s32 %s158, 1
      %p162 = scmp.eq.s32.totalorder %s35, 1
      %p163 = scmp.ne.s32.totalorder %s158, %s160
      %p164 = scmp.eq.s32.totalorder %s35, 0
      %p165 = por %p163, %p164
      %p166 = scmp.ne.s32.totalorder %s158, %s160
      %p167 = scmp.eq.s32.totalorder %s40, 1
      %p168 = por %p166, %p167
      %p169 = scmp.ne.s32.totalorder %s160, %s161
      %p170 = scmp.eq.s32.totalorder %s40, 0
      %p171 = por %p169, %p170
      %p172 = scmp.ne.s32.totalorder %s160, %s161
      %p173 = scmp.eq.s32.totalorder %s41, 1
      %p174 = por %p172, %p173
      %p176 = scmp.ne.s32.totalorder %s161, %s175
      %p177 = scmp.eq.s32.totalorder %s41, 0
      %p178 = por %p176, %p177
      %s180 = sadd.s32 %s179, 1
      %p183 = scmp.eq.s32.totalorder %s35, 1
      %p184 = scmp.ne.s32.totalorder %s179, %s181
      %p185 = scmp.eq.s32.totalorder %s35, 0
      %p186 = por %p184, %p185
      %p187 = scmp.ne.s32.totalorder %s179, %s181
      %p188 = scmp.eq.s32.totalorder %s40, 1
      %p189 = por %p187, %p188
      %p190 = scmp.ne.s32.totalorder %s181, %s182
      %p191 = scmp.eq.s32.totalorder %s40, 0
      %p192 = por %p190, %p191
      %p193 = scmp.ne.s32.totalorder %s181, %s182
      %p194 = scmp.eq.s32.totalorder %s41, 1
      %p195 = por %p193, %p194
      %p197 = scmp.ne.s32.totalorder %s182, %s196
      %p198 = scmp.eq.s32.totalorder %s41, 0
      %p199 = por %p197, %p198
      %s201 = sadd.s32 %s200, 1
      %p204 = scmp.eq.s32.totalorder %s35, 1
      %p205 = scmp.ne.s32.totalorder %s200, %s202
      %p206 = scmp.eq.s32.totalorder %s35, 0
      %p207 = por %p205, %p206
      %p208 = scmp.ne.s32.totalorder %s200, %s202
      %p209 = scmp.eq.s32.totalorder %s40, 1
      %p210 = por %p208, %p209
      %p211 = scmp.ne.s32.totalorder %s202, %s203
      %p212 = scmp.eq.s32.totalorder %s40, 0
      %p213 = por %p211, %p212
      %p214 = scmp.ne.s32.totalorder %s202, %s203
      %p215 = scmp.eq.s32.totalorder %s41, 1
      %p216 = por %p214, %p215
      %p218 = scmp.ne.s32.totalorder %s203, %s217
      %p219 = scmp.eq.s32.totalorder %s41, 0
      %p220 = por %p218, %p219
      %s222 = sadd.s32 %s221, 1
      %p225 = scmp.eq.s32.totalorder %s35, 1
      %p226 = scmp.ne.s32.totalorder %s221, %s223
      %p227 = scmp.eq.s32.totalorder %s35, 0
      %p228 = por %p226, %p227
      %p229 = scmp.ne.s32.totalorder %s221, %s223
      %p230 = scmp.eq.s32.totalorder %s40, 1
      %p231 = por %p229, %p230
      %p232 = scmp.ne.s32.totalorder %s223, %s224
      %p233 = scmp.eq.s32.totalorder %s40, 0
      %p234 = por %p232, %p233
      %p235 = scmp.ne.s32.totalorder %s223, %s224
      %p236 = scmp.eq.s32.totalorder %s41, 1
      %p237 = por %p235, %p236
      %p239 = scmp.ne.s32.totalorder %s224, %s238
      %p240 = scmp.eq.s32.totalorder %s41, 0
      %p241 = por %p239, %p240
      %s243 = sadd.s32 %s242, 1
      %p246 = scmp.eq.s32.totalorder %s35, 1
      %p247 = scmp.ne.s32.totalorder %s242, %s244
      %p248 = scmp.eq.s32.totalorder %s35, 0
      %p249 = por %p247, %p248
      %p250 = scmp.ne.s32.totalorder %s242, %s244
      %p251 = scmp.eq.s32.totalorder %s40, 1
      %p252 = por %p250, %p251
      %p253 = scmp.ne.s32.totalorder %s244, %s245
      %p254 = scmp.eq.s32.totalorder %s40, 0
      %p255 = por %p253, %p254
      %p256 = scmp.ne.s32.totalorder %s244, %s245
      %p257 = scmp.eq.s32.totalorder %s41, 1
      %p258 = por %p256, %p257
      %p260 = scmp.ne.s32.totalorder %s245, %s259
      %p261 = scmp.eq.s32.totalorder %s41, 0
      %p262 = por %p260, %p261
      %s264 = sadd.s32 %s263, 1
      %p267 = scmp.eq.s32.totalorder %s35, 1
      %p268 = scmp.ne.s32.totalorder %s263, %s265
      %p269 = scmp.eq.s32.totalorder %s35, 0
      %p270 = por %p268, %p269
      %p271 = scmp.ne.s32.totalorder %s263, %s265
      %p272 = scmp.eq.s32.totalorder %s40, 1
      %p273 = por %p271, %p272
      %p274 = scmp.ne.s32.totalorder %s265, %s266
      %p275 = scmp.eq.s32.totalorder %s40, 0
      %p276 = por %p274, %p275
      %p277 = scmp.ne.s32.totalorder %s265, %s266
      %p278 = scmp.eq.s32.totalorder %s41, 1
      %p279 = por %p277, %p278
      %p281 = scmp.ne.s32.totalorder %s266, %s280
      %p282 = scmp.eq.s32.totalorder %s41, 0
      %p283 = por %p281, %p282
      %s285 = sadd.s32 %s284, 1
      %p288 = scmp.eq.s32.totalorder %s35, 1
      %p289 = scmp.ne.s32.totalorder %s284, %s286
      %p290 = scmp.eq.s32.totalorder %s35, 0
      %p291 = por %p289, %p290
      %p292 = scmp.ne.s32.totalorder %s284, %s286
      %p293 = scmp.eq.s32.totalorder %s40, 1
      %p294 = por %p292, %p293
      %p295 = scmp.ne.s32.totalorder %s286, %s287
      %p296 = scmp.eq.s32.totalorder %s40, 0
      %p297 = por %p295, %p296
      %p298 = scmp.ne.s32.totalorder %s286, %s287
      %p299 = scmp.eq.s32.totalorder %s41, 1
      %p300 = por %p298, %p299
      %p302 = scmp.ne.s32.totalorder %s287, %s301
      %p303 = scmp.eq.s32.totalorder %s41, 0
      %p304 = por %p302, %p303
      %s306 = sadd.s32 %s305, 1
      %p309 = scmp.eq.s32.totalorder %s35, 1
      %p310 = scmp.ne.s32.totalorder %s305, %s307
      %p311 = scmp.eq.s32.totalorder %s35, 0
      %p312 = por %p310, %p311
      %p313 = scmp.ne.s32.totalorder %s305, %s307
      %p314 = scmp.eq.s32.totalorder %s40, 1
      %p315 = por %p313, %p314
      %p316 = scmp.ne.s32.totalorder %s307, %s308
      %p317 = scmp.eq.s32.totalorder %s40, 0
      %p318 = por %p316, %p317
      %p319 = scmp.ne.s32.totalorder %s307, %s308
      %p320 = scmp.eq.s32.totalorder %s41, 1
      %p321 = por %p319, %p320
      %p323 = scmp.ne.s32.totalorder %s308, %s322
      %p324 = scmp.eq.s32.totalorder %s41, 0
      %p325 = por %p323, %p324
      %s327 = sadd.s32 %s326, 1
      %p330 = scmp.eq.s32.totalorder %s35, 1
      %p331 = scmp.ne.s32.totalorder %s326, %s328
      %p332 = scmp.eq.s32.totalorder %s35, 0
      %p333 = por %p331, %p332
      %p334 = scmp.ne.s32.totalorder %s326, %s328
      %p335 = scmp.eq.s32.totalorder %s40, 1
      %p336 = por %p334, %p335
      %p337 = scmp.ne.s32.totalorder %s328, %s329
      %p338 = scmp.eq.s32.totalorder %s40, 0
      %p339 = por %p337, %p338
      %p340 = scmp.ne.s32.totalorder %s328, %s329
      %p341 = scmp.eq.s32.totalorder %s41, 1
      %p342 = por %p340, %p341
      %p344 = scmp.ne.s32.totalorder %s329, %s343
      %p345 = scmp.eq.s32.totalorder %s41, 0
      %p346 = por %p344, %p345
      %s348 = sadd.s32 %s347, 1
      %p351 = scmp.eq.s32.totalorder %s35, 1
      %p352 = scmp.ne.s32.totalorder %s347, %s349
      %p353 = scmp.eq.s32.totalorder %s35, 0
      %p354 = por %p352, %p353
      %p355 = scmp.ne.s32.totalorder %s347, %s349
      %p356 = scmp.eq.s32.totalorder %s40, 1
      %p357 = por %p355, %p356
      %p358 = scmp.ne.s32.totalorder %s349, %s350
      %p359 = scmp.eq.s32.totalorder %s40, 0
      %p360 = por %p358, %p359
      %p361 = scmp.ne.s32.totalorder %s349, %s350
      %p362 = scmp.eq.s32.totalorder %s41, 1
      %p363 = por %p361, %p362
      %p365 = scmp.ne.s32.totalorder %s350, %s364
      %p366 = scmp.eq.s32.totalorder %s41, 0
      %p367 = por %p365, %p366
      %s369 = sadd.s32 %s368, 1
      %p372 = scmp.eq.s32.totalorder %s35, 1
      %p373 = scmp.ne.s32.totalorder %s368, %s370
      %p374 = scmp.eq.s32.totalorder %s35, 0
      %p375 = por %p373, %p374
      %p376 = scmp.ne.s32.totalorder %s368, %s370
      %p377 = scmp.eq.s32.totalorder %s40, 1
      %p378 = por %p376, %p377
      %p379 = scmp.ne.s32.totalorder %s370, %s371
      %p380 = scmp.eq.s32.totalorder %s40, 0
      %p381 = por %p379, %p380
      %p382 = scmp.ne.s32.totalorder %s370, %s371
      %p383 = scmp.eq.s32.totalorder %s41, 1
      %p384 = por %p382, %p383
      %p386 = scmp.ne.s32.totalorder %s371, %s385
      %p387 = scmp.eq.s32.totalorder %s41, 0
      %p388 = por %p386, %p387
      %s390 = sadd.s32 %s389, 1
      %p393 = scmp.eq.s32.totalorder %s35, 1
      %p394 = scmp.ne.s32.totalorder %s389, %s391
      %p395 = scmp.eq.s32.totalorder %s35, 0
      %p396 = por %p394, %p395
      %p397 = scmp.ne.s32.totalorder %s389, %s391
      %p398 = scmp.eq.s32.totalorder %s40, 1
      %p399 = por %p397, %p398
      %p400 = scmp.ne.s32.totalorder %s391, %s392
      %p401 = scmp.eq.s32.totalorder %s40, 0
      %p402 = por %p400, %p401
      %p403 = scmp.ne.s32.totalorder %s391, %s392
      %p404 = scmp.eq.s32.totalorder %s41, 1
      %p405 = por %p403, %p404
      %p407 = scmp.ne.s32.totalorder %s392, %s406
      %p408 = scmp.eq.s32.totalorder %s41, 0
      %p409 = por %p407, %p408
      %s411 = sadd.s32 %s410, 1
      %p414 = scmp.eq.s32.totalorder %s35, 1
      %p415 = scmp.ne.s32.totalorder %s410, %s412
      %p416 = scmp.eq.s32.totalorder %s35, 0
      %p417 = por %p415, %p416
      %p418 = scmp.ne.s32.totalorder %s410, %s412
      %p419 = scmp.eq.s32.totalorder %s40, 1
      %p420 = por %p418, %p419
      %p421 = scmp.ne.s32.totalorder %s412, %s413
      %p422 = scmp.eq.s32.totalorder %s40, 0
      %p423 = por %p421, %p422
      %p424 = scmp.ne.s32.totalorder %s412, %s413
      %p425 = scmp.eq.s32.totalorder %s41, 1
      %p426 = por %p424, %p425
      %p428 = scmp.ne.s32.totalorder %s413, %s427
      %p429 = scmp.eq.s32.totalorder %s41, 0
      %p430 = por %p428, %p429
      %s431 = ssub.s32 %s35, %s42
      %p432 = scmp.eq.s32.totalorder %s431, 0
      %s434 = sadd.s32 %s433, 1
      %s435 = scalar_select %p432, %s433, %s434
      %p438 = pneg %p432
      %p439 = scmp.eq.s32.totalorder %s35, 1
      %p440 = por %p438, %p439
      %p441 = scmp.ne.s32.totalorder %s433, %s436
      %p442 = scmp.eq.s32.totalorder %s35, 0
      %p443 = por %p441, %p442
      %p444 = scmp.ne.s32.totalorder %s433, %s436
      %p445 = scmp.eq.s32.totalorder %s40, 1
      %p446 = por %p444, %p445
      %p447 = scmp.ne.s32.totalorder %s436, %s437
      %p448 = scmp.eq.s32.totalorder %s40, 0
      %p449 = por %p447, %p448
      %p450 = scmp.ne.s32.totalorder %s436, %s437
      %p451 = scmp.eq.s32.totalorder %s41, 1
      %p452 = por %p450, %p451
      %p454 = scmp.ne.s32.totalorder %s437, %s453
      %p455 = scmp.eq.s32.totalorder %s41, 0
      %p456 = por %p454, %p455
      %p457 = scmp.le.s32.totalorder 1, %s35
      %p458 = scmp.lt.s32.totalorder %s35, 3
      %p459 = pnand %p457, %p458
      %p460 = pneg %p459
      // Predicated region
      $region9: #{tpu_custom_call.1} parent=5 // pred_check
        _
      $region10: #{tpu_custom_call.1} parent=5 // pred_check_branch
        %462 = sbr.rel (%p459) target = $region12
      $region11: #{tpu_custom_call.1} parent=5 // pred_region
        %s463 = ssub.s32 %s35, 1
        // Predicated region
        $region13: #{tpu_custom_call.1} parent=11 // pred_check
          %p464 = pneg %p108
        $region14: #{tpu_custom_call.1} parent=11 // pred_check_branch
          %466 = sbr.rel (%p464) target = $region16
        $region15: #{tpu_custom_call.1} parent=11 // pred_region
          _
        $region16: #{tpu_custom_call.1} parent=11 // pred_fallthru
          _
        // Predicated region
        $region17: #{tpu_custom_call.1} parent=11 // pred_check
          %p467 = pneg %p129
        $region18: #{tpu_custom_call.1} parent=11 // pred_check_branch
          %469 = sbr.rel (%p467) target = $region20
        $region19: #{tpu_custom_call.1} parent=11 // pred_region
          %s471 = ssub.s32 16, 16
          %472 = vsyncadd [#allocation6], %s471
          %s474 = sshll.u32 [#allocation5], 4
          %s475 = int_to_ptr.vmem [resolvable:$true] %s474
          %477 = dma.hbm_to_vmem [thread:$0]  %s3, 16, %s475, [#allocation6]
        $region20: #{tpu_custom_call.1} parent=11 // pred_fallthru
          _
        // Predicated region
        $region21: #{tpu_custom_call.1} parent=11 // pred_check
          %p478 = pneg %p150
        $region22: #{tpu_custom_call.1} parent=11 // pred_check_branch
          %480 = sbr.rel (%p478) target = $region24
        $region23: #{tpu_custom_call.1} parent=11 // pred_region
          _
        $region24: #{tpu_custom_call.1} parent=11 // pred_fallthru
          _
        // Predicated region
        $region25: #{tpu_custom_call.1} parent=11 // pred_check
          %p481 = pneg %p171
        $region26: #{tpu_custom_call.1} parent=11 // pred_check_branch
          %483 = sbr.rel (%p481) target = $region28
        $region27: #{tpu_custom_call.1} parent=11 // pred_region
          %s485 = ssub.s32 16, 16
          %486 = vsyncadd [#allocation6], %s485
          %s488 = sshll.u32 [#allocation7], 4
          %s489 = int_to_ptr.vmem [resolvable:$true] %s488
          %491 = dma.hbm_to_vmem [thread:$0]  %s5, 16, %s489, [#allocation6]
        $region28: #{tpu_custom_call.1} parent=11 // pred_fallthru
          _
        // Predicated region
        $region29: #{tpu_custom_call.1} parent=11 // pred_check
          %p492 = pneg %p192
        $region30: #{tpu_custom_call.1} parent=11 // pred_check_branch
          %494 = sbr.rel (%p492) target = $region32
        $region31: #{tpu_custom_call.1} parent=11 // pred_region
          %s496 = ssub.s32 256, 256
          %497 = vsyncadd [#allocation9], %s496
          %s498 = sshll.u32 [#allocation8], 4
          %s499 = int_to_ptr.vmem [resolvable:$true] %s498
          %504 = dma.hbm_to_vmem [thread:$0]  %s6, 256, %s499, [#allocation9], 64, 64, 4
        $region32: #{tpu_custom_call.1} parent=11 // pred_fallthru
          _
        // Predicated region
        $region33: #{tpu_custom_call.1} parent=11 // pred_check
          %p505 = pneg %p213
        $region34: #{tpu_custom_call.1} parent=11 // pred_check_branch
          %507 = sbr.rel (%p505) target = $region36
        $region35: #{tpu_custom_call.1} parent=11 // pred_region
          %s509 = ssub.s32 16, 16
          %510 = vsyncadd [#allocation9], %s509
          %s512 = sshll.u32 [#allocation10], 4
          %s513 = int_to_ptr.vmem [resolvable:$true] %s512
          %515 = dma.hbm_to_vmem [thread:$0]  %s7, 16, %s513, [#allocation9]
        $region36: #{tpu_custom_call.1} parent=11 // pred_fallthru
          _
        // Predicated region
        $region37: #{tpu_custom_call.1} parent=11 // pred_check
          %p516 = pneg %p234
        $region38: #{tpu_custom_call.1} parent=11 // pred_check_branch
          %518 = sbr.rel (%p516) target = $region40
        $region39: #{tpu_custom_call.1} parent=11 // pred_region
          %s520 = ssub.s32 256, 256
          %521 = vsyncadd [#allocation12], %s520
          %s522 = sshll.u32 [#allocation11], 4
          %s523 = int_to_ptr.vmem [resolvable:$true] %s522
          %528 = dma.hbm_to_vmem [thread:$0]  %s8, 256, %s523, [#allocation12], 64, 64, 4
        $region40: #{tpu_custom_call.1} parent=11 // pred_fallthru
          _
        // Predicated region
        $region41: #{tpu_custom_call.1} parent=11 // pred_check
          %p529 = pneg %p255
        $region42: #{tpu_custom_call.1} parent=11 // pred_check_branch
          %531 = sbr.rel (%p529) target = $region44
        $region43: #{tpu_custom_call.1} parent=11 // pred_region
          %s533 = ssub.s32 16, 16
          %534 = vsyncadd [#allocation12], %s533
          %s536 = sshll.u32 [#allocation13], 4
          %s537 = int_to_ptr.vmem [resolvable:$true] %s536
          %539 = dma.hbm_to_vmem [thread:$0]  %s9, 16, %s537, [#allocation12]
        $region44: #{tpu_custom_call.1} parent=11 // pred_fallthru
          _
        // Predicated region
        $region45: #{tpu_custom_call.1} parent=11 // pred_check
          %p540 = pneg %p276
        $region46: #{tpu_custom_call.1} parent=11 // pred_check_branch
          %542 = sbr.rel (%p540) target = $region48
        $region47: #{tpu_custom_call.1} parent=11 // pred_region
          _
        $region48: #{tpu_custom_call.1} parent=11 // pred_fallthru
          _
        // Predicated region
        $region49: #{tpu_custom_call.1} parent=11 // pred_check
          %p543 = pneg %p297
        $region50: #{tpu_custom_call.1} parent=11 // pred_check_branch
          %545 = sbr.rel (%p543) target = $region52
        $region51: #{tpu_custom_call.1} parent=11 // pred_region
          %s547 = ssub.s32 16, 16
          %548 = vsyncadd [#allocation15], %s547
          %s550 = sshll.u32 [#allocation14], 4
          %s551 = int_to_ptr.vmem [resolvable:$true] %s550
          %553 = dma.hbm_to_vmem [thread:$0]  %s11, 16, %s551, [#allocation15]
        $region52: #{tpu_custom_call.1} parent=11 // pred_fallthru
          _
        // Predicated region
        $region53: #{tpu_custom_call.1} parent=11 // pred_check
          %p554 = pneg %p318
        $region54: #{tpu_custom_call.1} parent=11 // pred_check_branch
          %556 = sbr.rel (%p554) target = $region56
        $region55: #{tpu_custom_call.1} parent=11 // pred_region
          %s558 = ssub.s32 16, 16
          %559 = vsyncadd [#allocation15], %s558
          %s561 = sshll.u32 [#allocation16], 4
          %s562 = int_to_ptr.vmem [resolvable:$true] %s561
          %564 = dma.hbm_to_vmem [thread:$0]  %s12, 16, %s562, [#allocation15]
        $region56: #{tpu_custom_call.1} parent=11 // pred_fallthru
          _
        // Predicated region
        $region57: #{tpu_custom_call.1} parent=11 // pred_check
          %p565 = pneg %p339
        $region58: #{tpu_custom_call.1} parent=11 // pred_check_branch
          %567 = sbr.rel (%p565) target = $region60
        $region59: #{tpu_custom_call.1} parent=11 // pred_region
          %s569 = ssub.s32 16, 16
          %570 = vsyncadd [#allocation18], %s569
          %s572 = sshll.u32 [#allocation17], 4
          %s573 = int_to_ptr.vmem [resolvable:$true] %s572
          %575 = dma.hbm_to_vmem [thread:$0]  %s13, 16, %s573, [#allocation18]
        $region60: #{tpu_custom_call.1} parent=11 // pred_fallthru
          _
        // Predicated region
        $region61: #{tpu_custom_call.1} parent=11 // pred_check
          %p576 = pneg %p360
        $region62: #{tpu_custom_call.1} parent=11 // pred_check_branch
          %578 = sbr.rel (%p576) target = $region64
        $region63: #{tpu_custom_call.1} parent=11 // pred_region
          _
        $region64: #{tpu_custom_call.1} parent=11 // pred_fallthru
          _
        // Predicated region
        $region65: #{tpu_custom_call.1} parent=11 // pred_check
          %p579 = pneg %p381
        $region66: #{tpu_custom_call.1} parent=11 // pred_check_branch
          %581 = sbr.rel (%p579) target = $region68
        $region67: #{tpu_custom_call.1} parent=11 // pred_region
          _
        $region68: #{tpu_custom_call.1} parent=11 // pred_fallthru
          _
        // Predicated region
        $region69: #{tpu_custom_call.1} parent=11 // pred_check
          %p582 = pneg %p402
        $region70: #{tpu_custom_call.1} parent=11 // pred_check_branch
          %584 = sbr.rel (%p582) target = $region72
        $region71: #{tpu_custom_call.1} parent=11 // pred_region
          _
        $region72: #{tpu_custom_call.1} parent=11 // pred_fallthru
          _
        // Predicated region
        $region73: #{tpu_custom_call.1} parent=11 // pred_check
          %p585 = pneg %p423
        $region74: #{tpu_custom_call.1} parent=11 // pred_check_branch
          %587 = sbr.rel (%p585) target = $region76
        $region75: #{tpu_custom_call.1} parent=11 // pred_region
          _
        $region76: #{tpu_custom_call.1} parent=11 // pred_fallthru
          _
      $region12: #{tpu_custom_call.1} parent=5 // pred_fallthru
        _
      %p588 = scmp.lt.s32.totalorder %s35, 2
      // Predicated region
      $region77: #{tpu_custom_call.1} parent=5 // pred_check
        %p589 = pneg %p588
      $region78: #{tpu_custom_call.1} parent=5 // pred_check_branch
        %591 = sbr.rel (%p589) target = $region80
      $region79: #{tpu_custom_call.1} parent=5 // pred_region
        // Predicated region
        $region81: #{tpu_custom_call.1} parent=79 // pred_check
          %p592 = pneg %p55
        $region82: #{tpu_custom_call.1} parent=79 // pred_check_branch
          %594 = sbr.rel (%p592) target = $region84
        $region83: #{tpu_custom_call.1} parent=79 // pred_region
          %s595 = smul.u32 2, %s35
          %p596 = scmp.lt.s32.totalorder %s595, 3
          %s597 = scalar_select %p596, %s595, 3
          %s598 = smul.addr %s597, 8
          %s599 = scalar_lea.vmem %s0, %s598
          %s600 = smul.u32 2, %s35
        $region84: #{tpu_custom_call.1} parent=79 // pred_fallthru
          _
        // Predicated region
        $region85: #{tpu_custom_call.1} parent=79 // pred_check
          %p601 = pneg %p81
        $region86: #{tpu_custom_call.1} parent=79 // pred_check_branch
          %603 = sbr.rel (%p601) target = $region88
        $region87: #{tpu_custom_call.1} parent=79 // pred_region
          %s604 = sand.u32 %s71, 1
          %s605 = scalar_lea.sflag [#allocation3], %s604
          %s606 = sand.u32 %s71, 1
          %s607 = smul.addr %s606, 2
          %s608 = scalar_lea.vmem [#allocation2], %s607
          %s609 = smul.u32 2, %s35
          %s611 = ssub.s32 32, 32
          %612 = vsyncadd %s605, %s611
          %s613 = smul.addr %s609, 16
          %s614 = scalar_lea.hbm %s1, %s613
          %s615 = sshll.u32 %s608, 4
          %s616 = int_to_ptr.vmem [resolvable:$true] %s615
          %621 = dma.hbm_to_vmem [thread:$0]  %s614, 32, %s616, %s605, 16, 16, 1
        $region88: #{tpu_custom_call.1} parent=79 // pred_fallthru
          _
      $region80: #{tpu_custom_call.1} parent=5 // pred_fallthru
        _
      %p622 = scmp.le.s32.totalorder 1, %s35
      %p623 = scmp.lt.s32.totalorder %s35, 3
      %p624 = pnand %p622, %p623
      %p625 = pneg %p624
      // Predicated region
      $region89: #{tpu_custom_call.1} parent=5 // pred_check
        _
      $region90: #{tpu_custom_call.1} parent=5 // pred_check_branch
        %627 = sbr.rel (%p624) target = $region92
      $region91: #{tpu_custom_call.1} parent=5 // pred_region
        %s628 = ssub.s32 %s35, 1
        %s629 = sand.u32 %s74, 1
        %s630 = scalar_lea.sflag [#allocation3], %s629
        %s631 = sand.u32 %s74, 1
        %s632 = smul.addr %s631, 2
        %s633 = scalar_lea.vmem [#allocation2], %s632
        // Predicated region
        $region93: #{tpu_custom_call.1} parent=91 // pred_check
          %p634 = pneg %p87
        $region94: #{tpu_custom_call.1} parent=91 // pred_check_branch
          %636 = sbr.rel (%p634) target = $region96
        $region95: #{tpu_custom_call.1} parent=91 // pred_region
          %637 = dma.done %s630, 32
        $region96: #{tpu_custom_call.1} parent=91 // pred_fallthru
          _
        // Predicated region
        $region97: #{tpu_custom_call.1} parent=91 // pred_check
          %p638 = pneg %p129
        $region98: #{tpu_custom_call.1} parent=91 // pred_check_branch
          %640 = sbr.rel (%p638) target = $region100
        $region99: #{tpu_custom_call.1} parent=91 // pred_region
          %641 = dma.done [#allocation6], 16
        $region100: #{tpu_custom_call.1} parent=91 // pred_fallthru
          _
        // Predicated region
        $region101: #{tpu_custom_call.1} parent=91 // pred_check
          %p642 = pneg %p171
        $region102: #{tpu_custom_call.1} parent=91 // pred_check_branch
          %644 = sbr.rel (%p642) target = $region104
        $region103: #{tpu_custom_call.1} parent=91 // pred_region
          %645 = dma.done [#allocation6], 16
        $region104: #{tpu_custom_call.1} parent=91 // pred_fallthru
          _
        // Predicated region
        $region105: #{tpu_custom_call.1} parent=91 // pred_check
          %p646 = pneg %p192
        $region106: #{tpu_custom_call.1} parent=91 // pred_check_branch
          %648 = sbr.rel (%p646) target = $region108
        $region107: #{tpu_custom_call.1} parent=91 // pred_region
          %649 = dma.done [#allocation9], 256
        $region108: #{tpu_custom_call.1} parent=91 // pred_fallthru
          _
        // Predicated region
        $region109: #{tpu_custom_call.1} parent=91 // pred_check
          %p650 = pneg %p213
        $region110: #{tpu_custom_call.1} parent=91 // pred_check_branch
          %652 = sbr.rel (%p650) target = $region112
        $region111: #{tpu_custom_call.1} parent=91 // pred_region
          %653 = dma.done [#allocation9], 16
        $region112: #{tpu_custom_call.1} parent=91 // pred_fallthru
          _
        // Predicated region
        $region113: #{tpu_custom_call.1} parent=91 // pred_check
          %p654 = pneg %p234
        $region114: #{tpu_custom_call.1} parent=91 // pred_check_branch
          %656 = sbr.rel (%p654) target = $region116
        $region115: #{tpu_custom_call.1} parent=91 // pred_region
          %657 = dma.done [#allocation12], 256
        $region116: #{tpu_custom_call.1} parent=91 // pred_fallthru
          _
        // Predicated region
        $region117: #{tpu_custom_call.1} parent=91 // pred_check
          %p658 = pneg %p255
        $region118: #{tpu_custom_call.1} parent=91 // pred_check_branch
          %660 = sbr.rel (%p658) target = $region120
        $region119: #{tpu_custom_call.1} parent=91 // pred_region
          %661 = dma.done [#allocation12], 16
        $region120: #{tpu_custom_call.1} parent=91 // pred_fallthru
          _
        // Predicated region
        $region121: #{tpu_custom_call.1} parent=91 // pred_check
          %p662 = pneg %p297
        $region122: #{tpu_custom_call.1} parent=91 // pred_check_branch
          %664 = sbr.rel (%p662) target = $region124
        $region123: #{tpu_custom_call.1} parent=91 // pred_region
          %665 = dma.done [#allocation15], 16
        $region124: #{tpu_custom_call.1} parent=91 // pred_fallthru
          _
        // Predicated region
        $region125: #{tpu_custom_call.1} parent=91 // pred_check
          %p666 = pneg %p318
        $region126: #{tpu_custom_call.1} parent=91 // pred_check_branch
          %668 = sbr.rel (%p666) target = $region128
        $region127: #{tpu_custom_call.1} parent=91 // pred_region
          %669 = dma.done [#allocation15], 16
        $region128: #{tpu_custom_call.1} parent=91 // pred_fallthru
          _
        // Predicated region
        $region129: #{tpu_custom_call.1} parent=91 // pred_check
          %p670 = pneg %p339
        $region130: #{tpu_custom_call.1} parent=91 // pred_check_branch
          %672 = sbr.rel (%p670) target = $region132
        $region131: #{tpu_custom_call.1} parent=91 // pred_region
          %673 = dma.done [#allocation18], 16
        $region132: #{tpu_custom_call.1} parent=91 // pred_fallthru
          _
        %s674 = smul.u32 2, %s40
        %p675 = scmp.lt.s32.totalorder %s674, 3
        %s676 = scalar_select %p675, %s674, 3
        %s677 = smul.addr %s676, 8
        %s678 = scalar_lea.vmem %s0, %s677
        %p679 = pneg %p61
        %p680 = pneg %p58
        %s681 = sand.u32 %s74, 1
        %s682 = scalar_lea.sflag [#allocation3], %s681
        %s683 = sand.u32 %s74, 1
        %s684 = smul.addr %s683, 2
        %s685 = scalar_lea.vmem [#allocation2], %s684
        %p686 = pneg %p87
        %p687 = pneg %p84
        %p688 = pneg %p108
        %p689 = pneg %p105
        %p690 = pneg %p129
        %p691 = pneg %p126
        %p692 = pneg %p150
        %p693 = pneg %p147
        %p694 = pneg %p171
        %p695 = pneg %p168
        %p696 = pneg %p192
        %p697 = pneg %p189
        %p698 = pneg %p213
        %p699 = pneg %p210
        %p700 = pneg %p234
        %p701 = pneg %p231
        %p702 = pneg %p255
        %p703 = pneg %p252
        %p704 = pneg %p276
        %p705 = pneg %p273
        %p706 = pneg %p297
        %p707 = pneg %p294
        %p708 = pneg %p318
        %p709 = pneg %p315
        %p710 = pneg %p339
        %p711 = pneg %p336
        %p712 = pneg %p360
        %p713 = pneg %p357
        %p714 = pneg %p381
        %p715 = pneg %p378
        %p716 = pneg %p402
        %p717 = pneg %p399
        %p718 = pneg %p423
        %p719 = pneg %p420
        %p720 = pneg %p449
        %p721 = pneg %p446
        %s722 = sand.u32 %s436, 1
        %s723 = scalar_lea.sflag [#allocation4], %s722
        %s724 = sand.u32 %s436, 1
        %s725 = smul.addr %s724, 16
        %s726 = scalar_lea.vmem [#allocation19], %s725
        %s727 = smul.u32 2, %s40
        %p728 = scmp.lt.s32.totalorder %s727, 3
        %s729 = scalar_select %p728, %s727, 3
        %s730 = smul.addr %s729, 8
        %s731 = scalar_lea.vmem %s0, %s730
        %s732 = smul.u32 2, %s40
        %s733 = smul.u32 2, %s40
        %s734 = smul.u32 2, %s40
        %v736 = vld [vmem:[%s731] sm:$0xff]
        %v737 = vld [vmem:[%s731 + $0x8] sm:$0xff]
        %v738 = vld [vmem:[%s633] sm:$0x1]
        %v739 = vld [vmem:[%s633 + $0x1] sm:$0x1]
        %vm740 = vcmp.eq.f32.partialorder %v738, 0.0
        %vm741 = vcmp.eq.f32.partialorder %v739, 0.0
        %v742 = vsel %vm740, -1e+09, 0.0
        %v743 = vsel %vm741, -1e+09, 0.0
        %v744 = vld [vmem:[%s2] sm:$0x1]
        %v745 = vld [vmem:[#allocation5] sm:$0x1]
        %vm746 = vcmask 261120
        %v747 = vsel %vm746, %v736, 0.0
        %748 = vadd.xlane.f32.xlu0 %v747
        %v749 = vpop.xlane.xlu0 %748
        %v750 = vsel %vm746, %v737, 0.0
        %751 = vadd.xlane.f32.xlu0 %v750
        %v752 = vpop.xlane.xlu0 %751
        %v753 = vrcp.pop 32.0
        %v754 = vmul.f32 %v749, %v753
        %v755 = vmul.f32 %v752, %v753
        %v756 = vsub.f32 %v736, %v754
        %v757 = vsub.f32 %v737, %v755
        %v758 = vmul.f32 %v756, %v756
        %v759 = vmul.f32 %v757, %v757
        %v760 = vsel %vm746, %v758, 0.0
        %761 = vadd.xlane.f32.xlu0 %v760
        %v762 = vpop.xlane.xlu0 %761
        %v763 = vsel %vm746, %v759, 0.0
        %764 = vadd.xlane.f32.xlu0 %v763
        %v765 = vpop.xlane.xlu0 %764
        %v766 = vmul.f32 %v762, 0.032258064
        %v767 = vmul.f32 %v765, 0.032258064
        %v768 = vrsqrt.pop %v766
        %v769 = vmul.f32 %v766, %v768
        %vm770 = vcmp.eq.f32.partialorder %v766, inf
        %v771 = vsel %vm770, %v766, %v769
        %vm772 = vcmp.eq.f32.partialorder %v766, 0.0
        %v773 = vand.u32 %v766, 2147483648
        %v774 = vsel %vm772, %v773, %v771
        %v775 = vrsqrt.pop %v767
        %v776 = vmul.f32 %v767, %v775
        %vm777 = vcmp.eq.f32.partialorder %v767, inf
        %v778 = vsel %vm777, %v767, %v776
        %vm779 = vcmp.eq.f32.partialorder %v767, 0.0
        %v780 = vand.u32 %v767, 2147483648
        %v781 = vsel %vm779, %v780, %v778
        %v783 = vlaneseq
        %v784 = vshrl.u32 %v783, 7
        %v785 = vsub.s32 0, %v784
        %v786 = vrot.slane %v744, %v785
        %v788 = vmul.f32 %v786, %v756
        %v789 = vmul.f32 %v786, %v757
        %v790 = vadd.f32 %v774, 1e-06
        %v791 = vadd.f32 %v781, 1e-06
        %v792 = vrcp.pop %v790
        %v793 = vmul.f32 %v788, %v792
        %v794 = vrcp.pop %v791
        %v795 = vmul.f32 %v789, %v794
        %v797 = vlaneseq
        %v798 = vshrl.u32 %v797, 7
        %v799 = vsub.s32 0, %v798
        %v800 = vrot.slane %v745, %v799
        %v802 = vadd.f32 %v793, %v800
        %v803 = vadd.f32 %v795, %v800
        %v804 = vpack.c.bf16 %v803, %v802
        %v805 = vld [vmem:[%s4] sm:$0xf]
        %v806 = vld [vmem:[%s4 + $0x4] sm:$0xf]
        %v807 = vld [vmem:[%s4 + $0x8] sm:$0xf]
        %v808 = vld [vmem:[%s4 + $0xc] sm:$0xf]
        %v809 = vld [vmem:[#allocation7] sm:$0x1]
        %v811 = vlaneseq
        %v812 = vshrl.u32 %v811, 7
        %v813 = vsub.s32 0, %v812
        %v814 = vrot.slane %v809, %v813
        %v820 = vunpack.c.l.b16 %v805
        %v821 = vunpack.c.l.b16 %v806
        %v822 = vunpack.c.l.b16 %v807
        %v823 = vunpack.c.l.b16 %v808
        %v824 = vpack.c.b16 %v821, %v820
        %v825 = vpack.c.b16 %v823, %v822
        %v829 = vsel %vm746, %v804, 0
        %831 = vmatprep.subr.bf16.mxu0 0
        %832 = vmatpush1.bf16.msra.mxu0 %v824
        %833 = vmatprep.subr.bf16.mxu0 0
        %834 = vmatpush1.bf16.msra.mxu0 %v825
        %835 = vmatprep.subr.bf16.mxu0 0
        %836 = vmatpush1.bf16.msra.mxu0 0
        %837 = vmatprep.subr.bf16.mxu0 0
        %838 = vmatpush1.bf16.msra.mxu0 0
        %839 = vmatprep.subr.bf16.mxu0 0
        %840 = vmatpush1.bf16.msra.mxu0 0
        %841 = vmatprep.subr.bf16.mxu0 0
        %842 = vmatpush1.bf16.msra.mxu0 0
        %843 = vmatprep.subr.bf16.mxu0 0
        %844 = vmatpush1.bf16.msra.mxu0 0
        %845 = vmatprep.subr.bf16.mxu0 0
        %846 = vmatpush1.bf16.msra.mxu0 0
        %847 = vmatprep.subr.bf16.mxu0 0
        %848 = vmatpush1.bf16.msra.mxu0 0
        %849 = vmatprep.subr.bf16.mxu0 0
        %850 = vmatpush1.bf16.msra.mxu0 0
        %851 = vmatprep.subr.bf16.mxu0 0
        %852 = vmatpush1.bf16.msra.mxu0 0
        %853 = vmatprep.subr.bf16.mxu0 0
        %854 = vmatpush1.bf16.msra.mxu0 0
        %855 = vmatprep.subr.bf16.mxu0 0
        %856 = vmatpush1.bf16.msra.mxu0 0
        %857 = vmatprep.subr.bf16.mxu0 0
        %858 = vmatpush1.bf16.msra.mxu0 0
        %859 = vmatprep.subr.bf16.mxu0 0
        %860 = vmatpush1.bf16.msra.mxu0 0
        %861 = vmatprep.subr.bf16.mxu0 0
        %862 = vmatpush1.bf16.msra.mxu0 0
        %863 = vmatprep.mubr.bf16.mxu0 0
        %864 = vmatmul.mubr.bf16.gmra.mrb[0].mxu0 %v829
        %v865 = vpop.f32.mrb[0].mxu0
        %v866 = vadd.f32 %v814, %v865
        %v867 = vpop.f32.mrb[0].mxu0
        %v868 = vpop.f32.mrb[0].mxu0
        %v869 = vadd.f32 %v814, %v868
        %v870 = vpop.f32.mrb[0].mxu0
        %871 = vdwg.mxu0
        %v872 = vmul.f32 %v866, 0.35355338
        %v873 = vmul.f32 %v869, 0.35355338
        %v874 = vpack.c.bf16 %v873, %v872
        %v875 = vld [vmem:[#allocation8] sm:$0xf]
        %v876 = vld [vmem:[#allocation8 + $0x4] sm:$0xf]
        %v877 = vld [vmem:[#allocation8 + $0x8] sm:$0xf]
        %v878 = vld [vmem:[#allocation8 + $0xc] sm:$0xf]
        %v879 = vld [vmem:[#allocation10] sm:$0x1]
        %v881 = vlaneseq
        %v882 = vshrl.u32 %v881, 7
        %v883 = vsub.s32 0, %v882
        %v884 = vrot.slane %v879, %v883
        %v890 = vunpack.c.l.b16 %v875
        %v891 = vunpack.c.l.b16 %v876
        %v892 = vunpack.c.l.b16 %v877
        %v893 = vunpack.c.l.b16 %v878
        %v894 = vpack.c.b16 %v891, %v890
        %v895 = vpack.c.b16 %v893, %v892
        %898 = vmatprep.subr.bf16.mxu0 0
        %899 = vmatpush1.bf16.msra.mxu0 %v894
        %900 = vmatprep.subr.bf16.mxu0 0
        %901 = vmatpush1.bf16.msra.mxu0 %v895
        %902 = vmatprep.subr.bf16.mxu0 0
        %903 = vmatpush1.bf16.msra.mxu0 0
        %904 = vmatprep.subr.bf16.mxu0 0
        %905 = vmatpush1.bf16.msra.mxu0 0
        %906 = vmatprep.subr.bf16.mxu0 0
        %907 = vmatpush1.bf16.msra.mxu0 0
        %908 = vmatprep.subr.bf16.mxu0 0
        %909 = vmatpush1.bf16.msra.mxu0 0
        %910 = vmatprep.subr.bf16.mxu0 0
        %911 = vmatpush1.bf16.msra.mxu0 0
        %912 = vmatprep.subr.bf16.mxu0 0
        %913 = vmatpush1.bf16.msra.mxu0 0
        %914 = vmatprep.subr.bf16.mxu0 0
        %915 = vmatpush1.bf16.msra.mxu0 0
        %916 = vmatprep.subr.bf16.mxu0 0
        %917 = vmatpush1.bf16.msra.mxu0 0
        %918 = vmatprep.subr.bf16.mxu0 0
        %919 = vmatpush1.bf16.msra.mxu0 0
        %920 = vmatprep.subr.bf16.mxu0 0
        %921 = vmatpush1.bf16.msra.mxu0 0
        %922 = vmatprep.subr.bf16.mxu0 0
        %923 = vmatpush1.bf16.msra.mxu0 0
        %924 = vmatprep.subr.bf16.mxu0 0
        %925 = vmatpush1.bf16.msra.mxu0 0
        %926 = vmatprep.subr.bf16.mxu0 0
        %927 = vmatpush1.bf16.msra.mxu0 0
        %928 = vmatprep.subr.bf16.mxu0 0
        %929 = vmatpush1.bf16.msra.mxu0 0
        %930 = vmatprep.mubr.bf16.mxu0 0
        %931 = vmatmul.mubr.bf16.gmra.mrb[0].mxu0 %v829
        %v932 = vpop.f32.mrb[0].mxu0
        %v933 = vadd.f32 %v884, %v932
        %v934 = vpop.f32.mrb[0].mxu0
        %v935 = vpop.f32.mrb[0].mxu0
        %v936 = vadd.f32 %v884, %v935
        %v937 = vpop.f32.mrb[0].mxu0
        %938 = vdwg.mxu0
        %v939 = vpack.c.bf16 %v936, %v933
        %v940 = vld [vmem:[#allocation11] sm:$0xf]
        %v941 = vld [vmem:[#allocation11 + $0x4] sm:$0xf]
        %v942 = vld [vmem:[#allocation11 + $0x8] sm:$0xf]
        %v943 = vld [vmem:[#allocation11 + $0xc] sm:$0xf]
        %v944 = vld [vmem:[#allocation13] sm:$0x1]
        %v946 = vlaneseq
        %v947 = vshrl.u32 %v946, 7
        %v948 = vsub.s32 0, %v947
        %v949 = vrot.slane %v944, %v948
        %v955 = vunpack.c.l.b16 %v940
        %v956 = vunpack.c.l.b16 %v941
        %v957 = vunpack.c.l.b16 %v942
        %v958 = vunpack.c.l.b16 %v943
        %v959 = vpack.c.b16 %v956, %v955
        %v960 = vpack.c.b16 %v958, %v957
        %963 = vmatprep.subr.bf16.mxu0 0
        %964 = vmatpush1.bf16.msra.mxu0 %v959
        %965 = vmatprep.subr.bf16.mxu0 0
        %966 = vmatpush1.bf16.msra.mxu0 %v960
        %967 = vmatprep.subr.bf16.mxu0 0
        %968 = vmatpush1.bf16.msra.mxu0 0
        %969 = vmatprep.subr.bf16.mxu0 0
        %970 = vmatpush1.bf16.msra.mxu0 0
        %971 = vmatprep.subr.bf16.mxu0 0
        %972 = vmatpush1.bf16.msra.mxu0 0
        %973 = vmatprep.subr.bf16.mxu0 0
        %974 = vmatpush1.bf16.msra.mxu0 0
        %975 = vmatprep.subr.bf16.mxu0 0
        %976 = vmatpush1.bf16.msra.mxu0 0
        %977 = vmatprep.subr.bf16.mxu0 0
        %978 = vmatpush1.bf16.msra.mxu0 0
        %979 = vmatprep.subr.bf16.mxu0 0
        %980 = vmatpush1.bf16.msra.mxu0 0
        %981 = vmatprep.subr.bf16.mxu0 0
        %982 = vmatpush1.bf16.msra.mxu0 0
        %983 = vmatprep.subr.bf16.mxu0 0
        %984 = vmatpush1.bf16.msra.mxu0 0
        %985 = vmatprep.subr.bf16.mxu0 0
        %986 = vmatpush1.bf16.msra.mxu0 0
        %987 = vmatprep.subr.bf16.mxu0 0
        %988 = vmatpush1.bf16.msra.mxu0 0
        %989 = vmatprep.subr.bf16.mxu0 0
        %990 = vmatpush1.bf16.msra.mxu0 0
        %991 = vmatprep.subr.bf16.mxu0 0
        %992 = vmatpush1.bf16.msra.mxu0 0
        %993 = vmatprep.subr.bf16.mxu0 0
        %994 = vmatpush1.bf16.msra.mxu0 0
        %995 = vmatprep.mubr.bf16.mxu0 0
        %996 = vmatmul.mubr.bf16.gmra.mrb[0].mxu0 %v829
        %v997 = vpop.f32.mrb[0].mxu0
        %v998 = vadd.f32 %v949, %v997
        %v999 = vpop.f32.mrb[0].mxu0
        %v1000 = vpop.f32.mrb[0].mxu0
        %v1001 = vadd.f32 %v949, %v1000
        %v1002 = vpop.f32.mrb[0].mxu0
        %1003 = vdwg.mxu0
        %v1004 = vpack.c.bf16 %v1001, %v998
        %v1006 = vunpack.c.l.b16 %v874
        %v1007 = vunpack.c.h.b16 %v874
        %v1008 = vpack.c.b16 %v1006, %v1006
        %v1009 = vpack.c.b16 %v1007, %v1007
        %v1011 = vunpack.c.l.b16 %v939
        %v1012 = vunpack.c.h.b16 %v939
        %v1013 = vpack.c.b16 %v1011, %v1011
        %v1014 = vpack.c.b16 %v1012, %v1012
        %v1016 = vunpack.c.l.b16 %v1004
        %v1017 = vunpack.c.h.b16 %v1004
        %v1018 = vpack.c.b16 %v1016, %v1016
        %v1019 = vpack.c.b16 %v1017, %v1017
        %v1022 = vlaneseq
        %v1023 = vshrl.u32 %v1022, 7
        %v1024 = vsub.s32 0, %v1023
        %v1025 = vrot.slane %v742, %v1024
        %v1026 = vlaneseq
        %v1027 = vshrl.u32 %v1026, 7
        %v1028 = vsub.s32 0, %v1027
        %v1029 = vrot.slane %v743, %v1028
        %vm1032 = vcmask 64512
        %v1034 = vsel %vm1032, %v1008, 0
        %v1037 = vsel %vm1032, %v1013, 0
        %1039 = vmatprep.subr.bf16.mxu0 0
        %1040 = vmatpush1.bf16.xpose.msra.mxu0 %v1037
        %1041 = vmatprep.subr.bf16.mxu0 0
        %1042 = vmatpush1.bf16.xpose.msra.mxu0 0
        %1043 = vmatprep.subr.bf16.mxu0 0
        %1044 = vmatpush1.bf16.xpose.msra.mxu0 0
        %1045 = vmatprep.subr.bf16.mxu0 0
        %1046 = vmatpush1.bf16.xpose.msra.mxu0 0
        %1047 = vmatprep.subr.bf16.mxu0 0
        %1048 = vmatpush1.bf16.xpose.msra.mxu0 0
        %1049 = vmatprep.subr.bf16.mxu0 0
        %1050 = vmatpush1.bf16.xpose.msra.mxu0 0
        %1051 = vmatprep.subr.bf16.mxu0 0
        %1052 = vmatpush1.bf16.xpose.msra.mxu0 0
        %1053 = vmatprep.subr.bf16.mxu0 0
        %1054 = vmatpush1.bf16.xpose.msra.mxu0 0
        %1055 = vmatprep.subr.bf16.mxu0 0
        %1056 = vmatpush1.bf16.xpose.msra.mxu0 0
        %1057 = vmatprep.subr.bf16.mxu0 0
        %1058 = vmatpush1.bf16.xpose.msra.mxu0 0
        %1059 = vmatprep.subr.bf16.mxu0 0
        %1060 = vmatpush1.bf16.xpose.msra.mxu0 0
        %1061 = vmatprep.subr.bf16.mxu0 0
        %1062 = vmatpush1.bf16.xpose.msra.mxu0 0
        %1063 = vmatprep.subr.bf16.mxu0 0
        %1064 = vmatpush1.bf16.xpose.msra.mxu0 0
        %1065 = vmatprep.subr.bf16.mxu0 0
        %1066 = vmatpush1.bf16.xpose.msra.mxu0 0
        %1067 = vmatprep.subr.bf16.mxu0 0
        %1068 = vmatpush1.bf16.xpose.msra.mxu0 0
        %1069 = vmatprep.subr.bf16.mxu0 0
        %1070 = vmatpush1.bf16.xpose.msra.mxu0 0
        %1071 = vmatprep.mubr.bf16.mxu0 0
        %1072 = vmatmul.mubr.bf16.gmra.mrb[0].mxu0 %v1034
        %v1073 = vpop.f32.mrb[0].mxu0
        %v1074 = vadd.f32 %v1025, %v1073
        %v1075 = vpop.f32.mrb[0].mxu0
        %v1076 = vpop.f32.mrb[0].mxu0
        %v1077 = vpop.f32.mrb[0].mxu0
        %1078 = vdwg.mxu0
        %v1080 = vsel %vm1032, %v1009, 0
        %v1083 = vsel %vm1032, %v1014, 0
        %1085 = vmatprep.subr.bf16.mxu0 0
        %1086 = vmatpush1.bf16.xpose.msra.mxu0 %v1083
        %1087 = vmatprep.subr.bf16.mxu0 0
        %1088 = vmatpush1.bf16.xpose.msra.mxu0 0
        %1089 = vmatprep.subr.bf16.mxu0 0
        %1090 = vmatpush1.bf16.xpose.msra.mxu0 0
        %1091 = vmatprep.subr.bf16.mxu0 0
        %1092 = vmatpush1.bf16.xpose.msra.mxu0 0
        %1093 = vmatprep.subr.bf16.mxu0 0
        %1094 = vmatpush1.bf16.xpose.msra.mxu0 0
        %1095 = vmatprep.subr.bf16.mxu0 0
        %1096 = vmatpush1.bf16.xpose.msra.mxu0 0
        %1097 = vmatprep.subr.bf16.mxu0 0
        %1098 = vmatpush1.bf16.xpose.msra.mxu0 0
        %1099 = vmatprep.subr.bf16.mxu0 0
        %1100 = vmatpush1.bf16.xpose.msra.mxu0 0
        %1101 = vmatprep.subr.bf16.mxu0 0
        %1102 = vmatpush1.bf16.xpose.msra.mxu0 0
        %1103 = vmatprep.subr.bf16.mxu0 0
        %1104 = vmatpush1.bf16.xpose.msra.mxu0 0
        %1105 = vmatprep.subr.bf16.mxu0 0
        %1106 = vmatpush1.bf16.xpose.msra.mxu0 0
        %1107 = vmatprep.subr.bf16.mxu0 0
        %1108 = vmatpush1.bf16.xpose.msra.mxu0 0
        %1109 = vmatprep.subr.bf16.mxu0 0
        %1110 = vmatpush1.bf16.xpose.msra.mxu0 0
        %1111 = vmatprep.subr.bf16.mxu0 0
        %1112 = vmatpush1.bf16.xpose.msra.mxu0 0
        %1113 = vmatprep.subr.bf16.mxu0 0
        %1114 = vmatpush1.bf16.xpose.msra.mxu0 0
        %1115 = vmatprep.subr.bf16.mxu0 0
        %1116 = vmatpush1.bf16.xpose.msra.mxu0 0
        %1117 = vmatprep.mubr.bf16.mxu0 0
        %1118 = vmatmul.mubr.bf16.gmra.mrb[0].mxu0 %v1080
        %v1119 = vpop.f32.mrb[0].mxu0
        %v1120 = vadd.f32 %v1029, %v1119
        %v1121 = vpop.f32.mrb[0].mxu0
        %v1122 = vpop.f32.mrb[0].mxu0
        %v1123 = vpop.f32.mrb[0].mxu0
        %1124 = vdwg.mxu0
        %v1125 = vsel %vm1032, %v1074, -inf
        %1126 = vmax.xlane.f32.xlu0 %v1125
        %v1127 = vpop.xlane.xlu0 %1126
        %v1128 = vsel %vm1032, %v1120, -inf
        %1129 = vmax.xlane.f32.xlu0 %v1128
        %v1130 = vpop.xlane.xlu0 %1129
        %v1131 = vsub.f32 %v1074, %v1127
        %v1132 = vsub.f32 %v1120, %v1130
        %v1133 = vmul.f32 %v1131, 1.442695
        %v1134 = vpow.pop %v1133
        %v1135 = vmul.f32 %v1132, 1.442695
        %v1136 = vpow.pop %v1135
        %v1137 = vsel %vm1032, %v1134, 0.0
        %1138 = vadd.xlane.f32.xlu0 %v1137
        %v1139 = vpop.xlane.xlu0 %1138
        %v1140 = vsel %vm1032, %v1136, 0.0
        %1141 = vadd.xlane.f32.xlu0 %v1140
        %v1142 = vpop.xlane.xlu0 %1141
        %v1143 = vrcp.pop %v1139
        %v1144 = vrcp.pop %v1142
        %v1145 = vmul.f32 %v1134, %v1143
        %v1146 = vmul.f32 %v1136, %v1144
        %v1147 = vpack.c.bf16 %v1145, %v1145
        %v1148 = vpack.c.bf16 %v1146, %v1146
        %v1150 = vsel %vm1032, %v1147, 0
        %vm1152 = vcmask 1043456
        %v1154 = vsel %vm1152, %v1018, 0
        %1156 = vmatprep.subr.bf16.mxu0 0
        %1157 = vmatpush1.bf16.msra.mxu0 %v1154
        %1158 = vmatprep.subr.bf16.mxu0 0
        %1159 = vmatpush1.bf16.msra.mxu0 0
        %1160 = vmatprep.subr.bf16.mxu0 0
        %1161 = vmatpush1.bf16.msra.mxu0 0
        %1162 = vmatprep.subr.bf16.mxu0 0
        %1163 = vmatpush1.bf16.msra.mxu0 0
        %1164 = vmatprep.subr.bf16.mxu0 0
        %1165 = vmatpush1.bf16.msra.mxu0 0
        %1166 = vmatprep.subr.bf16.mxu0 0
        %1167 = vmatpush1.bf16.msra.mxu0 0
        %1168 = vmatprep.subr.bf16.mxu0 0
        %1169 = vmatpush1.bf16.msra.mxu0 0
        %1170 = vmatprep.subr.bf16.mxu0 0
        %1171 = vmatpush1.bf16.msra.mxu0 0
        %1172 = vmatprep.subr.bf16.mxu0 0
        %1173 = vmatpush1.bf16.msra.mxu0 0
        %1174 = vmatprep.subr.bf16.mxu0 0
        %1175 = vmatpush1.bf16.msra.mxu0 0
        %1176 = vmatprep.subr.bf16.mxu0 0
        %1177 = vmatpush1.bf16.msra.mxu0 0
        %1178 = vmatprep.subr.bf16.mxu0 0
        %1179 = vmatpush1.bf16.msra.mxu0 0
        %1180 = vmatprep.subr.bf16.mxu0 0
        %1181 = vmatpush1.bf16.msra.mxu0 0
        %1182 = vmatprep.subr.bf16.mxu0 0
        %1183 = vmatpush1.bf16.msra.mxu0 0
        %1184 = vmatprep.subr.bf16.mxu0 0
        %1185 = vmatpush1.bf16.msra.mxu0 0
        %1186 = vmatprep.subr.bf16.mxu0 0
        %1187 = vmatpush1.bf16.msra.mxu0 0
        %1188 = vmatprep.mubr.bf16.mxu0 0
        %1189 = vmatmul.mubr.bf16.gmra.mrb[0].mxu0 %v1150
        %v1190 = vpop.f32.mrb[0].mxu0
        %v1191 = vadd.f32 0.0, %v1190
        %v1192 = vpop.f32.mrb[0].mxu0
        %v1193 = vpop.f32.mrb[0].mxu0
        %v1194 = vpop.f32.mrb[0].mxu0
        %1195 = vdwg.mxu0
        %v1197 = vsel %vm1032, %v1148, 0
        %v1200 = vsel %vm1152, %v1019, 0
        %1202 = vmatprep.subr.bf16.mxu0 0
        %1203 = vmatpush1.bf16.msra.mxu0 %v1200
        %1204 = vmatprep.subr.bf16.mxu0 0
        %1205 = vmatpush1.bf16.msra.mxu0 0
        %1206 = vmatprep.subr.bf16.mxu0 0
        %1207 = vmatpush1.bf16.msra.mxu0 0
        %1208 = vmatprep.subr.bf16.mxu0 0
        %1209 = vmatpush1.bf16.msra.mxu0 0
        %1210 = vmatprep.subr.bf16.mxu0 0
        %1211 = vmatpush1.bf16.msra.mxu0 0
        %1212 = vmatprep.subr.bf16.mxu0 0
        %1213 = vmatpush1.bf16.msra.mxu0 0
        %1214 = vmatprep.subr.bf16.mxu0 0
        %1215 = vmatpush1.bf16.msra.mxu0 0
        %1216 = vmatprep.subr.bf16.mxu0 0
        %1217 = vmatpush1.bf16.msra.mxu0 0
        %1218 = vmatprep.subr.bf16.mxu0 0
        %1219 = vmatpush1.bf16.msra.mxu0 0
        %1220 = vmatprep.subr.bf16.mxu0 0
        %1221 = vmatpush1.bf16.msra.mxu0 0
        %1222 = vmatprep.subr.bf16.mxu0 0
        %1223 = vmatpush1.bf16.msra.mxu0 0
        %1224 = vmatprep.subr.bf16.mxu0 0
        %1225 = vmatpush1.bf16.msra.mxu0 0
        %1226 = vmatprep.subr.bf16.mxu0 0
        %1227 = vmatpush1.bf16.msra.mxu0 0
        %1228 = vmatprep.subr.bf16.mxu0 0
        %1229 = vmatpush1.bf16.msra.mxu0 0
        %1230 = vmatprep.subr.bf16.mxu0 0
        %1231 = vmatpush1.bf16.msra.mxu0 0
        %1232 = vmatprep.subr.bf16.mxu0 0
        %1233 = vmatpush1.bf16.msra.mxu0 0
        %1234 = vmatprep.mubr.bf16.mxu0 0
        %1235 = vmatmul.mubr.bf16.gmra.mrb[0].mxu0 %v1197
        %v1236 = vpop.f32.mrb[0].mxu0
        %v1237 = vadd.f32 0.0, %v1236
        %v1238 = vpop.f32.mrb[0].mxu0
        %v1239 = vpop.f32.mrb[0].mxu0
        %v1240 = vpop.f32.mrb[0].mxu0
        %1241 = vdwg.mxu0
        %v1242 = vpack.c.bf16 %v1237, %v1191
        %1243 = vrot.lane.b32.xlu0 %v1008, 120
        %v1244 = vpop.permute.xlu0 %1243
        %1245 = vrot.lane.b32.xlu0 %v1013, 120
        %v1246 = vpop.permute.xlu0 %1245
        %v1248 = vsel %vm1032, %v1244, 0
        %v1251 = vsel %vm1032, %v1246, 0
        %1253 = vmatprep.subr.bf16.mxu0 0
        %1254 = vmatpush1.bf16.xpose.msra.mxu0 %v1251
        %1255 = vmatprep.subr.bf16.mxu0 0
        %1256 = vmatpush1.bf16.xpose.msra.mxu0 0
        %1257 = vmatprep.subr.bf16.mxu0 0
        %1258 = vmatpush1.bf16.xpose.msra.mxu0 0
        %1259 = vmatprep.subr.bf16.mxu0 0
        %1260 = vmatpush1.bf16.xpose.msra.mxu0 0
        %1261 = vmatprep.subr.bf16.mxu0 0
        %1262 = vmatpush1.bf16.xpose.msra.mxu0 0
        %1263 = vmatprep.subr.bf16.mxu0 0
        %1264 = vmatpush1.bf16.xpose.msra.mxu0 0
        %1265 = vmatprep.subr.bf16.mxu0 0
        %1266 = vmatpush1.bf16.xpose.msra.mxu0 0
        %1267 = vmatprep.subr.bf16.mxu0 0
        %1268 = vmatpush1.bf16.xpose.msra.mxu0 0
        %1269 = vmatprep.subr.bf16.mxu0 0
        %1270 = vmatpush1.bf16.xpose.msra.mxu0 0
        %1271 = vmatprep.subr.bf16.mxu0 0
        %1272 = vmatpush1.bf16.xpose.msra.mxu0 0
        %1273 = vmatprep.subr.bf16.mxu0 0
        %1274 = vmatpush1.bf16.xpose.msra.mxu0 0
        %1275 = vmatprep.subr.bf16.mxu0 0
        %1276 = vmatpush1.bf16.xpose.msra.mxu0 0
        %1277 = vmatprep.subr.bf16.mxu0 0
        %1278 = vmatpush1.bf16.xpose.msra.mxu0 0
        %1279 = vmatprep.subr.bf16.mxu0 0
        %1280 = vmatpush1.bf16.xpose.msra.mxu0 0
        %1281 = vmatprep.subr.bf16.mxu0 0
        %1282 = vmatpush1.bf16.xpose.msra.mxu0 0
        %1283 = vmatprep.subr.bf16.mxu0 0
        %1284 = vmatpush1.bf16.xpose.msra.mxu0 0
        %1285 = vmatprep.mubr.bf16.mxu0 0
        %1286 = vmatmul.mubr.bf16.gmra.mrb[0].mxu0 %v1248
        %v1287 = vpop.f32.mrb[0].mxu0
        %v1288 = vadd.f32 %v1025, %v1287
        %v1289 = vpop.f32.mrb[0].mxu0
        %v1290 = vpop.f32.mrb[0].mxu0
        %v1291 = vpop.f32.mrb[0].mxu0
        %1292 = vdwg.mxu0
        %1293 = vrot.lane.b32.xlu0 %v1009, 120
        %v1294 = vpop.permute.xlu0 %1293
        %1295 = vrot.lane.b32.xlu0 %v1014, 120
        %v1296 = vpop.permute.xlu0 %1295
        %v1298 = vsel %vm1032, %v1294, 0
        %v1301 = vsel %vm1032, %v1296, 0
        %1303 = vmatprep.subr.bf16.mxu0 0
        %1304 = vmatpush1.bf16.xpose.msra.mxu0 %v1301
        %1305 = vmatprep.subr.bf16.mxu0 0
        %1306 = vmatpush1.bf16.xpose.msra.mxu0 0
        %1307 = vmatprep.subr.bf16.mxu0 0
        %1308 = vmatpush1.bf16.xpose.msra.mxu0 0
        %1309 = vmatprep.subr.bf16.mxu0 0
        %1310 = vmatpush1.bf16.xpose.msra.mxu0 0
        %1311 = vmatprep.subr.bf16.mxu0 0
        %1312 = vmatpush1.bf16.xpose.msra.mxu0 0
        %1313 = vmatprep.subr.bf16.mxu0 0
        %1314 = vmatpush1.bf16.xpose.msra.mxu0 0
        %1315 = vmatprep.subr.bf16.mxu0 0
        %1316 = vmatpush1.bf16.xpose.msra.mxu0 0
        %1317 = vmatprep.subr.bf16.mxu0 0
        %1318 = vmatpush1.bf16.xpose.msra.mxu0 0
        %1319 = vmatprep.subr.bf16.mxu0 0
        %1320 = vmatpush1.bf16.xpose.msra.mxu0 0
        %1321 = vmatprep.subr.bf16.mxu0 0
        %1322 = vmatpush1.bf16.xpose.msra.mxu0 0
        %1323 = vmatprep.subr.bf16.mxu0 0
        %1324 = vmatpush1.bf16.xpose.msra.mxu0 0
        %1325 = vmatprep.subr.bf16.mxu0 0
        %1326 = vmatpush1.bf16.xpose.msra.mxu0 0
        %1327 = vmatprep.subr.bf16.mxu0 0
        %1328 = vmatpush1.bf16.xpose.msra.mxu0 0
        %1329 = vmatprep.subr.bf16.mxu0 0
        %1330 = vmatpush1.bf16.xpose.msra.mxu0 0
        %1331 = vmatprep.subr.bf16.mxu0 0
        %1332 = vmatpush1.bf16.xpose.msra.mxu0 0
        %1333 = vmatprep.subr.bf16.mxu0 0
        %1334 = vmatpush1.bf16.xpose.msra.mxu0 0
        %1335 = vmatprep.mubr.bf16.mxu0 0
        %1336 = vmatmul.mubr.bf16.gmra.mrb[0].mxu0 %v1298
        %v1337 = vpop.f32.mrb[0].mxu0
        %v1338 = vadd.f32 %v1029, %v1337
        %v1339 = vpop.f32.mrb[0].mxu0
        %v1340 = vpop.f32.mrb[0].mxu0
        %v1341 = vpop.f32.mrb[0].mxu0
        %1342 = vdwg.mxu0
        %v1343 = vsel %vm1032, %v1288, -inf
        %1344 = vmax.xlane.f32.xlu0 %v1343
        %v1345 = vpop.xlane.xlu0 %1344
        %v1346 = vsel %vm1032, %v1338, -inf
        %1347 = vmax.xlane.f32.xlu0 %v1346
        %v1348 = vpop.xlane.xlu0 %1347
        %v1349 = vsub.f32 %v1288, %v1345
        %v1350 = vsub.f32 %v1338, %v1348
        %v1351 = vmul.f32 %v1349, 1.442695
        %v1352 = vpow.pop %v1351
        %v1353 = vmul.f32 %v1350, 1.442695
        %v1354 = vpow.pop %v1353
        %v1355 = vsel %vm1032, %v1352, 0.0
        %1356 = vadd.xlane.f32.xlu0 %v1355
        %v1357 = vpop.xlane.xlu0 %1356
        %v1358 = vsel %vm1032, %v1354, 0.0
        %1359 = vadd.xlane.f32.xlu0 %v1358
        %v1360 = vpop.xlane.xlu0 %1359
        %v1361 = vrcp.pop %v1357
        %v1362 = vrcp.pop %v1360
        %v1363 = vmul.f32 %v1352, %v1361
        %v1364 = vmul.f32 %v1354, %v1362
        %v1365 = vpack.c.bf16 %v1363, %v1363
        %v1366 = vpack.c.bf16 %v1364, %v1364
        %1367 = vrot.lane.b32.xlu0 %v1018, 120
        %v1368 = vpop.permute.xlu0 %1367
        %v1370 = vsel %vm1032, %v1365, 0
        %v1373 = vsel %vm1152, %v1368, 0
        %1375 = vmatprep.subr.bf16.mxu0 0
        %1376 = vmatpush1.bf16.msra.mxu0 %v1373
        %1377 = vmatprep.subr.bf16.mxu0 0
        %1378 = vmatpush1.bf16.msra.mxu0 0
        %1379 = vmatprep.subr.bf16.mxu0 0
        %1380 = vmatpush1.bf16.msra.mxu0 0
        %1381 = vmatprep.subr.bf16.mxu0 0
        %1382 = vmatpush1.bf16.msra.mxu0 0
        %1383 = vmatprep.subr.bf16.mxu0 0
        %1384 = vmatpush1.bf16.msra.mxu0 0
        %1385 = vmatprep.subr.bf16.mxu0 0
        %1386 = vmatpush1.bf16.msra.mxu0 0
        %1387 = vmatprep.subr.bf16.mxu0 0
        %1388 = vmatpush1.bf16.msra.mxu0 0
        %1389 = vmatprep.subr.bf16.mxu0 0
        %1390 = vmatpush1.bf16.msra.mxu0 0
        %1391 = vmatprep.subr.bf16.mxu0 0
        %1392 = vmatpush1.bf16.msra.mxu0 0
        %1393 = vmatprep.subr.bf16.mxu0 0
        %1394 = vmatpush1.bf16.msra.mxu0 0
        %1395 = vmatprep.subr.bf16.mxu0 0
        %1396 = vmatpush1.bf16.msra.mxu0 0
        %1397 = vmatprep.subr.bf16.mxu0 0
        %1398 = vmatpush1.bf16.msra.mxu0 0
        %1399 = vmatprep.subr.bf16.mxu0 0
        %1400 = vmatpush1.bf16.msra.mxu0 0
        %1401 = vmatprep.subr.bf16.mxu0 0
        %1402 = vmatpush1.bf16.msra.mxu0 0
        %1403 = vmatprep.subr.bf16.mxu0 0
        %1404 = vmatpush1.bf16.msra.mxu0 0
        %1405 = vmatprep.subr.bf16.mxu0 0
        %1406 = vmatpush1.bf16.msra.mxu0 0
        %1407 = vmatprep.mubr.bf16.mxu0 0
        %1408 = vmatmul.mubr.bf16.gmra.mrb[0].mxu0 %v1370
        %v1409 = vpop.f32.mrb[0].mxu0
        %v1410 = vadd.f32 0.0, %v1409
        %v1411 = vpop.f32.mrb[0].mxu0
        %v1412 = vpop.f32.mrb[0].mxu0
        %v1413 = vpop.f32.mrb[0].mxu0
        %1414 = vdwg.mxu0
        %1415 = vrot.lane.b32.xlu0 %v1019, 120
        %v1416 = vpop.permute.xlu0 %1415
        %v1418 = vsel %vm1032, %v1366, 0
        %v1421 = vsel %vm1152, %v1416, 0
        %1423 = vmatprep.subr.bf16.mxu0 0
        %1424 = vmatpush1.bf16.msra.mxu0 %v1421
        %1425 = vmatprep.subr.bf16.mxu0 0
        %1426 = vmatpush1.bf16.msra.mxu0 0
        %1427 = vmatprep.subr.bf16.mxu0 0
        %1428 = vmatpush1.bf16.msra.mxu0 0
        %1429 = vmatprep.subr.bf16.mxu0 0
        %1430 = vmatpush1.bf16.msra.mxu0 0
        %1431 = vmatprep.subr.bf16.mxu0 0
        %1432 = vmatpush1.bf16.msra.mxu0 0
        %1433 = vmatprep.subr.bf16.mxu0 0
        %1434 = vmatpush1.bf16.msra.mxu0 0
        %1435 = vmatprep.subr.bf16.mxu0 0
        %1436 = vmatpush1.bf16.msra.mxu0 0
        %1437 = vmatprep.subr.bf16.mxu0 0
        %1438 = vmatpush1.bf16.msra.mxu0 0
        %1439 = vmatprep.subr.bf16.mxu0 0
        %1440 = vmatpush1.bf16.msra.mxu0 0
        %1441 = vmatprep.subr.bf16.mxu0 0
        %1442 = vmatpush1.bf16.msra.mxu0 0
        %1443 = vmatprep.subr.bf16.mxu0 0
        %1444 = vmatpush1.bf16.msra.mxu0 0
        %1445 = vmatprep.subr.bf16.mxu0 0
        %1446 = vmatpush1.bf16.msra.mxu0 0
        %1447 = vmatprep.subr.bf16.mxu0 0
        %1448 = vmatpush1.bf16.msra.mxu0 0
        %1449 = vmatprep.subr.bf16.mxu0 0
        %1450 = vmatpush1.bf16.msra.mxu0 0
        %1451 = vmatprep.subr.bf16.mxu0 0
        %1452 = vmatpush1.bf16.msra.mxu0 0
        %1453 = vmatprep.subr.bf16.mxu0 0
        %1454 = vmatpush1.bf16.msra.mxu0 0
        %1455 = vmatprep.mubr.bf16.mxu0 0
        %1456 = vmatmul.mubr.bf16.gmra.mrb[0].mxu0 %v1418
        %v1457 = vpop.f32.mrb[0].mxu0
        %v1458 = vadd.f32 0.0, %v1457
        %v1459 = vpop.f32.mrb[0].mxu0
        %v1460 = vpop.f32.mrb[0].mxu0
        %v1461 = vpop.f32.mrb[0].mxu0
        %1462 = vdwg.mxu0
        %v1463 = vpack.c.bf16 %v1458, %v1410
        %1464 = vrot.lane.b32.xlu0 %v1008, 112
        %v1465 = vpop.permute.xlu0 %1464
        %1466 = vrot.lane.b32.xlu0 %v1013, 112
        %v1467 = vpop.permute.xlu0 %1466
        %v1469 = vsel %vm1032, %v1465, 0
        %v1472 = vsel %vm1032, %v1467, 0
        %1474 = vmatprep.subr.bf16.mxu0 0
        %1475 = vmatpush1.bf16.xpose.msra.mxu0 %v1472
        %1476 = vmatprep.subr.bf16.mxu0 0
        %1477 = vmatpush1.bf16.xpose.msra.mxu0 0
        %1478 = vmatprep.subr.bf16.mxu0 0
        %1479 = vmatpush1.bf16.xpose.msra.mxu0 0
        %1480 = vmatprep.subr.bf16.mxu0 0
        %1481 = vmatpush1.bf16.xpose.msra.mxu0 0
        %1482 = vmatprep.subr.bf16.mxu0 0
        %1483 = vmatpush1.bf16.xpose.msra.mxu0 0
        %1484 = vmatprep.subr.bf16.mxu0 0
        %1485 = vmatpush1.bf16.xpose.msra.mxu0 0
        %1486 = vmatprep.subr.bf16.mxu0 0
        %1487 = vmatpush1.bf16.xpose.msra.mxu0 0
        %1488 = vmatprep.subr.bf16.mxu0 0
        %1489 = vmatpush1.bf16.xpose.msra.mxu0 0
        %1490 = vmatprep.subr.bf16.mxu0 0
        %1491 = vmatpush1.bf16.xpose.msra.mxu0 0
        %1492 = vmatprep.subr.bf16.mxu0 0
        %1493 = vmatpush1.bf16.xpose.msra.mxu0 0
        %1494 = vmatprep.subr.bf16.mxu0 0
        %1495 = vmatpush1.bf16.xpose.msra.mxu0 0
        %1496 = vmatprep.subr.bf16.mxu0 0
        %1497 = vmatpush1.bf16.xpose.msra.mxu0 0
        %1498 = vmatprep.subr.bf16.mxu0 0
        %1499 = vmatpush1.bf16.xpose.msra.mxu0 0
        %1500 = vmatprep.subr.bf16.mxu0 0
        %1501 = vmatpush1.bf16.xpose.msra.mxu0 0
        %1502 = vmatprep.subr.bf16.mxu0 0
        %1503 = vmatpush1.bf16.xpose.msra.mxu0 0
        %1504 = vmatprep.subr.bf16.mxu0 0
        %1505 = vmatpush1.bf16.xpose.msra.mxu0 0
        %1506 = vmatprep.mubr.bf16.mxu0 0
        %1507 = vmatmul.mubr.bf16.gmra.mrb[0].mxu0 %v1469
        %v1508 = vpop.f32.mrb[0].mxu0
        %v1509 = vadd.f32 %v1025, %v1508
        %v1510 = vpop.f32.mrb[0].mxu0
        %v1511 = vpop.f32.mrb[0].mxu0
        %v1512 = vpop.f32.mrb[0].mxu0
        %1513 = vdwg.mxu0
        %1514 = vrot.lane.b32.xlu0 %v1009, 112
        %v1515 = vpop.permute.xlu0 %1514
        %1516 = vrot.lane.b32.xlu0 %v1014, 112
        %v1517 = vpop.permute.xlu0 %1516
        %v1519 = vsel %vm1032, %v1515, 0
        %v1522 = vsel %vm1032, %v1517, 0
        %1524 = vmatprep.subr.bf16.mxu0 0
        %1525 = vmatpush1.bf16.xpose.msra.mxu0 %v1522
        %1526 = vmatprep.subr.bf16.mxu0 0
        %1527 = vmatpush1.bf16.xpose.msra.mxu0 0
        %1528 = vmatprep.subr.bf16.mxu0 0
        %1529 = vmatpush1.bf16.xpose.msra.mxu0 0
        %1530 = vmatprep.subr.bf16.mxu0 0
        %1531 = vmatpush1.bf16.xpose.msra.mxu0 0
        %1532 = vmatprep.subr.bf16.mxu0 0
        %1533 = vmatpush1.bf16.xpose.msra.mxu0 0
        %1534 = vmatprep.subr.bf16.mxu0 0
        %1535 = vmatpush1.bf16.xpose.msra.mxu0 0
        %1536 = vmatprep.subr.bf16.mxu0 0
        %1537 = vmatpush1.bf16.xpose.msra.mxu0 0
        %1538 = vmatprep.subr.bf16.mxu0 0
        %1539 = vmatpush1.bf16.xpose.msra.mxu0 0
        %1540 = vmatprep.subr.bf16.mxu0 0
        %1541 = vmatpush1.bf16.xpose.msra.mxu0 0
        %1542 = vmatprep.subr.bf16.mxu0 0
        %1543 = vmatpush1.bf16.xpose.msra.mxu0 0
        %1544 = vmatprep.subr.bf16.mxu0 0
        %1545 = vmatpush1.bf16.xpose.msra.mxu0 0
        %1546 = vmatprep.subr.bf16.mxu0 0
        %1547 = vmatpush1.bf16.xpose.msra.mxu0 0
        %1548 = vmatprep.subr.bf16.mxu0 0
        %1549 = vmatpush1.bf16.xpose.msra.mxu0 0
        %1550 = vmatprep.subr.bf16.mxu0 0
        %1551 = vmatpush1.bf16.xpose.msra.mxu0 0
        %1552 = vmatprep.subr.bf16.mxu0 0
        %1553 = vmatpush1.bf16.xpose.msra.mxu0 0
        %1554 = vmatprep.subr.bf16.mxu0 0
        %1555 = vmatpush1.bf16.xpose.msra.mxu0 0
        %1556 = vmatprep.mubr.bf16.mxu0 0
        %1557 = vmatmul.mubr.bf16.gmra.mrb[0].mxu0 %v1519
        %v1558 = vpop.f32.mrb[0].mxu0
        %v1559 = vadd.f32 %v1029, %v1558
        %v1560 = vpop.f32.mrb[0].mxu0
        %v1561 = vpop.f32.mrb[0].mxu0
        %v1562 = vpop.f32.mrb[0].mxu0
        %1563 = vdwg.mxu0
        %v1564 = vsel %vm1032, %v1509, -inf
        %1565 = vmax.xlane.f32.xlu0 %v1564
        %v1566 = vpop.xlane.xlu0 %1565
        %v1567 = vsel %vm1032, %v1559, -inf
        %1568 = vmax.xlane.f32.xlu0 %v1567
        %v1569 = vpop.xlane.xlu0 %1568
        %v1570 = vsub.f32 %v1509, %v1566
        %v1571 = vsub.f32 %v1559, %v1569
        %v1572 = vmul.f32 %v1570, 1.442695
        %v1573 = vpow.pop %v1572
        %v1574 = vmul.f32 %v1571, 1.442695
        %v1575 = vpow.pop %v1574
        %v1576 = vsel %vm1032, %v1573, 0.0
        %1577 = vadd.xlane.f32.xlu0 %v1576
        %v1578 = vpop.xlane.xlu0 %1577
        %v1579 = vsel %vm1032, %v1575, 0.0
        %1580 = vadd.xlane.f32.xlu0 %v1579
        %v1581 = vpop.xlane.xlu0 %1580
        %v1582 = vrcp.pop %v1578
        %v1583 = vrcp.pop %v1581
        %v1584 = vmul.f32 %v1573, %v1582
        %v1585 = vmul.f32 %v1575, %v1583
        %v1586 = vpack.c.bf16 %v1584, %v1584
        %v1587 = vpack.c.bf16 %v1585, %v1585
        %1588 = vrot.lane.b32.xlu0 %v1018, 112
        %v1589 = vpop.permute.xlu0 %1588
        %v1591 = vsel %vm1032, %v1586, 0
        %v1594 = vsel %vm1152, %v1589, 0
        %1596 = vmatprep.subr.bf16.mxu0 0
        %1597 = vmatpush1.bf16.msra.mxu0 %v1594
        %1598 = vmatprep.subr.bf16.mxu0 0
        %1599 = vmatpush1.bf16.msra.mxu0 0
        %1600 = vmatprep.subr.bf16.mxu0 0
        %1601 = vmatpush1.bf16.msra.mxu0 0
        %1602 = vmatprep.subr.bf16.mxu0 0
        %1603 = vmatpush1.bf16.msra.mxu0 0
        %1604 = vmatprep.subr.bf16.mxu0 0
        %1605 = vmatpush1.bf16.msra.mxu0 0
        %1606 = vmatprep.subr.bf16.mxu0 0
        %1607 = vmatpush1.bf16.msra.mxu0 0
        %1608 = vmatprep.subr.bf16.mxu0 0
        %1609 = vmatpush1.bf16.msra.mxu0 0
        %1610 = vmatprep.subr.bf16.mxu0 0
        %1611 = vmatpush1.bf16.msra.mxu0 0
        %1612 = vmatprep.subr.bf16.mxu0 0
        %1613 = vmatpush1.bf16.msra.mxu0 0
        %1614 = vmatprep.subr.bf16.mxu0 0
        %1615 = vmatpush1.bf16.msra.mxu0 0
        %1616 = vmatprep.subr.bf16.mxu0 0
        %1617 = vmatpush1.bf16.msra.mxu0 0
        %1618 = vmatprep.subr.bf16.mxu0 0
        %1619 = vmatpush1.bf16.msra.mxu0 0
        %1620 = vmatprep.subr.bf16.mxu0 0
        %1621 = vmatpush1.bf16.msra.mxu0 0
        %1622 = vmatprep.subr.bf16.mxu0 0
        %1623 = vmatpush1.bf16.msra.mxu0 0
        %1624 = vmatprep.subr.bf16.mxu0 0
        %1625 = vmatpush1.bf16.msra.mxu0 0
        %1626 = vmatprep.subr.bf16.mxu0 0
        %1627 = vmatpush1.bf16.msra.mxu0 0
        %1628 = vmatprep.mubr.bf16.mxu0 0
        %1629 = vmatmul.mubr.bf16.gmra.mrb[0].mxu0 %v1591
        %v1630 = vpop.f32.mrb[0].mxu0
        %v1631 = vadd.f32 0.0, %v1630
        %v1632 = vpop.f32.mrb[0].mxu0
        %v1633 = vpop.f32.mrb[0].mxu0
        %v1634 = vpop.f32.mrb[0].mxu0
        %1635 = vdwg.mxu0
        %1636 = vrot.lane.b32.xlu0 %v1019, 112
        %v1637 = vpop.permute.xlu0 %1636
        %v1639 = vsel %vm1032, %v1587, 0
        %v1642 = vsel %vm1152, %v1637, 0
        %1644 = vmatprep.subr.bf16.mxu0 0
        %1645 = vmatpush1.bf16.msra.mxu0 %v1642
        %1646 = vmatprep.subr.bf16.mxu0 0
        %1647 = vmatpush1.bf16.msra.mxu0 0
        %1648 = vmatprep.subr.bf16.mxu0 0
        %1649 = vmatpush1.bf16.msra.mxu0 0
        %1650 = vmatprep.subr.bf16.mxu0 0
        %1651 = vmatpush1.bf16.msra.mxu0 0
        %1652 = vmatprep.subr.bf16.mxu0 0
        %1653 = vmatpush1.bf16.msra.mxu0 0
        %1654 = vmatprep.subr.bf16.mxu0 0
        %1655 = vmatpush1.bf16.msra.mxu0 0
        %1656 = vmatprep.subr.bf16.mxu0 0
        %1657 = vmatpush1.bf16.msra.mxu0 0
        %1658 = vmatprep.subr.bf16.mxu0 0
        %1659 = vmatpush1.bf16.msra.mxu0 0
        %1660 = vmatprep.subr.bf16.mxu0 0
        %1661 = vmatpush1.bf16.msra.mxu0 0
        %1662 = vmatprep.subr.bf16.mxu0 0
        %1663 = vmatpush1.bf16.msra.mxu0 0
        %1664 = vmatprep.subr.bf16.mxu0 0
        %1665 = vmatpush1.bf16.msra.mxu0 0
        %1666 = vmatprep.subr.bf16.mxu0 0
        %1667 = vmatpush1.bf16.msra.mxu0 0
        %1668 = vmatprep.subr.bf16.mxu0 0
        %1669 = vmatpush1.bf16.msra.mxu0 0
        %1670 = vmatprep.subr.bf16.mxu0 0
        %1671 = vmatpush1.bf16.msra.mxu0 0
        %1672 = vmatprep.subr.bf16.mxu0 0
        %1673 = vmatpush1.bf16.msra.mxu0 0
        %1674 = vmatprep.subr.bf16.mxu0 0
        %1675 = vmatpush1.bf16.msra.mxu0 0
        %1676 = vmatprep.mubr.bf16.mxu0 0
        %1677 = vmatmul.mubr.bf16.gmra.mrb[0].mxu0 %v1639
        %v1678 = vpop.f32.mrb[0].mxu0
        %v1679 = vadd.f32 0.0, %v1678
        %v1680 = vpop.f32.mrb[0].mxu0
        %v1681 = vpop.f32.mrb[0].mxu0
        %v1682 = vpop.f32.mrb[0].mxu0
        %1683 = vdwg.mxu0
        %v1684 = vpack.c.bf16 %v1679, %v1631
        %1685 = vrot.lane.b32.xlu0 %v1008, 104
        %v1686 = vpop.permute.xlu0 %1685
        %1687 = vrot.lane.b32.xlu0 %v1013, 104
        %v1688 = vpop.permute.xlu0 %1687
        %v1690 = vsel %vm1032, %v1686, 0
        %v1693 = vsel %vm1032, %v1688, 0
        %1695 = vmatprep.subr.bf16.mxu0 0
        %1696 = vmatpush1.bf16.xpose.msra.mxu0 %v1693
        %1697 = vmatprep.subr.bf16.mxu0 0
        %1698 = vmatpush1.bf16.xpose.msra.mxu0 0
        %1699 = vmatprep.subr.bf16.mxu0 0
        %1700 = vmatpush1.bf16.xpose.msra.mxu0 0
        %1701 = vmatprep.subr.bf16.mxu0 0
        %1702 = vmatpush1.bf16.xpose.msra.mxu0 0
        %1703 = vmatprep.subr.bf16.mxu0 0
        %1704 = vmatpush1.bf16.xpose.msra.mxu0 0
        %1705 = vmatprep.subr.bf16.mxu0 0
        %1706 = vmatpush1.bf16.xpose.msra.mxu0 0
        %1707 = vmatprep.subr.bf16.mxu0 0
        %1708 = vmatpush1.bf16.xpose.msra.mxu0 0
        %1709 = vmatprep.subr.bf16.mxu0 0
        %1710 = vmatpush1.bf16.xpose.msra.mxu0 0
        %1711 = vmatprep.subr.bf16.mxu0 0
        %1712 = vmatpush1.bf16.xpose.msra.mxu0 0
        %1713 = vmatprep.subr.bf16.mxu0 0
        %1714 = vmatpush1.bf16.xpose.msra.mxu0 0
        %1715 = vmatprep.subr.bf16.mxu0 0
        %1716 = vmatpush1.bf16.xpose.msra.mxu0 0
        %1717 = vmatprep.subr.bf16.mxu0 0
        %1718 = vmatpush1.bf16.xpose.msra.mxu0 0
        %1719 = vmatprep.subr.bf16.mxu0 0
        %1720 = vmatpush1.bf16.xpose.msra.mxu0 0
        %1721 = vmatprep.subr.bf16.mxu0 0
        %1722 = vmatpush1.bf16.xpose.msra.mxu0 0
        %1723 = vmatprep.subr.bf16.mxu0 0
        %1724 = vmatpush1.bf16.xpose.msra.mxu0 0
        %1725 = vmatprep.subr.bf16.mxu0 0
        %1726 = vmatpush1.bf16.xpose.msra.mxu0 0
        %1727 = vmatprep.mubr.bf16.mxu0 0
        %1728 = vmatmul.mubr.bf16.gmra.mrb[0].mxu0 %v1690
        %v1729 = vpop.f32.mrb[0].mxu0
        %v1730 = vadd.f32 %v1025, %v1729
        %v1731 = vpop.f32.mrb[0].mxu0
        %v1732 = vpop.f32.mrb[0].mxu0
        %v1733 = vpop.f32.mrb[0].mxu0
        %1734 = vdwg.mxu0
        %1735 = vrot.lane.b32.xlu0 %v1009, 104
        %v1736 = vpop.permute.xlu0 %1735
        %1737 = vrot.lane.b32.xlu0 %v1014, 104
        %v1738 = vpop.permute.xlu0 %1737
        %v1740 = vsel %vm1032, %v1736, 0
        %v1743 = vsel %vm1032, %v1738, 0
        %1745 = vmatprep.subr.bf16.mxu0 0
        %1746 = vmatpush1.bf16.xpose.msra.mxu0 %v1743
        %1747 = vmatprep.subr.bf16.mxu0 0
        %1748 = vmatpush1.bf16.xpose.msra.mxu0 0
        %1749 = vmatprep.subr.bf16.mxu0 0
        %1750 = vmatpush1.bf16.xpose.msra.mxu0 0
        %1751 = vmatprep.subr.bf16.mxu0 0
        %1752 = vmatpush1.bf16.xpose.msra.mxu0 0
        %1753 = vmatprep.subr.bf16.mxu0 0
        %1754 = vmatpush1.bf16.xpose.msra.mxu0 0
        %1755 = vmatprep.subr.bf16.mxu0 0
        %1756 = vmatpush1.bf16.xpose.msra.mxu0 0
        %1757 = vmatprep.subr.bf16.mxu0 0
        %1758 = vmatpush1.bf16.xpose.msra.mxu0 0
        %1759 = vmatprep.subr.bf16.mxu0 0
        %1760 = vmatpush1.bf16.xpose.msra.mxu0 0
        %1761 = vmatprep.subr.bf16.mxu0 0
        %1762 = vmatpush1.bf16.xpose.msra.mxu0 0
        %1763 = vmatprep.subr.bf16.mxu0 0
        %1764 = vmatpush1.bf16.xpose.msra.mxu0 0
        %1765 = vmatprep.subr.bf16.mxu0 0
        %1766 = vmatpush1.bf16.xpose.msra.mxu0 0
        %1767 = vmatprep.subr.bf16.mxu0 0
        %1768 = vmatpush1.bf16.xpose.msra.mxu0 0
        %1769 = vmatprep.subr.bf16.mxu0 0
        %1770 = vmatpush1.bf16.xpose.msra.mxu0 0
        %1771 = vmatprep.subr.bf16.mxu0 0
        %1772 = vmatpush1.bf16.xpose.msra.mxu0 0
        %1773 = vmatprep.subr.bf16.mxu0 0
        %1774 = vmatpush1.bf16.xpose.msra.mxu0 0
        %1775 = vmatprep.subr.bf16.mxu0 0
        %1776 = vmatpush1.bf16.xpose.msra.mxu0 0
        %1777 = vmatprep.mubr.bf16.mxu0 0
        %1778 = vmatmul.mubr.bf16.gmra.mrb[0].mxu0 %v1740
        %v1779 = vpop.f32.mrb[0].mxu0
        %v1780 = vadd.f32 %v1029, %v1779
        %v1781 = vpop.f32.mrb[0].mxu0
        %v1782 = vpop.f32.mrb[0].mxu0
        %v1783 = vpop.f32.mrb[0].mxu0
        %1784 = vdwg.mxu0
        %v1785 = vsel %vm1032, %v1730, -inf
        %1786 = vmax.xlane.f32.xlu0 %v1785
        %v1787 = vpop.xlane.xlu0 %1786
        %v1788 = vsel %vm1032, %v1780, -inf
        %1789 = vmax.xlane.f32.xlu0 %v1788
        %v1790 = vpop.xlane.xlu0 %1789
        %v1791 = vsub.f32 %v1730, %v1787
        %v1792 = vsub.f32 %v1780, %v1790
        %v1793 = vmul.f32 %v1791, 1.442695
        %v1794 = vpow.pop %v1793
        %v1795 = vmul.f32 %v1792, 1.442695
        %v1796 = vpow.pop %v1795
        %v1797 = vsel %vm1032, %v1794, 0.0
        %1798 = vadd.xlane.f32.xlu0 %v1797
        %v1799 = vpop.xlane.xlu0 %1798
        %v1800 = vsel %vm1032, %v1796, 0.0
        %1801 = vadd.xlane.f32.xlu0 %v1800
        %v1802 = vpop.xlane.xlu0 %1801
        %v1803 = vrcp.pop %v1799
        %v1804 = vrcp.pop %v1802
        %v1805 = vmul.f32 %v1794, %v1803
        %v1806 = vmul.f32 %v1796, %v1804
        %v1807 = vpack.c.bf16 %v1805, %v1805
        %v1808 = vpack.c.bf16 %v1806, %v1806
        %1809 = vrot.lane.b32.xlu0 %v1018, 104
        %v1810 = vpop.permute.xlu0 %1809
        %v1812 = vsel %vm1032, %v1807, 0
        %v1815 = vsel %vm1152, %v1810, 0
        %1817 = vmatprep.subr.bf16.mxu0 0
        %1818 = vmatpush1.bf16.msra.mxu0 %v1815
        %1819 = vmatprep.subr.bf16.mxu0 0
        %1820 = vmatpush1.bf16.msra.mxu0 0
        %1821 = vmatprep.subr.bf16.mxu0 0
        %1822 = vmatpush1.bf16.msra.mxu0 0
        %1823 = vmatprep.subr.bf16.mxu0 0
        %1824 = vmatpush1.bf16.msra.mxu0 0
        %1825 = vmatprep.subr.bf16.mxu0 0
        %1826 = vmatpush1.bf16.msra.mxu0 0
        %1827 = vmatprep.subr.bf16.mxu0 0
        %1828 = vmatpush1.bf16.msra.mxu0 0
        %1829 = vmatprep.subr.bf16.mxu0 0
        %1830 = vmatpush1.bf16.msra.mxu0 0
        %1831 = vmatprep.subr.bf16.mxu0 0
        %1832 = vmatpush1.bf16.msra.mxu0 0
        %1833 = vmatprep.subr.bf16.mxu0 0
        %1834 = vmatpush1.bf16.msra.mxu0 0
        %1835 = vmatprep.subr.bf16.mxu0 0
        %1836 = vmatpush1.bf16.msra.mxu0 0
        %1837 = vmatprep.subr.bf16.mxu0 0
        %1838 = vmatpush1.bf16.msra.mxu0 0
        %1839 = vmatprep.subr.bf16.mxu0 0
        %1840 = vmatpush1.bf16.msra.mxu0 0
        %1841 = vmatprep.subr.bf16.mxu0 0
        %1842 = vmatpush1.bf16.msra.mxu0 0
        %1843 = vmatprep.subr.bf16.mxu0 0
        %1844 = vmatpush1.bf16.msra.mxu0 0
        %1845 = vmatprep.subr.bf16.mxu0 0
        %1846 = vmatpush1.bf16.msra.mxu0 0
        %1847 = vmatprep.subr.bf16.mxu0 0
        %1848 = vmatpush1.bf16.msra.mxu0 0
        %1849 = vmatprep.mubr.bf16.mxu0 0
        %1850 = vmatmul.mubr.bf16.gmra.mrb[0].mxu0 %v1812
        %v1851 = vpop.f32.mrb[0].mxu0
        %v1852 = vadd.f32 0.0, %v1851
        %v1853 = vpop.f32.mrb[0].mxu0
        %v1854 = vpop.f32.mrb[0].mxu0
        %v1855 = vpop.f32.mrb[0].mxu0
        %1856 = vdwg.mxu0
        %1857 = vrot.lane.b32.xlu0 %v1019, 104
        %v1858 = vpop.permute.xlu0 %1857
        %v1860 = vsel %vm1032, %v1808, 0
        %v1863 = vsel %vm1152, %v1858, 0
        %1865 = vmatprep.subr.bf16.mxu0 0
        %1866 = vmatpush1.bf16.msra.mxu0 %v1863
        %1867 = vmatprep.subr.bf16.mxu0 0
        %1868 = vmatpush1.bf16.msra.mxu0 0
        %1869 = vmatprep.subr.bf16.mxu0 0
        %1870 = vmatpush1.bf16.msra.mxu0 0
        %1871 = vmatprep.subr.bf16.mxu0 0
        %1872 = vmatpush1.bf16.msra.mxu0 0
        %1873 = vmatprep.subr.bf16.mxu0 0
        %1874 = vmatpush1.bf16.msra.mxu0 0
        %1875 = vmatprep.subr.bf16.mxu0 0
        %1876 = vmatpush1.bf16.msra.mxu0 0
        %1877 = vmatprep.subr.bf16.mxu0 0
        %1878 = vmatpush1.bf16.msra.mxu0 0
        %1879 = vmatprep.subr.bf16.mxu0 0
        %1880 = vmatpush1.bf16.msra.mxu0 0
        %1881 = vmatprep.subr.bf16.mxu0 0
        %1882 = vmatpush1.bf16.msra.mxu0 0
        %1883 = vmatprep.subr.bf16.mxu0 0
        %1884 = vmatpush1.bf16.msra.mxu0 0
        %1885 = vmatprep.subr.bf16.mxu0 0
        %1886 = vmatpush1.bf16.msra.mxu0 0
        %1887 = vmatprep.subr.bf16.mxu0 0
        %1888 = vmatpush1.bf16.msra.mxu0 0
        %1889 = vmatprep.subr.bf16.mxu0 0
        %1890 = vmatpush1.bf16.msra.mxu0 0
        %1891 = vmatprep.subr.bf16.mxu0 0
        %1892 = vmatpush1.bf16.msra.mxu0 0
        %1893 = vmatprep.subr.bf16.mxu0 0
        %1894 = vmatpush1.bf16.msra.mxu0 0
        %1895 = vmatprep.subr.bf16.mxu0 0
        %1896 = vmatpush1.bf16.msra.mxu0 0
        %1897 = vmatprep.mubr.bf16.mxu0 0
        %1898 = vmatmul.mubr.bf16.gmra.mrb[0].mxu0 %v1860
        %v1899 = vpop.f32.mrb[0].mxu0
        %v1900 = vadd.f32 0.0, %v1899
        %v1901 = vpop.f32.mrb[0].mxu0
        %v1902 = vpop.f32.mrb[0].mxu0
        %v1903 = vpop.f32.mrb[0].mxu0
        %1904 = vdwg.mxu0
        %v1905 = vpack.c.bf16 %v1900, %v1852
        %1907 = vrot.lane.b32.xlu0 %v1463, 8
        %v1908 = vpop.permute.xlu0 %1907
        %1910 = vrot.lane.b32.xlu0 %v1684, 16
        %v1911 = vpop.permute.xlu0 %1910
        %1913 = vrot.lane.b32.xlu0 %v1905, 24
        %v1914 = vpop.permute.xlu0 %1913
        %v1917 = vsel %vm1032, %v1242, %v1908
        %vm1918 = vcmask 130048
        %v1920 = vsel %vm1918, %v1917, %v1911
        %vm1921 = vcmask 195584
        %v1923 = vsel %vm1921, %v1920, %v1914
        %v1924 = vld [vmem:[%s10] sm:$0xf]
        %v1925 = vld [vmem:[%s10 + $0x4] sm:$0xf]
        %v1926 = vld [vmem:[%s10 + $0x8] sm:$0xf]
        %v1927 = vld [vmem:[%s10 + $0xc] sm:$0xf]
        %v1928 = vld [vmem:[#allocation14] sm:$0x1]
        %v1930 = vlaneseq
        %v1931 = vshrl.u32 %v1930, 7
        %v1932 = vsub.s32 0, %v1931
        %v1933 = vrot.slane %v1928, %v1932
        %v1939 = vunpack.c.l.b16 %v1924
        %v1940 = vunpack.c.l.b16 %v1925
        %v1941 = vunpack.c.l.b16 %v1926
        %v1942 = vunpack.c.l.b16 %v1927
        %v1943 = vpack.c.b16 %v1940, %v1939
        %v1944 = vpack.c.b16 %v1942, %v1941
        %v1947 = vsel %vm746, %v1923, 0
        %1949 = vmatprep.subr.bf16.mxu0 0
        %1950 = vmatpush1.bf16.msra.mxu0 %v1943
        %1951 = vmatprep.subr.bf16.mxu0 0
        %1952 = vmatpush1.bf16.msra.mxu0 %v1944
        %1953 = vmatprep.subr.bf16.mxu0 0
        %1954 = vmatpush1.bf16.msra.mxu0 0
        %1955 = vmatprep.subr.bf16.mxu0 0
        %1956 = vmatpush1.bf16.msra.mxu0 0
        %1957 = vmatprep.subr.bf16.mxu0 0
        %1958 = vmatpush1.bf16.msra.mxu0 0
        %1959 = vmatprep.subr.bf16.mxu0 0
        %1960 = vmatpush1.bf16.msra.mxu0 0
        %1961 = vmatprep.subr.bf16.mxu0 0
        %1962 = vmatpush1.bf16.msra.mxu0 0
        %1963 = vmatprep.subr.bf16.mxu0 0
        %1964 = vmatpush1.bf16.msra.mxu0 0
        %1965 = vmatprep.subr.bf16.mxu0 0
        %1966 = vmatpush1.bf16.msra.mxu0 0
        %1967 = vmatprep.subr.bf16.mxu0 0
        %1968 = vmatpush1.bf16.msra.mxu0 0
        %1969 = vmatprep.subr.bf16.mxu0 0
        %1970 = vmatpush1.bf16.msra.mxu0 0
        %1971 = vmatprep.subr.bf16.mxu0 0
        %1972 = vmatpush1.bf16.msra.mxu0 0
        %1973 = vmatprep.subr.bf16.mxu0 0
        %1974 = vmatpush1.bf16.msra.mxu0 0
        %1975 = vmatprep.subr.bf16.mxu0 0
        %1976 = vmatpush1.bf16.msra.mxu0 0
        %1977 = vmatprep.subr.bf16.mxu0 0
        %1978 = vmatpush1.bf16.msra.mxu0 0
        %1979 = vmatprep.subr.bf16.mxu0 0
        %1980 = vmatpush1.bf16.msra.mxu0 0
        %1981 = vmatprep.mubr.bf16.mxu0 0
        %1982 = vmatmul.mubr.bf16.gmra.mrb[0].mxu0 %v1947
        %v1983 = vpop.f32.mrb[0].mxu0
        %v1984 = vadd.f32 %v1933, %v1983
        %v1985 = vpop.f32.mrb[0].mxu0
        %v1986 = vpop.f32.mrb[0].mxu0
        %v1987 = vadd.f32 %v1933, %v1986
        %v1988 = vpop.f32.mrb[0].mxu0
        %1989 = vdwg.mxu0
        %v1990 = vadd.f32 %v736, %v1984
        %v1991 = vadd.f32 %v737, %v1987
        %v1992 = vld [vmem:[#allocation16] sm:$0x1]
        %v1993 = vld [vmem:[#allocation17] sm:$0x1]
        %v1994 = vsel %vm746, %v1990, 0.0
        %1995 = vadd.xlane.f32.xlu0 %v1994
        %v1996 = vpop.xlane.xlu0 %1995
        %v1997 = vsel %vm746, %v1991, 0.0
        %1998 = vadd.xlane.f32.xlu0 %v1997
        %v1999 = vpop.xlane.xlu0 %1998
        %v2000 = vmul.f32 %v1996, %v753
        %v2001 = vmul.f32 %v1999, %v753
        %v2002 = vsub.f32 %v1990, %v2000
        %v2003 = vsub.f32 %v1991, %v2001
        %v2004 = vmul.f32 %v2002, %v2002
        %v2005 = vmul.f32 %v2003, %v2003
        %v2006 = vsel %vm746, %v2004, 0.0
        %2007 = vadd.xlane.f32.xlu0 %v2006
        %v2008 = vpop.xlane.xlu0 %2007
        %v2009 = vsel %vm746, %v2005, 0.0
        %2010 = vadd.xlane.f32.xlu0 %v2009
        %v2011 = vpop.xlane.xlu0 %2010
        %v2012 = vmul.f32 %v2008, 0.032258064
        %v2013 = vmul.f32 %v2011, 0.032258064
        %v2014 = vrsqrt.pop %v2012
        %v2015 = vmul.f32 %v2012, %v2014
        %vm2016 = vcmp.eq.f32.partialorder %v2012, inf
        %v2017 = vsel %vm2016, %v2012, %v2015
        %vm2018 = vcmp.eq.f32.partialorder %v2012, 0.0
        %v2019 = vand.u32 %v2012, 2147483648
        %v2020 = vsel %vm2018, %v2019, %v2017
        %v2021 = vrsqrt.pop %v2013
        %v2022 = vmul.f32 %v2013, %v2021
        %vm2023 = vcmp.eq.f32.partialorder %v2013, inf
        %v2024 = vsel %vm2023, %v2013, %v2022
        %vm2025 = vcmp.eq.f32.partialorder %v2013, 0.0
        %v2026 = vand.u32 %v2013, 2147483648
        %v2027 = vsel %vm2025, %v2026, %v2024
        %v2029 = vlaneseq
        %v2030 = vshrl.u32 %v2029, 7
        %v2031 = vsub.s32 0, %v2030
        %v2032 = vrot.slane %v1992, %v2031
        %v2034 = vmul.f32 %v2032, %v2002
        %v2035 = vmul.f32 %v2032, %v2003
        %v2036 = vadd.f32 %v2020, 1e-06
        %v2037 = vadd.f32 %v2027, 1e-06
        %v2038 = vrcp.pop %v2036
        %v2039 = vmul.f32 %v2034, %v2038
        %v2040 = vrcp.pop %v2037
        %v2041 = vmul.f32 %v2035, %v2040
        %v2043 = vlaneseq
        %v2044 = vshrl.u32 %v2043, 7
        %v2045 = vsub.s32 0, %v2044
        %v2046 = vrot.slane %v1993, %v2045
        %v2048 = vadd.f32 %v2039, %v2046
        %v2049 = vadd.f32 %v2041, %v2046
        %v2050 = vpack.c.bf16 %v2049, %v2048
        %v2051 = vld [vmem:[%s14] sm:$0xf]
        %v2052 = vld [vmem:[%s14 + $0x4] sm:$0xf]
        %v2053 = vld [vmem:[%s14 + $0x8] sm:$0xf]
        %v2054 = vld [vmem:[%s14 + $0xc] sm:$0xf]
        %v2055 = vld [vmem:[%s15] sm:$0x1]
        %v2057 = vlaneseq
        %v2058 = vshrl.u32 %v2057, 7
        %v2059 = vsub.s32 0, %v2058
        %v2060 = vrot.slane %v2055, %v2059
        %v2066 = vunpack.c.l.b16 %v2051
        %v2067 = vunpack.c.l.b16 %v2052
        %v2068 = vunpack.c.l.b16 %v2053
        %v2069 = vunpack.c.l.b16 %v2054
        %v2070 = vpack.c.b16 %v2067, %v2066
        %v2071 = vpack.c.b16 %v2069, %v2068
        %v2075 = vsel %vm746, %v2050, 0
        %2077 = vmatprep.subr.bf16.mxu0 0
        %2078 = vmatpush1.bf16.msra.mxu0 %v2070
        %2079 = vmatprep.subr.bf16.mxu0 0
        %2080 = vmatpush1.bf16.msra.mxu0 %v2071
        %2081 = vmatprep.subr.bf16.mxu0 0
        %2082 = vmatpush1.bf16.msra.mxu0 0
        %2083 = vmatprep.subr.bf16.mxu0 0
        %2084 = vmatpush1.bf16.msra.mxu0 0
        %2085 = vmatprep.subr.bf16.mxu0 0
        %2086 = vmatpush1.bf16.msra.mxu0 0
        %2087 = vmatprep.subr.bf16.mxu0 0
        %2088 = vmatpush1.bf16.msra.mxu0 0
        %2089 = vmatprep.subr.bf16.mxu0 0
        %2090 = vmatpush1.bf16.msra.mxu0 0
        %2091 = vmatprep.subr.bf16.mxu0 0
        %2092 = vmatpush1.bf16.msra.mxu0 0
        %2093 = vmatprep.subr.bf16.mxu0 0
        %2094 = vmatpush1.bf16.msra.mxu0 0
        %2095 = vmatprep.subr.bf16.mxu0 0
        %2096 = vmatpush1.bf16.msra.mxu0 0
        %2097 = vmatprep.subr.bf16.mxu0 0
        %2098 = vmatpush1.bf16.msra.mxu0 0
        %2099 = vmatprep.subr.bf16.mxu0 0
        %2100 = vmatpush1.bf16.msra.mxu0 0
        %2101 = vmatprep.subr.bf16.mxu0 0
        %2102 = vmatpush1.bf16.msra.mxu0 0
        %2103 = vmatprep.subr.bf16.mxu0 0
        %2104 = vmatpush1.bf16.msra.mxu0 0
        %2105 = vmatprep.subr.bf16.mxu0 0
        %2106 = vmatpush1.bf16.msra.mxu0 0
        %2107 = vmatprep.subr.bf16.mxu0 0
        %2108 = vmatpush1.bf16.msra.mxu0 0
        %2109 = vmatprep.mubr.bf16.mxu0 0
        %2110 = vmatmul.mubr.bf16.gmra.mrb[0].mxu0 %v2075
        %v2111 = vpop.f32.mrb[0].mxu0
        %v2112 = vadd.f32 %v2060, %v2111
        %v2113 = vpop.f32.mrb[0].mxu0
        %v2114 = vpop.f32.mrb[0].mxu0
        %v2115 = vadd.f32 %v2060, %v2114
        %v2116 = vpop.f32.mrb[0].mxu0
        %2117 = vdwg.mxu0
        %v2118 = vmax.f32 %v2112, 0.0
        %v2119 = vmax.f32 %v2115, 0.0
        %v2120 = vpack.c.bf16 %v2119, %v2118
        %v2121 = vld [vmem:[%s16] sm:$0xf]
        %v2122 = vld [vmem:[%s16 + $0x4] sm:$0xf]
        %v2123 = vld [vmem:[%s16 + $0x8] sm:$0xf]
        %v2124 = vld [vmem:[%s16 + $0xc] sm:$0xf]
        %v2125 = vld [vmem:[%s16 + $0x10] sm:$0xf]
        %v2126 = vld [vmem:[%s16 + $0x14] sm:$0xf]
        %v2127 = vld [vmem:[%s16 + $0x18] sm:$0xf]
        %v2128 = vld [vmem:[%s16 + $0x1c] sm:$0xf]
        %v2129 = vld [vmem:[%s17] sm:$0x1]
        %v2131 = vlaneseq
        %v2132 = vshrl.u32 %v2131, 7
        %v2133 = vsub.s32 0, %v2132
        %v2134 = vrot.slane %v2129, %v2133
        %v2144 = vunpack.c.l.b16 %v2121
        %v2145 = vunpack.c.l.b16 %v2122
        %v2146 = vunpack.c.l.b16 %v2123
        %v2147 = vunpack.c.l.b16 %v2124
        %v2148 = vunpack.c.l.b16 %v2125
        %v2149 = vunpack.c.l.b16 %v2126
        %v2150 = vunpack.c.l.b16 %v2127
        %v2151 = vunpack.c.l.b16 %v2128
        %v2152 = vpack.c.b16 %v2145, %v2144
        %v2153 = vpack.c.b16 %v2147, %v2146
        %v2154 = vpack.c.b16 %v2149, %v2148
        %v2155 = vpack.c.b16 %v2151, %v2150
        %vm2160 = vcmask 523264
        %v2162 = vsel %vm2160, %v2120, 0
        %2164 = vmatprep.subr.bf16.mxu0 0
        %2165 = vmatpush1.bf16.msra.mxu0 %v2152
        %2166 = vmatprep.subr.bf16.mxu0 0
        %2167 = vmatpush1.bf16.msra.mxu0 %v2153
        %2168 = vmatprep.subr.bf16.mxu0 0
        %2169 = vmatpush1.bf16.msra.mxu0 %v2154
        %2170 = vmatprep.subr.bf16.mxu0 0
        %2171 = vmatpush1.bf16.msra.mxu0 %v2155
        %2172 = vmatprep.subr.bf16.mxu0 0
        %2173 = vmatpush1.bf16.msra.mxu0 0
        %2174 = vmatprep.subr.bf16.mxu0 0
        %2175 = vmatpush1.bf16.msra.mxu0 0
        %2176 = vmatprep.subr.bf16.mxu0 0
        %2177 = vmatpush1.bf16.msra.mxu0 0
        %2178 = vmatprep.subr.bf16.mxu0 0
        %2179 = vmatpush1.bf16.msra.mxu0 0
        %2180 = vmatprep.subr.bf16.mxu0 0
        %2181 = vmatpush1.bf16.msra.mxu0 0
        %2182 = vmatprep.subr.bf16.mxu0 0
        %2183 = vmatpush1.bf16.msra.mxu0 0
        %2184 = vmatprep.subr.bf16.mxu0 0
        %2185 = vmatpush1.bf16.msra.mxu0 0
        %2186 = vmatprep.subr.bf16.mxu0 0
        %2187 = vmatpush1.bf16.msra.mxu0 0
        %2188 = vmatprep.subr.bf16.mxu0 0
        %2189 = vmatpush1.bf16.msra.mxu0 0
        %2190 = vmatprep.subr.bf16.mxu0 0
        %2191 = vmatpush1.bf16.msra.mxu0 0
        %2192 = vmatprep.subr.bf16.mxu0 0
        %2193 = vmatpush1.bf16.msra.mxu0 0
        %2194 = vmatprep.subr.bf16.mxu0 0
        %2195 = vmatpush1.bf16.msra.mxu0 0
        %2196 = vmatprep.mubr.bf16.mxu0 0
        %2197 = vmatmul.mubr.bf16.gmra.mrb[0].mxu0 %v2162
        %v2198 = vpop.f32.mrb[0].mxu0
        %v2199 = vadd.f32 %v2134, %v2198
        %v2200 = vpop.f32.mrb[0].mxu0
        %v2201 = vpop.f32.mrb[0].mxu0
        %v2202 = vadd.f32 %v2134, %v2201
        %v2203 = vpop.f32.mrb[0].mxu0
        %2204 = vdwg.mxu0
        %v2205 = vadd.f32 %v1990, %v2199
        %v2206 = vadd.f32 %v1991, %v2202
        %2207 = vst.msk [vmem:[%s726] sm:$0xff] %vm746, %v2205
        %2208 = vst.msk [vmem:[%s726 + $0x8] sm:$0xff] %vm746, %v2206
        %s2209 = sand.u32 %s436, 1
        %s2210 = scalar_lea.sflag [#allocation4], %s2209
        %s2211 = sand.u32 %s436, 1
        %s2212 = smul.addr %s2211, 16
        %s2213 = scalar_lea.vmem [#allocation19], %s2212
        // Predicated region
        $region133: #{tpu_custom_call.1} parent=91 // pred_check
          %p2214 = pneg %p446
        $region134: #{tpu_custom_call.1} parent=91 // pred_check_branch
          %2216 = sbr.rel (%p2214) target = $region136
        $region135: #{tpu_custom_call.1} parent=91 // pred_region
          %s2217 = smul.u32 2, %s40
          %s2219 = ssub.s32 256, 256
          %2220 = vsyncadd %s2210, %s2219
          %s2221 = smul.addr %s2217, 128
          %s2222 = scalar_lea.hbm %s18, %s2221
          %s2223 = sshll.u32 %s2213, 4
          %s2224 = int_to_ptr.vmem [resolvable:$true] %s2223
          %2229 = dma.vmem_to_hbm [thread:$0]  %s2224, 256, %s2222, %s2210, 128, 128, 8
        $region136: #{tpu_custom_call.1} parent=91 // pred_fallthru
          _
      $region92: #{tpu_custom_call.1} parent=5 // pred_fallthru
        _
      %p2230 = scmp.le.s32.totalorder 2, %s35
      // Predicated region
      $region137: #{tpu_custom_call.1} parent=5 // pred_check
        %p2231 = pneg %p2230
      $region138: #{tpu_custom_call.1} parent=5 // pred_check_branch
        %2233 = sbr.rel (%p2231) target = $region140
      $region139: #{tpu_custom_call.1} parent=5 // pred_region
        %s2234 = ssub.s32 %s35, 2
        // Predicated region
        $region141: #{tpu_custom_call.1} parent=139 // pred_check
          %p2235 = pneg %p452
        $region142: #{tpu_custom_call.1} parent=139 // pred_check_branch
          %2237 = sbr.rel (%p2235) target = $region144
        $region143: #{tpu_custom_call.1} parent=139 // pred_region
          %s2238 = sand.u32 %s437, 1
          %s2239 = scalar_lea.sflag [#allocation4], %s2238
          %s2240 = sand.u32 %s437, 1
          %s2241 = smul.addr %s2240, 16
          %s2242 = scalar_lea.vmem [#allocation19], %s2241
          %2243 = dma.done %s2239, 256
        $region144: #{tpu_custom_call.1} parent=139 // pred_fallthru
          _
      $region140: #{tpu_custom_call.1} parent=5 // pred_fallthru
        _
    $region6: #{tpu_custom_call.1} parent=1 // loop_footer
      %s39 = sadd.s32 1, %s35
    $region7: #{tpu_custom_call.1} parent=1 // loop_footer_branch
      %34 = sbr.rel target = $region3
    $region8: #{tpu_custom_call.1} parent=1 // loop_exit
      _
    %2244 = vsyncpa [#allocation3], 1
    %s2245 = scalar_lea.sflag [#allocation3], 1
    %2246 = vsyncpa %s2245, 1
    %2247 = vsyncpa [#allocation6], 1
    %2248 = vsyncpa [#allocation9], 1
    %2249 = vsyncpa [#allocation12], 1
    %2250 = vsyncpa [#allocation15], 1
    %2251 = vsyncpa [#allocation18], 1
    %2252 = vsyncpa [#allocation4], 1
    %s2253 = scalar_lea.sflag [#allocation4], 1
    %2254 = vsyncpa %s2253, 1

// kernel: tpu_custom_call.1
$region0: #{tpu_custom_call.1}
  #allocation0 [shape = 'u32[]', space=smem, size = 0x4, offset = 0x4, fixed_abs, tag = 'smem constant byte address 0x4 - core index']
  #allocation1 [shape = 'u32[144,128]{1,0:T(1,128)}', space=vmem, size = 0x12000, scoped, tag = 'internal scratch']
  %s0 = inlined_call_operand.vmem [shape: f32[32,32], index: 0, kind: input, shape index: {}]
  %s1 = inlined_call_operand.hbm [shape: f32[4,1,8], index: 1, kind: input, shape index: {}]
  %s2 = inlined_call_operand.vmem [shape: f32[1,32], index: 2, kind: input, shape index: {}]
  %s3 = inlined_call_operand.hbm [shape: f32[1,32], index: 3, kind: input, shape index: {}]
  %s4 = inlined_call_operand.vmem [shape: bf16[32,32], index: 4, kind: input, shape index: {}]
  %s5 = inlined_call_operand.hbm [shape: f32[1,32], index: 5, kind: input, shape index: {}]
  %s6 = inlined_call_operand.hbm [shape: bf16[32,32], index: 6, kind: input, shape index: {}]
  %s7 = inlined_call_operand.hbm [shape: f32[1,32], index: 7, kind: input, shape index: {}]
  %s8 = inlined_call_operand.hbm [shape: bf16[32,32], index: 8, kind: input, shape index: {}]
  %s9 = inlined_call_operand.hbm [shape: f32[1,32], index: 9, kind: input, shape index: {}]
  %s10 = inlined_call_operand.vmem [shape: bf16[32,32], index: 10, kind: input, shape index: {}]
  %s11 = inlined_call_operand.hbm [shape: f32[1,32], index: 11, kind: input, shape index: {}]
  %s12 = inlined_call_operand.hbm [shape: f32[1,32], index: 12, kind: input, shape index: {}]
  %s13 = inlined_call_operand.hbm [shape: f32[1,32], index: 13, kind: input, shape index: {}]
  %s14 = inlined_call_operand.vmem [shape: bf16[32,64], index: 14, kind: input, shape index: {}]
  %s15 = inlined_call_operand.vmem [shape: f32[1,64], index: 15, kind: input, shape index: {}]
  %s16 = inlined_call_operand.vmem [shape: bf16[64,32], index: 16, kind: input, shape index: {}]
  %s17 = inlined_call_operand.vmem [shape: f32[1,32], index: 17, kind: input, shape index: {}]
  %s18 = inlined_call_operand.hbm [shape: f32[32,32], index: 18, kind: output, shape index: {}]
  %s19 = sld [smem:[#allocation0]]
  $region145: #{tpu_custom_call.1} parent=0
    _
  %s21 = ssub.s32 1, %s19
  %s22 = scalar_select 0, %s21, %s19
  $region1: #{tpu_custom_call.1} parent=0
    #allocation2 [shape = 'u8[2048]{0}', space=vmem, size = 0x800, scoped, tag = 'input window, operand 1']
    #allocation3 [shape = 's32[2]{0}', space=sflag, size = 0x8, scoped, tag = 'scoped memory for tpu_custom_call.1']
    #allocation4 [shape = 's32[2]{0}', space=sflag, size = 0x8, scoped, tag = 'scoped memory for tpu_custom_call.1']
    #allocation5 [shape = 'u8[512]{0}', space=vmem, size = 0x400, scoped, tag = 'input window, operand 3, single buffered']
    #allocation6 [shape = 's32[1]{0}', space=sflag, size = 0x4, scoped, tag = 'scoped memory for tpu_custom_call.1']
    #allocation7 [shape = 'u8[512]{0}', space=vmem, size = 0x400, scoped, tag = 'input window, operand 5, single buffered']
    #allocation8 [shape = 'u8[8192]{0}', space=vmem, size = 0x2000, scoped, tag = 'input window, operand 6, single buffered']
    #allocation9 [shape = 's32[1]{0}', space=sflag, size = 0x4, scoped, tag = 'scoped memory for tpu_custom_call.1']
    #allocation10 [shape = 'u8[512]{0}', space=vmem, size = 0x400, scoped, tag = 'input window, operand 7, single buffered']
    #allocation11 [shape = 'u8[8192]{0}', space=vmem, size = 0x2000, scoped, tag = 'input window, operand 8, single buffered']
    #allocation12 [shape = 's32[1]{0}', space=sflag, size = 0x4, scoped, tag = 'scoped memory for tpu_custom_call.1']
    #allocation13 [shape = 'u8[512]{0}', space=vmem, size = 0x400, scoped, tag = 'input window, operand 9, single buffered']
    #allocation14 [shape = 'u8[512]{0}', space=vmem, size = 0x400, scoped, tag = 'input window, operand 11, single buffered']
    #allocation15 [shape = 's32[1]{0}', space=sflag, size = 0x4, scoped, tag = 'scoped memory for tpu_custom_call.1']
    #allocation16 [shape = 'u8[512]{0}', space=vmem, size = 0x400, scoped, tag = 'input window, operand 12, single buffered']
    #allocation17 [shape = 'u8[512]{0}', space=vmem, size = 0x400, scoped, tag = 'input window, operand 13, single buffered']
    #allocation18 [shape = 's32[1]{0}', space=sflag, size = 0x4, scoped, tag = 'scoped memory for tpu_custom_call.1']
    #allocation19 [shape = 'u8[16384]{0}', space=vmem, size = 0x4000, scoped, tag = 'output window, operand 0']
    %23 = vsyncpa [#allocation3], 0
    %s24 = scalar_lea.sflag [#allocation3], 1
    %25 = vsyncpa %s24, 0
    %26 = vsyncpa [#allocation6], 0
    %27 = vsyncpa [#allocation9], 0
    %28 = vsyncpa [#allocation12], 0
    %29 = vsyncpa [#allocation15], 0
    %30 = vsyncpa [#allocation18], 0
    %31 = vsyncpa [#allocation4], 0
    %s32 = scalar_lea.sflag [#allocation4], 1
    %33 = vsyncpa %s32, 0
    loop: start=0, step=1, limit=4
    $region2: #{tpu_custom_call.1} parent=1 // loop_pre_header
      _
    $region3: #{tpu_custom_call.1} parent=1 // loop_header
      %s35 = sphi 0, %s39
      %p36 = scmp.ge.s32.totalorder %s35, 4
      %s45 = sphi 0, %s47
      %s48 = sphi 0, %s45
      %s49 = sphi 0, %s48
      %s65 = sphi 0, %s49
      %s71 = sphi 0, %s73
      %s74 = sphi 0, %s71
      %s75 = sphi 0, %s74
      %s91 = sphi 0, %s75
      %s95 = sphi 0, %s95
      %s97 = sphi 0, %s95
      %s98 = sphi 0, %s97
      %s112 = sphi 0, %s98
      %s116 = sphi 0, %s116
      %s118 = sphi 0, %s116
      %s119 = sphi 0, %s118
      %s133 = sphi 0, %s119
      %s137 = sphi 0, %s137
      %s139 = sphi 0, %s137
      %s140 = sphi 0, %s139
      %s154 = sphi 0, %s140
      %s158 = sphi 0, %s158
      %s160 = sphi 0, %s158
      %s161 = sphi 0, %s160
      %s175 = sphi 0, %s161
      %s179 = sphi 0, %s179
      %s181 = sphi 0, %s179
      %s182 = sphi 0, %s181
      %s196 = sphi 0, %s182
      %s200 = sphi 0, %s200
      %s202 = sphi 0, %s200
      %s203 = sphi 0, %s202
      %s217 = sphi 0, %s203
      %s221 = sphi 0, %s221
      %s223 = sphi 0, %s221
      %s224 = sphi 0, %s223
      %s238 = sphi 0, %s224
      %s242 = sphi 0, %s242
      %s244 = sphi 0, %s242
      %s245 = sphi 0, %s244
      %s259 = sphi 0, %s245
      %s263 = sphi 0, %s263
      %s265 = sphi 0, %s263
      %s266 = sphi 0, %s265
      %s280 = sphi 0, %s266
      %s284 = sphi 0, %s284
      %s286 = sphi 0, %s284
      %s287 = sphi 0, %s286
      %s301 = sphi 0, %s287
      %s305 = sphi 0, %s305
      %s307 = sphi 0, %s305
      %s308 = sphi 0, %s307
      %s322 = sphi 0, %s308
      %s326 = sphi 0, %s326
      %s328 = sphi 0, %s326
      %s329 = sphi 0, %s328
      %s343 = sphi 0, %s329
      %s347 = sphi 0, %s347
      %s349 = sphi 0, %s347
      %s350 = sphi 0, %s349
      %s364 = sphi 0, %s350
      %s368 = sphi 0, %s368
      %s370 = sphi 0, %s368
      %s371 = sphi 0, %s370
      %s385 = sphi 0, %s371
      %s389 = sphi 0, %s389
      %s391 = sphi 0, %s389
      %s392 = sphi 0, %s391
      %s406 = sphi 0, %s392
      %s410 = sphi 0, %s410
      %s412 = sphi 0, %s410
      %s413 = sphi 0, %s412
      %s427 = sphi 0, %s413
      %s433 = sphi 0, %s435
      %s436 = sphi 0, %s433
      %s437 = sphi 0, %s436
      %s453 = sphi 0, %s437
    $region4: #{tpu_custom_call.1} parent=1 // loop_header_branch
      %38 = sbr.rel (%p36) target = $region8
    $region5: #{tpu_custom_call.1} parent=1 // loop_body
      %s40 = ssub.s32 %s35, 1
      %s41 = ssub.s32 %s35, 2
      %s42 = sadd.s32 %s35, 1
      %s43 = ssub.s32 %s35, %s42
      %p44 = scmp.eq.s32.totalorder %s43, 0
      %s46 = sadd.s32 %s45, 1
      %s47 = scalar_select %p44, %s45, %s46
      %p50 = pneg %p44
      %p51 = scmp.eq.s32.totalorder %s35, 1
      %p52 = por %p50, %p51
      %p53 = scmp.ne.s32.totalorder %s45, %s48
      %p54 = scmp.eq.s32.totalorder %s35, 0
      %p55 = por %p53, %p54
      %p56 = scmp.ne.s32.totalorder %s45, %s48
      %p57 = scmp.eq.s32.totalorder %s40, 1
      %p58 = por %p56, %p57
      %p59 = scmp.ne.s32.totalorder %s48, %s49
      %p60 = scmp.eq.s32.totalorder %s40, 0
      %p61 = por %p59, %p60
      %p62 = scmp.ne.s32.totalorder %s48, %s49
      %p63 = scmp.eq.s32.totalorder %s41, 1
      %p64 = por %p62, %p63
      %p66 = scmp.ne.s32.totalorder %s49, %s65
      %p67 = scmp.eq.s32.totalorder %s41, 0
      %p68 = por %p66, %p67
      %s69 = ssub.s32 %s35, %s42
      %p70 = scmp.eq.s32.totalorder %s69, 0
      %s72 = sadd.s32 %s71, 1
      %s73 = scalar_select %p70, %s71, %s72
      %p76 = pneg %p70
      %p77 = scmp.eq.s32.totalorder %s35, 1
      %p78 = por %p76, %p77
      %p79 = scmp.ne.s32.totalorder %s71, %s74
      %p80 = scmp.eq.s32.totalorder %s35, 0
      %p81 = por %p79, %p80
      %p82 = scmp.ne.s32.totalorder %s71, %s74
      %p83 = scmp.eq.s32.totalorder %s40, 1
      %p84 = por %p82, %p83
      %p85 = scmp.ne.s32.totalorder %s74, %s75
      %p86 = scmp.eq.s32.totalorder %s40, 0
      %p87 = por %p85, %p86
      %p88 = scmp.ne.s32.totalorder %s74, %s75
      %p89 = scmp.eq.s32.totalorder %s41, 1
      %p90 = por %p88, %p89
      %p92 = scmp.ne.s32.totalorder %s75, %s91
      %p93 = scmp.eq.s32.totalorder %s41, 0
      %p94 = por %p92, %p93
      %s96 = sadd.s32 %s95, 1
      %p99 = scmp.eq.s32.totalorder %s35, 1
      %p100 = scmp.ne.s32.totalorder %s95, %s97
      %p101 = scmp.eq.s32.totalorder %s35, 0
      %p102 = por %p100, %p101
      %p103 = scmp.ne.s32.totalorder %s95, %s97
      %p104 = scmp.eq.s32.totalorder %s40, 1
      %p105 = por %p103, %p104
      %p106 = scmp.ne.s32.totalorder %s97, %s98
      %p107 = scmp.eq.s32.totalorder %s40, 0
      %p108 = por %p106, %p107
      %p109 = scmp.ne.s32.totalorder %s97, %s98
      %p110 = scmp.eq.s32.totalorder %s41, 1
      %p111 = por %p109, %p110
      %p113 = scmp.ne.s32.totalorder %s98, %s112
      %p114 = scmp.eq.s32.totalorder %s41, 0
      %p115 = por %p113, %p114
      %s117 = sadd.s32 %s116, 1
      %p120 = scmp.eq.s32.totalorder %s35, 1
      %p121 = scmp.ne.s32.totalorder %s116, %s118
      %p122 = scmp.eq.s32.totalorder %s35, 0
      %p123 = por %p121, %p122
      %p124 = scmp.ne.s32.totalorder %s116, %s118
      %p125 = scmp.eq.s32.totalorder %s40, 1
      %p126 = por %p124, %p125
      %p127 = scmp.ne.s32.totalorder %s118, %s119
      %p128 = scmp.eq.s32.totalorder %s40, 0
      %p129 = por %p127, %p128
      %p130 = scmp.ne.s32.totalorder %s118, %s119
      %p131 = scmp.eq.s32.totalorder %s41, 1
      %p132 = por %p130, %p131
      %p134 = scmp.ne.s32.totalorder %s119, %s133
      %p135 = scmp.eq.s32.totalorder %s41, 0
      %p136 = por %p134, %p135
      %s138 = sadd.s32 %s137, 1
      %p141 = scmp.eq.s32.totalorder %s35, 1
      %p142 = scmp.ne.s32.totalorder %s137, %s139
      %p143 = scmp.eq.s32.totalorder %s35, 0
      %p144 = por %p142, %p143
      %p145 = scmp.ne.s32.totalorder %s137, %s139
      %p146 = scmp.eq.s32.totalorder %s40, 1
      %p147 = por %p145, %p146
      %p148 = scmp.ne.s32.totalorder %s139, %s140
      %p149 = scmp.eq.s32.totalorder %s40, 0
      %p150 = por %p148, %p149
      %p151 = scmp.ne.s32.totalorder %s139, %s140
      %p152 = scmp.eq.s32.totalorder %s41, 1
      %p153 = por %p151, %p152
      %p155 = scmp.ne.s32.totalorder %s140, %s154
      %p156 = scmp.eq.s32.totalorder %s41, 0
      %p157 = por %p155, %p156
      %s159 = sadd.s32 %s158, 1
      %p162 = scmp.eq.s32.totalorder %s35, 1
      %p163 = scmp.ne.s32.totalorder %s158, %s160
      %p164 = scmp.eq.s32.totalorder %s35, 0
      %p165 = por %p163, %p164
      %p166 = scmp.ne.s32.totalorder %s158, %s160
      %p167 = scmp.eq.s32.totalorder %s40, 1
      %p168 = por %p166, %p167
      %p169 = scmp.ne.s32.totalorder %s160, %s161
      %p170 = scmp.eq.s32.totalorder %s40, 0
      %p171 = por %p169, %p170
      %p172 = scmp.ne.s32.totalorder %s160, %s161
      %p173 = scmp.eq.s32.totalorder %s41, 1
      %p174 = por %p172, %p173
      %p176 = scmp.ne.s32.totalorder %s161, %s175
      %p177 = scmp.eq.s32.totalorder %s41, 0
      %p178 = por %p176, %p177
      %s180 = sadd.s32 %s179, 1
      %p183 = scmp.eq.s32.totalorder %s35, 1
      %p184 = scmp.ne.s32.totalorder %s179, %s181
      %p185 = scmp.eq.s32.totalorder %s35, 0
      %p186 = por %p184, %p185
      %p187 = scmp.ne.s32.totalorder %s179, %s181
      %p188 = scmp.eq.s32.totalorder %s40, 1
      %p189 = por %p187, %p188
      %p190 = scmp.ne.s32.totalorder %s181, %s182
      %p191 = scmp.eq.s32.totalorder %s40, 0
      %p192 = por %p190, %p191
      %p193 = scmp.ne.s32.totalorder %s181, %s182
      %p194 = scmp.eq.s32.totalorder %s41, 1
      %p195 = por %p193, %p194
      %p197 = scmp.ne.s32.totalorder %s182, %s196
      %p198 = scmp.eq.s32.totalorder %s41, 0
      %p199 = por %p197, %p198
      %s201 = sadd.s32 %s200, 1
      %p204 = scmp.eq.s32.totalorder %s35, 1
      %p205 = scmp.ne.s32.totalorder %s200, %s202
      %p206 = scmp.eq.s32.totalorder %s35, 0
      %p207 = por %p205, %p206
      %p208 = scmp.ne.s32.totalorder %s200, %s202
      %p209 = scmp.eq.s32.totalorder %s40, 1
      %p210 = por %p208, %p209
      %p211 = scmp.ne.s32.totalorder %s202, %s203
      %p212 = scmp.eq.s32.totalorder %s40, 0
      %p213 = por %p211, %p212
      %p214 = scmp.ne.s32.totalorder %s202, %s203
      %p215 = scmp.eq.s32.totalorder %s41, 1
      %p216 = por %p214, %p215
      %p218 = scmp.ne.s32.totalorder %s203, %s217
      %p219 = scmp.eq.s32.totalorder %s41, 0
      %p220 = por %p218, %p219
      %s222 = sadd.s32 %s221, 1
      %p225 = scmp.eq.s32.totalorder %s35, 1
      %p226 = scmp.ne.s32.totalorder %s221, %s223
      %p227 = scmp.eq.s32.totalorder %s35, 0
      %p228 = por %p226, %p227
      %p229 = scmp.ne.s32.totalorder %s221, %s223
      %p230 = scmp.eq.s32.totalorder %s40, 1
      %p231 = por %p229, %p230
      %p232 = scmp.ne.s32.totalorder %s223, %s224
      %p233 = scmp.eq.s32.totalorder %s40, 0
      %p234 = por %p232, %p233
      %p235 = scmp.ne.s32.totalorder %s223, %s224
      %p236 = scmp.eq.s32.totalorder %s41, 1
      %p237 = por %p235, %p236
      %p239 = scmp.ne.s32.totalorder %s224, %s238
      %p240 = scmp.eq.s32.totalorder %s41, 0
      %p241 = por %p239, %p240
      %s243 = sadd.s32 %s242, 1
      %p246 = scmp.eq.s32.totalorder %s35, 1
      %p247 = scmp.ne.s32.totalorder %s242, %s244
      %p248 = scmp.eq.s32.totalorder %s35, 0
      %p249 = por %p247, %p248
      %p250 = scmp.ne.s32.totalorder %s242, %s244
      %p251 = scmp.eq.s32.totalorder %s40, 1
      %p252 = por %p250, %p251
      %p253 = scmp.ne.s32.totalorder %s244, %s245
      %p254 = scmp.eq.s32.totalorder %s40, 0
      %p255 = por %p253, %p254
      %p256 = scmp.ne.s32.totalorder %s244, %s245
      %p257 = scmp.eq.s32.totalorder %s41, 1
      %p258 = por %p256, %p257
      %p260 = scmp.ne.s32.totalorder %s245, %s259
      %p261 = scmp.eq.s32.totalorder %s41, 0
      %p262 = por %p260, %p261
      %s264 = sadd.s32 %s263, 1
      %p267 = scmp.eq.s32.totalorder %s35, 1
      %p268 = scmp.ne.s32.totalorder %s263, %s265
      %p269 = scmp.eq.s32.totalorder %s35, 0
      %p270 = por %p268, %p269
      %p271 = scmp.ne.s32.totalorder %s263, %s265
      %p272 = scmp.eq.s32.totalorder %s40, 1
      %p273 = por %p271, %p272
      %p274 = scmp.ne.s32.totalorder %s265, %s266
      %p275 = scmp.eq.s32.totalorder %s40, 0
      %p276 = por %p274, %p275
      %p277 = scmp.ne.s32.totalorder %s265, %s266
      %p278 = scmp.eq.s32.totalorder %s41, 1
      %p279 = por %p277, %p278
      %p281 = scmp.ne.s32.totalorder %s266, %s280
      %p282 = scmp.eq.s32.totalorder %s41, 0
      %p283 = por %p281, %p282
      %s285 = sadd.s32 %s284, 1
      %p288 = scmp.eq.s32.totalorder %s35, 1
      %p289 = scmp.ne.s32.totalorder %s284, %s286
      %p290 = scmp.eq.s32.totalorder %s35, 0
      %p291 = por %p289, %p290
      %p292 = scmp.ne.s32.totalorder %s284, %s286
      %p293 = scmp.eq.s32.totalorder %s40, 1
      %p294 = por %p292, %p293
      %p295 = scmp.ne.s32.totalorder %s286, %s287
      %p296 = scmp.eq.s32.totalorder %s40, 0
      %p297 = por %p295, %p296
      %p298 = scmp.ne.s32.totalorder %s286, %s287
      %p299 = scmp.eq.s32.totalorder %s41, 1
      %p300 = por %p298, %p299
      %p302 = scmp.ne.s32.totalorder %s287, %s301
      %p303 = scmp.eq.s32.totalorder %s41, 0
      %p304 = por %p302, %p303
      %s306 = sadd.s32 %s305, 1
      %p309 = scmp.eq.s32.totalorder %s35, 1
      %p310 = scmp.ne.s32.totalorder %s305, %s307
      %p311 = scmp.eq.s32.totalorder %s35, 0
      %p312 = por %p310, %p311
      %p313 = scmp.ne.s32.totalorder %s305, %s307
      %p314 = scmp.eq.s32.totalorder %s40, 1
      %p315 = por %p313, %p314
      %p316 = scmp.ne.s32.totalorder %s307, %s308
      %p317 = scmp.eq.s32.totalorder %s40, 0
      %p318 = por %p316, %p317
      %p319 = scmp.ne.s32.totalorder %s307, %s308
      %p320 = scmp.eq.s32.totalorder %s41, 1
      %p321 = por %p319, %p320
      %p323 = scmp.ne.s32.totalorder %s308, %s322
      %p324 = scmp.eq.s32.totalorder %s41, 0
      %p325 = por %p323, %p324
      %s327 = sadd.s32 %s326, 1
      %p330 = scmp.eq.s32.totalorder %s35, 1
      %p331 = scmp.ne.s32.totalorder %s326, %s328
      %p332 = scmp.eq.s32.totalorder %s35, 0
      %p333 = por %p331, %p332
      %p334 = scmp.ne.s32.totalorder %s326, %s328
      %p335 = scmp.eq.s32.totalorder %s40, 1
      %p336 = por %p334, %p335
      %p337 = scmp.ne.s32.totalorder %s328, %s329
      %p338 = scmp.eq.s32.totalorder %s40, 0
      %p339 = por %p337, %p338
      %p340 = scmp.ne.s32.totalorder %s328, %s329
      %p341 = scmp.eq.s32.totalorder %s41, 1
      %p342 = por %p340, %p341
      %p344 = scmp.ne.s32.totalorder %s329, %s343
      %p345 = scmp.eq.s32.totalorder %s41, 0
      %p346 = por %p344, %p345
      %s348 = sadd.s32 %s347, 1
      %p351 = scmp.eq.s32.totalorder %s35, 1
      %p352 = scmp.ne.s32.totalorder %s347, %s349
      %p353 = scmp.eq.s32.totalorder %s35, 0
      %p354 = por %p352, %p353
      %p355 = scmp.ne.s32.totalorder %s347, %s349
      %p356 = scmp.eq.s32.totalorder %s40, 1
      %p357 = por %p355, %p356
      %p358 = scmp.ne.s32.totalorder %s349, %s350
      %p359 = scmp.eq.s32.totalorder %s40, 0
      %p360 = por %p358, %p359
      %p361 = scmp.ne.s32.totalorder %s349, %s350
      %p362 = scmp.eq.s32.totalorder %s41, 1
      %p363 = por %p361, %p362
      %p365 = scmp.ne.s32.totalorder %s350, %s364
      %p366 = scmp.eq.s32.totalorder %s41, 0
      %p367 = por %p365, %p366
      %s369 = sadd.s32 %s368, 1
      %p372 = scmp.eq.s32.totalorder %s35, 1
      %p373 = scmp.ne.s32.totalorder %s368, %s370
      %p374 = scmp.eq.s32.totalorder %s35, 0
      %p375 = por %p373, %p374
      %p376 = scmp.ne.s32.totalorder %s368, %s370
      %p377 = scmp.eq.s32.totalorder %s40, 1
      %p378 = por %p376, %p377
      %p379 = scmp.ne.s32.totalorder %s370, %s371
      %p380 = scmp.eq.s32.totalorder %s40, 0
      %p381 = por %p379, %p380
      %p382 = scmp.ne.s32.totalorder %s370, %s371
      %p383 = scmp.eq.s32.totalorder %s41, 1
      %p384 = por %p382, %p383
      %p386 = scmp.ne.s32.totalorder %s371, %s385
      %p387 = scmp.eq.s32.totalorder %s41, 0
      %p388 = por %p386, %p387
      %s390 = sadd.s32 %s389, 1
      %p393 = scmp.eq.s32.totalorder %s35, 1
      %p394 = scmp.ne.s32.totalorder %s389, %s391
      %p395 = scmp.eq.s32.totalorder %s35, 0
      %p396 = por %p394, %p395
      %p397 = scmp.ne.s32.totalorder %s389, %s391
      %p398 = scmp.eq.s32.totalorder %s40, 1
      %p399 = por %p397, %p398
      %p400 = scmp.ne.s32.totalorder %s391, %s392
      %p401 = scmp.eq.s32.totalorder %s40, 0
      %p402 = por %p400, %p401
      %p403 = scmp.ne.s32.totalorder %s391, %s392
      %p404 = scmp.eq.s32.totalorder %s41, 1
      %p405 = por %p403, %p404
      %p407 = scmp.ne.s32.totalorder %s392, %s406
      %p408 = scmp.eq.s32.totalorder %s41, 0
      %p409 = por %p407, %p408
      %s411 = sadd.s32 %s410, 1
      %p414 = scmp.eq.s32.totalorder %s35, 1
      %p415 = scmp.ne.s32.totalorder %s410, %s412
      %p416 = scmp.eq.s32.totalorder %s35, 0
      %p417 = por %p415, %p416
      %p418 = scmp.ne.s32.totalorder %s410, %s412
      %p419 = scmp.eq.s32.totalorder %s40, 1
      %p420 = por %p418, %p419
      %p421 = scmp.ne.s32.totalorder %s412, %s413
      %p422 = scmp.eq.s32.totalorder %s40, 0
      %p423 = por %p421, %p422
      %p424 = scmp.ne.s32.totalorder %s412, %s413
      %p425 = scmp.eq.s32.totalorder %s41, 1
      %p426 = por %p424, %p425
      %p428 = scmp.ne.s32.totalorder %s413, %s427
      %p429 = scmp.eq.s32.totalorder %s41, 0
      %p430 = por %p428, %p429
      %s431 = ssub.s32 %s35, %s42
      %p432 = scmp.eq.s32.totalorder %s431, 0
      %s434 = sadd.s32 %s433, 1
      %s435 = scalar_select %p432, %s433, %s434
      %p438 = pneg %p432
      %p439 = scmp.eq.s32.totalorder %s35, 1
      %p440 = por %p438, %p439
      %p441 = scmp.ne.s32.totalorder %s433, %s436
      %p442 = scmp.eq.s32.totalorder %s35, 0
      %p443 = por %p441, %p442
      %p444 = scmp.ne.s32.totalorder %s433, %s436
      %p445 = scmp.eq.s32.totalorder %s40, 1
      %p446 = por %p444, %p445
      %p447 = scmp.ne.s32.totalorder %s436, %s437
      %p448 = scmp.eq.s32.totalorder %s40, 0
      %p449 = por %p447, %p448
      %p450 = scmp.ne.s32.totalorder %s436, %s437
      %p451 = scmp.eq.s32.totalorder %s41, 1
      %p452 = por %p450, %p451
      %p454 = scmp.ne.s32.totalorder %s437, %s453
      %p455 = scmp.eq.s32.totalorder %s41, 0
      %p456 = por %p454, %p455
      %p457 = scmp.le.s32.totalorder 1, %s35
      %p458 = scmp.lt.s32.totalorder %s35, 3
      %p459 = pnand %p457, %p458
      %p460 = pneg %p459
      // Predicated region
      $region9: #{tpu_custom_call.1} parent=5 // pred_check
        _
      $region10: #{tpu_custom_call.1} parent=5 // pred_check_branch
        %462 = sbr.rel (%p459) target = $region12
      $region11: #{tpu_custom_call.1} parent=5 // pred_region
        %s463 = ssub.s32 %s35, 1
        // Predicated region
        $region13: #{tpu_custom_call.1} parent=11 // pred_check
          %p464 = pneg %p108
        $region14: #{tpu_custom_call.1} parent=11 // pred_check_branch
          %466 = sbr.rel (%p464) target = $region16
        $region15: #{tpu_custom_call.1} parent=11 // pred_region
          _
        $region16: #{tpu_custom_call.1} parent=11 // pred_fallthru
          _
        // Predicated region
        $region17: #{tpu_custom_call.1} parent=11 // pred_check
          %p467 = pneg %p129
        $region18: #{tpu_custom_call.1} parent=11 // pred_check_branch
          %469 = sbr.rel (%p467) target = $region20
        $region19: #{tpu_custom_call.1} parent=11 // pred_region
          %s471 = ssub.s32 16, 16
          %472 = vsyncadd [#allocation6], %s471
          %s474 = sshll.u32 [#allocation5], 4
          %s475 = int_to_ptr.vmem [resolvable:$true] %s474
          %477 = dma.hbm_to_vmem [thread:$0]  %s3, 16, %s475, [#allocation6]
        $region20: #{tpu_custom_call.1} parent=11 // pred_fallthru
          _
        // Predicated region
        $region21: #{tpu_custom_call.1} parent=11 // pred_check
          %p478 = pneg %p150
        $region22: #{tpu_custom_call.1} parent=11 // pred_check_branch
          %480 = sbr.rel (%p478) target = $region24
        $region23: #{tpu_custom_call.1} parent=11 // pred_region
          _
        $region24: #{tpu_custom_call.1} parent=11 // pred_fallthru
          _
        // Predicated region
        $region25: #{tpu_custom_call.1} parent=11 // pred_check
          %p481 = pneg %p171
        $region26: #{tpu_custom_call.1} parent=11 // pred_check_branch
          %483 = sbr.rel (%p481) target = $region28
        $region27: #{tpu_custom_call.1} parent=11 // pred_region
          %s485 = ssub.s32 16, 16
          %486 = vsyncadd [#allocation6], %s485
          %s488 = sshll.u32 [#allocation7], 4
          %s489 = int_to_ptr.vmem [resolvable:$true] %s488
          %491 = dma.hbm_to_vmem [thread:$0]  %s5, 16, %s489, [#allocation6]
        $region28: #{tpu_custom_call.1} parent=11 // pred_fallthru
          _
        // Predicated region
        $region29: #{tpu_custom_call.1} parent=11 // pred_check
          %p492 = pneg %p192
        $region30: #{tpu_custom_call.1} parent=11 // pred_check_branch
          %494 = sbr.rel (%p492) target = $region32
        $region31: #{tpu_custom_call.1} parent=11 // pred_region
          %s496 = ssub.s32 256, 256
          %497 = vsyncadd [#allocation9], %s496
          %s498 = sshll.u32 [#allocation8], 4
          %s499 = int_to_ptr.vmem [resolvable:$true] %s498
          %504 = dma.hbm_to_vmem [thread:$0]  %s6, 256, %s499, [#allocation9], 64, 64, 4
        $region32: #{tpu_custom_call.1} parent=11 // pred_fallthru
          _
        // Predicated region
        $region33: #{tpu_custom_call.1} parent=11 // pred_check
          %p505 = pneg %p213
        $region34: #{tpu_custom_call.1} parent=11 // pred_check_branch
          %507 = sbr.rel (%p505) target = $region36
        $region35: #{tpu_custom_call.1} parent=11 // pred_region
          %s509 = ssub.s32 16, 16
          %510 = vsyncadd [#allocation9], %s509
          %s512 = sshll.u32 [#allocation10], 4
          %s513 = int_to_ptr.vmem [resolvable:$true] %s512
          %515 = dma.hbm_to_vmem [thread:$0]  %s7, 16, %s513, [#allocation9]
        $region36: #{tpu_custom_call.1} parent=11 // pred_fallthru
          _
        // Predicated region
        $region37: #{tpu_custom_call.1} parent=11 // pred_check
          %p516 = pneg %p234
        $region38: #{tpu_custom_call.1} parent=11 // pred_check_branch
          %518 = sbr.rel (%p516) target = $region40
        $region39: #{tpu_custom_call.1} parent=11 // pred_region
          %s520 = ssub.s32 256, 256
          %521 = vsyncadd [#allocation12], %s520
          %s522 = sshll.u32 [#allocation11], 4
          %s523 = int_to_ptr.vmem [resolvable:$true] %s522
          %528 = dma.hbm_to_vmem [thread:$0]  %s8, 256, %s523, [#allocation12], 64, 64, 4
        $region40: #{tpu_custom_call.1} parent=11 // pred_fallthru
          _
        // Predicated region
        $region41: #{tpu_custom_call.1} parent=11 // pred_check
          %p529 = pneg %p255
        $region42: #{tpu_custom_call.1} parent=11 // pred_check_branch
          %531 = sbr.rel (%p529) target = $region44
        $region43: #{tpu_custom_call.1} parent=11 // pred_region
          %s533 = ssub.s32 16, 16
          %534 = vsyncadd [#allocation12], %s533
          %s536 = sshll.u32 [#allocation13], 4
          %s537 = int_to_ptr.vmem [resolvable:$true] %s536
          %539 = dma.hbm_to_vmem [thread:$0]  %s9, 16, %s537, [#allocation12]
        $region44: #{tpu_custom_call.1} parent=11 // pred_fallthru
          _
        // Predicated region
        $region45: #{tpu_custom_call.1} parent=11 // pred_check
          %p540 = pneg %p276
        $region46: #{tpu_custom_call.1} parent=11 // pred_check_branch
          %542 = sbr.rel (%p540) target = $region48
        $region47: #{tpu_custom_call.1} parent=11 // pred_region
          _
        $region48: #{tpu_custom_call.1} parent=11 // pred_fallthru
          _
        // Predicated region
        $region49: #{tpu_custom_call.1} parent=11 // pred_check
          %p543 = pneg %p297
        $region50: #{tpu_custom_call.1} parent=11 // pred_check_branch
          %545 = sbr.rel (%p543) target = $region52
        $region51: #{tpu_custom_call.1} parent=11 // pred_region
          %s547 = ssub.s32 16, 16
          %548 = vsyncadd [#allocation15], %s547
          %s550 = sshll.u32 [#allocation14], 4
          %s551 = int_to_ptr.vmem [resolvable:$true] %s550
          %553 = dma.hbm_to_vmem [thread:$0]  %s11, 16, %s551, [#allocation15]
        $region52: #{tpu_custom_call.1} parent=11 // pred_fallthru
          _
        // Predicated region
        $region53: #{tpu_custom_call.1} parent=11 // pred_check
          %p554 = pneg %p318
        $region54: #{tpu_custom_call.1} parent=11 // pred_check_branch
          %556 = sbr.rel (%p554) target = $region56
        $region55: #{tpu_custom_call.1} parent=11 // pred_region
          %s558 = ssub.s32 16, 16
          %559 = vsyncadd [#allocation15], %s558
          %s561 = sshll.u32 [#allocation16], 4
          %s562 = int_to_ptr.vmem [resolvable:$true] %s561
          %564 = dma.hbm_to_vmem [thread:$0]  %s12, 16, %s562, [#allocation15]
        $region56: #{tpu_custom_call.1} parent=11 // pred_fallthru
          _
        // Predicated region
        $region57: #{tpu_custom_call.1} parent=11 // pred_check
          %p565 = pneg %p339
        $region58: #{tpu_custom_call.1} parent=11 // pred_check_branch
          %567 = sbr.rel (%p565) target = $region60
        $region59: #{tpu_custom_call.1} parent=11 // pred_region
          %s569 = ssub.s32 16, 16
          %570 = vsyncadd [#allocation18], %s569
          %s572 = sshll.u32 [#allocation17], 4
          %s573 = int_to_ptr.vmem [resolvable:$true] %s572
          %575 = dma.hbm_to_vmem [thread:$0]  %s13, 16, %s573, [#allocation18]
        $region60: #{tpu_custom_call.1} parent=11 // pred_fallthru
          _
        // Predicated region
        $region61: #{tpu_custom_call.1} parent=11 // pred_check
          %p576 = pneg %p360
        $region62: #{tpu_custom_call.1} parent=11 // pred_check_branch
          %578 = sbr.rel (%p576) target = $region64
        $region63: #{tpu_custom_call.1} parent=11 // pred_region
          _
        $region64: #{tpu_custom_call.1} parent=11 // pred_fallthru
          _
        // Predicated region
        $region65: #{tpu_custom_call.1} parent=11 // pred_check
          %p579 = pneg %p381
        $region66: #{tpu_custom_call.1} parent=11 // pred_check_branch
          %581 = sbr.rel (%p579) target = $region68
        $region67: #{tpu_custom_call.1} parent=11 // pred_region
          _
        $region68: #{tpu_custom_call.1} parent=11 // pred_fallthru
          _
        // Predicated region
        $region69: #{tpu_custom_call.1} parent=11 // pred_check
          %p582 = pneg %p402
        $region70: #{tpu_custom_call.1} parent=11 // pred_check_branch
          %584 = sbr.rel (%p582) target = $region72
        $region71: #{tpu_custom_call.1} parent=11 // pred_region
          _
        $region72: #{tpu_custom_call.1} parent=11 // pred_fallthru
          _
        // Predicated region
        $region73: #{tpu_custom_call.1} parent=11 // pred_check
          %p585 = pneg %p423
        $region74: #{tpu_custom_call.1} parent=11 // pred_check_branch
          %587 = sbr.rel (%p585) target = $region76
        $region75: #{tpu_custom_call.1} parent=11 // pred_region
          _
        $region76: #{tpu_custom_call.1} parent=11 // pred_fallthru
          _
      $region12: #{tpu_custom_call.1} parent=5 // pred_fallthru
        _
      %p588 = scmp.lt.s32.totalorder %s35, 2
      // Predicated region
      $region77: #{tpu_custom_call.1} parent=5 // pred_check
        %p589 = pneg %p588
      $region78: #{tpu_custom_call.1} parent=5 // pred_check_branch
        %591 = sbr.rel (%p589) target = $region80
      $region79: #{tpu_custom_call.1} parent=5 // pred_region
        // Predicated region
        $region81: #{tpu_custom_call.1} parent=79 // pred_check
          %p592 = pneg %p55
        $region82: #{tpu_custom_call.1} parent=79 // pred_check_branch
          %594 = sbr.rel (%p592) target = $region84
        $region83: #{tpu_custom_call.1} parent=79 // pred_region
          %s595 = smul.u32 2, %s35
          %p596 = scmp.lt.s32.totalorder %s595, 3
          %s597 = scalar_select %p596, %s595, 3
          %s598 = smul.addr %s597, 8
          %s599 = scalar_lea.vmem %s0, %s598
          %s600 = smul.u32 2, %s35
        $region84: #{tpu_custom_call.1} parent=79 // pred_fallthru
          _
        // Predicated region
        $region85: #{tpu_custom_call.1} parent=79 // pred_check
          %p601 = pneg %p81
        $region86: #{tpu_custom_call.1} parent=79 // pred_check_branch
          %603 = sbr.rel (%p601) target = $region88
        $region87: #{tpu_custom_call.1} parent=79 // pred_region
          %s604 = sand.u32 %s71, 1
          %s605 = scalar_lea.sflag [#allocation3], %s604
          %s606 = sand.u32 %s71, 1
          %s607 = smul.addr %s606, 2
          %s608 = scalar_lea.vmem [#allocation2], %s607
          %s609 = smul.u32 2, %s35
          %s611 = ssub.s32 32, 32
          %612 = vsyncadd %s605, %s611
          %s613 = smul.addr %s609, 16
          %s614 = scalar_lea.hbm %s1, %s613
          %s615 = sshll.u32 %s608, 4
          %s616 = int_to_ptr.vmem [resolvable:$true] %s615
          %621 = dma.hbm_to_vmem [thread:$0]  %s614, 32, %s616, %s605, 16, 16, 1
        $region88: #{tpu_custom_call.1} parent=79 // pred_fallthru
          _
      $region80: #{tpu_custom_call.1} parent=5 // pred_fallthru
        _
      %p622 = scmp.le.s32.totalorder 1, %s35
      %p623 = scmp.lt.s32.totalorder %s35, 3
      %p624 = pnand %p622, %p623
      %p625 = pneg %p624
      // Predicated region
      $region89: #{tpu_custom_call.1} parent=5 // pred_check
        _
      $region90: #{tpu_custom_call.1} parent=5 // pred_check_branch
        %627 = sbr.rel (%p624) target = $region92
      $region91: #{tpu_custom_call.1} parent=5 // pred_region
        %s628 = ssub.s32 %s35, 1
        %s629 = sand.u32 %s74, 1
        %s630 = scalar_lea.sflag [#allocation3], %s629
        %s631 = sand.u32 %s74, 1
        %s632 = smul.addr %s631, 2
        %s633 = scalar_lea.vmem [#allocation2], %s632
        // Predicated region
        $region93: #{tpu_custom_call.1} parent=91 // pred_check
          %p634 = pneg %p87
        $region94: #{tpu_custom_call.1} parent=91 // pred_check_branch
          %636 = sbr.rel (%p634) target = $region96
        $region95: #{tpu_custom_call.1} parent=91 // pred_region
          %637 = dma.done %s630, 32
        $region96: #{tpu_custom_call.1} parent=91 // pred_fallthru
          _
        // Predicated region
        $region97: #{tpu_custom_call.1} parent=91 // pred_check
          %p638 = pneg %p129
        $region98: #{tpu_custom_call.1} parent=91 // pred_check_branch
          %640 = sbr.rel (%p638) target = $region100
        $region99: #{tpu_custom_call.1} parent=91 // pred_region
          %641 = dma.done [#allocation6], 16
        $region100: #{tpu_custom_call.1} parent=91 // pred_fallthru
          _
        // Predicated region
        $region101: #{tpu_custom_call.1} parent=91 // pred_check
          %p642 = pneg %p171
        $region102: #{tpu_custom_call.1} parent=91 // pred_check_branch
          %644 = sbr.rel (%p642) target = $region104
        $region103: #{tpu_custom_call.1} parent=91 // pred_region
          %645 = dma.done [#allocation6], 16
        $region104: #{tpu_custom_call.1} parent=91 // pred_fallthru
          _
        // Predicated region
        $region105: #{tpu_custom_call.1} parent=91 // pred_check
          %p646 = pneg %p192
        $region106: #{tpu_custom_call.1} parent=91 // pred_check_branch
          %648 = sbr.rel (%p646) target = $region108
        $region107: #{tpu_custom_call.1} parent=91 // pred_region
          %649 = dma.done [#allocation9], 256
        $region108: #{tpu_custom_call.1} parent=91 // pred_fallthru
          _
        // Predicated region
        $region109: #{tpu_custom_call.1} parent=91 // pred_check
          %p650 = pneg %p213
        $region110: #{tpu_custom_call.1} parent=91 // pred_check_branch
          %652 = sbr.rel (%p650) target = $region112
        $region111: #{tpu_custom_call.1} parent=91 // pred_region
          %653 = dma.done [#allocation9], 16
        $region112: #{tpu_custom_call.1} parent=91 // pred_fallthru
          _
        // Predicated region
        $region113: #{tpu_custom_call.1} parent=91 // pred_check
          %p654 = pneg %p234
        $region114: #{tpu_custom_call.1} parent=91 // pred_check_branch
          %656 = sbr.rel (%p654) target = $region116
        $region115: #{tpu_custom_call.1} parent=91 // pred_region
          %657 = dma.done [#allocation12], 256
        $region116: #{tpu_custom_call.1} parent=91 // pred_fallthru
          _
        // Predicated region
        $region117: #{tpu_custom_call.1} parent=91 // pred_check
          %p658 = pneg %p255
        $region118: #{tpu_custom_call.1} parent=91 // pred_check_branch
          %660 = sbr.rel (%p658) target = $region120
        $region119: #{tpu_custom_call.1} parent=91 // pred_region
          %661 = dma.done [#allocation12], 16
        $region120: #{tpu_custom_call.1} parent=91 // pred_fallthru
          _
        // Predicated region
        $region121: #{tpu_custom_call.1} parent=91 // pred_check
          %p662 = pneg %p297
        $region122: #{tpu_custom_call.1} parent=91 // pred_check_branch
          %664 = sbr.rel (%p662) target = $region124
        $region123: #{tpu_custom_call.1} parent=91 // pred_region
          %665 = dma.done [#allocation15], 16
        $region124: #{tpu_custom_call.1} parent=91 // pred_fallthru
          _
        // Predicated region
        $region125: #{tpu_custom_call.1} parent=91 // pred_check
          %p666 = pneg %p318
        $region126: #{tpu_custom_call.1} parent=91 // pred_check_branch
          %668 = sbr.rel (%p666) target = $region128
        $region127: #{tpu_custom_call.1} parent=91 // pred_region
          %669 = dma.done [#allocation15], 16
        $region128: #{tpu_custom_call.1} parent=91 // pred_fallthru
          _
        // Predicated region
        $region129: #{tpu_custom_call.1} parent=91 // pred_check
          %p670 = pneg %p339
        $region130: #{tpu_custom_call.1} parent=91 // pred_check_branch
          %672 = sbr.rel (%p670) target = $region132
        $region131: #{tpu_custom_call.1} parent=91 // pred_region
          %673 = dma.done [#allocation18], 16
        $region132: #{tpu_custom_call.1} parent=91 // pred_fallthru
          _
        %s674 = smul.u32 2, %s40
        %p675 = scmp.lt.s32.totalorder %s674, 3
        %s676 = scalar_select %p675, %s674, 3
        %s677 = smul.addr %s676, 8
        %s678 = scalar_lea.vmem %s0, %s677
        %p679 = pneg %p61
        %p680 = pneg %p58
        %s681 = sand.u32 %s74, 1
        %s682 = scalar_lea.sflag [#allocation3], %s681
        %s683 = sand.u32 %s74, 1
        %s684 = smul.addr %s683, 2
        %s685 = scalar_lea.vmem [#allocation2], %s684
        %p686 = pneg %p87
        %p687 = pneg %p84
        %p688 = pneg %p108
        %p689 = pneg %p105
        %p690 = pneg %p129
        %p691 = pneg %p126
        %p692 = pneg %p150
        %p693 = pneg %p147
        %p694 = pneg %p171
        %p695 = pneg %p168
        %p696 = pneg %p192
        %p697 = pneg %p189
        %p698 = pneg %p213
        %p699 = pneg %p210
        %p700 = pneg %p234
        %p701 = pneg %p231
        %p702 = pneg %p255
        %p703 = pneg %p252
        %p704 = pneg %p276
        %p705 = pneg %p273
        %p706 = pneg %p297
        %p707 = pneg %p294
        %p708 = pneg %p318
        %p709 = pneg %p315
        %p710 = pneg %p339
        %p711 = pneg %p336
        %p712 = pneg %p360
        %p713 = pneg %p357
        %p714 = pneg %p381
        %p715 = pneg %p378
        %p716 = pneg %p402
        %p717 = pneg %p399
        %p718 = pneg %p423
        %p719 = pneg %p420
        %p720 = pneg %p449
        %p721 = pneg %p446
        %s722 = sand.u32 %s436, 1
        %s723 = scalar_lea.sflag [#allocation4], %s722
        %s724 = sand.u32 %s436, 1
        %s725 = smul.addr %s724, 16
        %s726 = scalar_lea.vmem [#allocation19], %s725
        %s727 = smul.u32 2, %s40
        %p728 = scmp.lt.s32.totalorder %s727, 3
        %s729 = scalar_select %p728, %s727, 3
        %s730 = smul.addr %s729, 8
        %s731 = scalar_lea.vmem %s0, %s730
        %s732 = smul.u32 2, %s40
        %s733 = smul.u32 2, %s40
        %s734 = smul.u32 2, %s40
        %v736 = vld [vmem:[%s731] sm:$0xff]
        %v737 = vld [vmem:[%s731 + $0x8] sm:$0xff]
        %v738 = vld [vmem:[%s633] sm:$0x1]
        %v739 = vld [vmem:[%s633 + $0x1] sm:$0x1]
        %vm740 = vcmp.eq.f32.partialorder %v738, 0.0
        %vm741 = vcmp.eq.f32.partialorder %v739, 0.0
        %v742 = vsel %vm740, -1e+09, 0.0
        %v743 = vsel %vm741, -1e+09, 0.0
        %v744 = vld [vmem:[%s2] sm:$0x1]
        %v745 = vld [vmem:[#allocation5] sm:$0x1]
        %vm746 = vcmask 261120
        %v747 = vsel %vm746, %v736, 0.0
        %748 = vadd.xlane.f32.xlu0 %v747
        %v749 = vpop.xlane.xlu0 %748
        %v750 = vsel %vm746, %v737, 0.0
        %751 = vadd.xlane.f32.xlu0 %v750
        %v752 = vpop.xlane.xlu0 %751
        %v753 = vrcp.pop 32.0
        %v754 = vmul.f32 %v749, %v753
        %v755 = vmul.f32 %v752, %v753
        %v756 = vsub.f32 %v736, %v754
        %v757 = vsub.f32 %v737, %v755
        %v758 = vmul.f32 %v756, %v756
        %v759 = vmul.f32 %v757, %v757
        %v760 = vsel %vm746, %v758, 0.0
        %761 = vadd.xlane.f32.xlu0 %v760
        %v762 = vpop.xlane.xlu0 %761
        %v763 = vsel %vm746, %v759, 0.0
        %764 = vadd.xlane.f32.xlu0 %v763
        %v765 = vpop.xlane.xlu0 %764
        %v766 = vmul.f32 %v762, 0.032258064
        %v767 = vmul.f32 %v765, 0.032258064
        %v768 = vrsqrt.pop %v766
        %v769 = vmul.f32 %v766, %v768
        %vm770 = vcmp.eq.f32.partialorder %v766, inf
        %v771 = vsel %vm770, %v766, %v769
        %vm772 = vcmp.eq.f32.partialorder %v766, 0.0
        %v773 = vand.u32 %v766, 2147483648
        %v774 = vsel %vm772, %v773, %v771
        %v775 = vrsqrt.pop %v767
        %v776 = vmul.f32 %v767, %v775
        %vm777 = vcmp.eq.f32.partialorder %v767, inf
        %v778 = vsel %vm777, %v767, %v776
        %vm779 = vcmp.eq.f32.partialorder %v767, 0.0
        %v780 = vand.u32 %v767, 2147483648
        %v781 = vsel %vm779, %v780, %v778
        %v783 = vlaneseq
        %v784 = vshrl.u32 %v783, 7
        %v785 = vsub.s32 0, %v784
        %v786 = vrot.slane %v744, %v785
        %v788 = vmul.f32 %v786, %v756
        %v789 = vmul.f32 %v786, %v757
        %v790 = vadd.f32 %v774, 1e-06
        %v791 = vadd.f32 %v781, 1e-06
        %v792 = vrcp.pop %v790
        %v793 = vmul.f32 %v788, %v792
        %v794 = vrcp.pop %v791
        %v795 = vmul.f32 %v789, %v794
        %v797 = vlaneseq
        %v798 = vshrl.u32 %v797, 7
        %v799 = vsub.s32 0, %v798
        %v800 = vrot.slane %v745, %v799
        %v802 = vadd.f32 %v793, %v800
        %v803 = vadd.f32 %v795, %v800
        %v804 = vpack.c.bf16 %v803, %v802
        %v805 = vld [vmem:[%s4] sm:$0xf]
        %v806 = vld [vmem:[%s4 + $0x4] sm:$0xf]
        %v807 = vld [vmem:[%s4 + $0x8] sm:$0xf]
        %v808 = vld [vmem:[%s4 + $0xc] sm:$0xf]
        %v809 = vld [vmem:[#allocation7] sm:$0x1]
        %v811 = vlaneseq
        %v812 = vshrl.u32 %v811, 7
        %v813 = vsub.s32 0, %v812
        %v814 = vrot.slane %v809, %v813
        %v820 = vunpack.c.l.b16 %v805
        %v821 = vunpack.c.l.b16 %v806
        %v822 = vunpack.c.l.b16 %v807
        %v823 = vunpack.c.l.b16 %v808
        %v824 = vpack.c.b16 %v821, %v820
        %v825 = vpack.c.b16 %v823, %v822
        %v829 = vsel %vm746, %v804, 0
        %831 = vmatprep.subr.bf16.mxu0 0
        %832 = vmatpush1.bf16.msra.mxu0 %v824
        %833 = vmatprep.subr.bf16.mxu0 0
        %834 = vmatpush1.bf16.msra.mxu0 %v825
        %835 = vmatprep.subr.bf16.mxu0 0
        %836 = vmatpush1.bf16.msra.mxu0 0
        %837 = vmatprep.subr.bf16.mxu0 0
        %838 = vmatpush1.bf16.msra.mxu0 0
        %839 = vmatprep.subr.bf16.mxu0 0
        %840 = vmatpush1.bf16.msra.mxu0 0
        %841 = vmatprep.subr.bf16.mxu0 0
        %842 = vmatpush1.bf16.msra.mxu0 0
        %843 = vmatprep.subr.bf16.mxu0 0
        %844 = vmatpush1.bf16.msra.mxu0 0
        %845 = vmatprep.subr.bf16.mxu0 0
        %846 = vmatpush1.bf16.msra.mxu0 0
        %847 = vmatprep.subr.bf16.mxu0 0
        %848 = vmatpush1.bf16.msra.mxu0 0
        %849 = vmatprep.subr.bf16.mxu0 0
        %850 = vmatpush1.bf16.msra.mxu0 0
        %851 = vmatprep.subr.bf16.mxu0 0
        %852 = vmatpush1.bf16.msra.mxu0 0
        %853 = vmatprep.subr.bf16.mxu0 0
        %854 = vmatpush1.bf16.msra.mxu0 0
        %855 = vmatprep.subr.bf16.mxu0 0
        %856 = vmatpush1.bf16.msra.mxu0 0
        %857 = vmatprep.subr.bf16.mxu0 0
        %858 = vmatpush1.bf16.msra.mxu0 0
        %859 = vmatprep.subr.bf16.mxu0 0
        %860 = vmatpush1.bf16.msra.mxu0 0
        %861 = vmatprep.subr.bf16.mxu0 0
        %862 = vmatpush1.bf16.msra.mxu0 0
        %863 = vmatprep.mubr.bf16.mxu0 0
        %864 = vmatmul.mubr.bf16.gmra.mrb[0].mxu0 %v829
        %v865 = vpop.f32.mrb[0].mxu0
        %v866 = vadd.f32 %v814, %v865
        %v867 = vpop.f32.mrb[0].mxu0
        %v868 = vpop.f32.mrb[0].mxu0
        %v869 = vadd.f32 %v814, %v868
        %v870 = vpop.f32.mrb[0].mxu0
        %871 = vdwg.mxu0
        %v872 = vmul.f32 %v866, 0.35355338
        %v873 = vmul.f32 %v869, 0.35355338
        %v874 = vpack.c.bf16 %v873, %v872
        %v875 = vld [vmem:[#allocation8] sm:$0xf]
        %v876 = vld [vmem:[#allocation8 + $0x4] sm:$0xf]
        %v877 = vld [vmem:[#allocation8 + $0x8] sm:$0xf]
        %v878 = vld [vmem:[#allocation8 + $0xc] sm:$0xf]
        %v879 = vld [vmem:[#allocation10] sm:$0x1]
        %v881 = vlaneseq
        %v882 = vshrl.u32 %v881, 7
        %v883 = vsub.s32 0, %v882
        %v884 = vrot.slane %v879, %v883
        %v890 = vunpack.c.l.b16 %v875
        %v891 = vunpack.c.l.b16 %v876
        %v892 = vunpack.c.l.b16 %v877
        %v893 = vunpack.c.l.b16 %v878
        %v894 = vpack.c.b16 %v891, %v890
        %v895 = vpack.c.b16 %v893, %v892
        %898 = vmatprep.subr.bf16.mxu0 0
        %899 = vmatpush1.bf16.msra.mxu0 %v894
        %900 = vmatprep.subr.bf16.mxu0 0
        %901 = vmatpush1.bf16.msra.mxu0 %v895
        %902 = vmatprep.subr.bf16.mxu0 0
        %903 = vmatpush1.bf16.msra.mxu0 0
        %904 = vmatprep.subr.bf16.mxu0 0
        %905 = vmatpush1.bf16.msra.mxu0 0
        %906 = vmatprep.subr.bf16.mxu0 0
        %907 = vmatpush1.bf16.msra.mxu0 0
        %908 = vmatprep.subr.bf16.mxu0 0
        %909 = vmatpush1.bf16.msra.mxu0 0
        %910 = vmatprep.subr.bf16.mxu0 0
        %911 = vmatpush1.bf16.msra.mxu0 0
        %912 = vmatprep.subr.bf16.mxu0 0
        %913 = vmatpush1.bf16.msra.mxu0 0
        %914 = vmatprep.subr.bf16.mxu0 0
        %915 = vmatpush1.bf16.msra.mxu0 0
        %916 = vmatprep.subr.bf16.mxu0 0
        %917 = vmatpush1.bf16.msra.mxu0 0
        %918 = vmatprep.subr.bf16.mxu0 0
        %919 = vmatpush1.bf16.msra.mxu0 0
        %920 = vmatprep.subr.bf16.mxu0 0
        %921 = vmatpush1.bf16.msra.mxu0 0
        %922 = vmatprep.subr.bf16.mxu0 0
        %923 = vmatpush1.bf16.msra.mxu0 0
        %924 = vmatprep.subr.bf16.mxu0 0
        %925 = vmatpush1.bf16.msra.mxu0 0
        %926 = vmatprep.subr.bf16.mxu0 0
        %927 = vmatpush1.bf16.msra.mxu0 0
        %928 = vmatprep.subr.bf16.mxu0 0
        %929 = vmatpush1.bf16.msra.mxu0 0
        %930 = vmatprep.mubr.bf16.mxu0 0
        %931 = vmatmul.mubr.bf16.gmra.mrb[0].mxu0 %v829
        %v932 = vpop.f32.mrb[0].mxu0
        %v933 = vadd.f32 %v884, %v932
        %v934 = vpop.f32.mrb[0].mxu0
        %v935 = vpop.f32.mrb[0].mxu0
        %v936 = vadd.f32 %v884, %v935
        %v937 = vpop.f32.mrb[0].mxu0
        %938 = vdwg.mxu0
        %v939 = vpack.c.bf16 %v936, %v933
        %v940 = vld [vmem:[#allocation11] sm:$0xf]
        %v941 = vld [vmem:[#allocation11 + $0x4] sm:$0xf]
        %v942 = vld [vmem:[#allocation11 + $0x8] sm:$0xf]
        %v943 = vld [vmem:[#allocation11 + $0xc] sm:$0xf]
        %v944 = vld [vmem:[#allocation13] sm:$0x1]
        %v946 = vlaneseq
        %v947 = vshrl.u32 %v946, 7
        %v948 = vsub.s32 0, %v947
        %v949 = vrot.slane %v944, %v948
        %v955 = vunpack.c.l.b16 %v940
        %v956 = vunpack.c.l.b16 %v941
        %v957 = vunpack.c.l.b16 %v942
        %v958 = vunpack.c.l.b16 %v943
        %v959 = vpack.c.b16 %v956, %v955
        %v960 = vpack.c.b16 %v958, %v957
        %963 = vmatprep.subr.bf16.mxu0 0
        %964 = vmatpush1.bf16.msra.mxu0 %v959
        %965 = vmatprep.subr.bf16.mxu0 0
        %966 = vmatpush1.bf16.msra.mxu0 %v960
        %967 = vmatprep.subr.bf16.mxu0 0
        %968 = vmatpush1.bf16.msra.mxu0 0
        %969 = vmatprep.subr.bf16.mxu0 0
        %970 = vmatpush1.bf16.msra.mxu0 0
        %971 = vmatprep.subr.bf16.mxu0 0
        %972 = vmatpush1.bf16.msra.mxu0 0
        %973 = vmatprep.subr.bf16.mxu0 0
        %974 = vmatpush1.bf16.msra.mxu0 0
        %975 = vmatprep.subr.bf16.mxu0 0
        %976 = vmatpush1.bf16.msra.mxu0 0
        %977 = vmatprep.subr.bf16.mxu0 0
        %978 = vmatpush1.bf16.msra.mxu0 0
        %979 = vmatprep.subr.bf16.mxu0 0
        %980 = vmatpush1.bf16.msra.mxu0 0
        %981 = vmatprep.subr.bf16.mxu0 0
        %982 = vmatpush1.bf16.msra.mxu0 0
        %983 = vmatprep.subr.bf16.mxu0 0
        %984 = vmatpush1.bf16.msra.mxu0 0
        %985 = vmatprep.subr.bf16.mxu0 0
        %986 = vmatpush1.bf16.msra.mxu0 0
        %987 = vmatprep.subr.bf16.mxu0 0
        %988 = vmatpush1.bf16.msra.mxu0 0
        %989 = vmatprep.subr.bf16.mxu0 0
        %990 = vmatpush1.bf16.msra.mxu0 0
        %991 = vmatprep.subr.bf16.mxu0 0
        %992 = vmatpush1.bf16.msra.mxu0 0
        %993 = vmatprep.subr.bf16.mxu0 0
        %994 = vmatpush1.bf16.msra.mxu0 0
        %995 = vmatprep.mubr.bf16.mxu0 0
        %996 = vmatmul.mubr.bf16.gmra.mrb[0].mxu0 %v829
        %v997 = vpop.f32.mrb[0].mxu0
        %v998 = vadd.f32 %v949, %v997
        %v999 = vpop.f32.mrb[0].mxu0
        %v1000 = vpop.f32.mrb[0].mxu0
        %v1001 = vadd.f32 %v949, %v1000
        %v1002 = vpop.f32.mrb[0].mxu0
        %1003 = vdwg.mxu0
        %v1004 = vpack.c.bf16 %v1001, %v998
        %v1006 = vunpack.c.l.b16 %v874
        %v1007 = vunpack.c.h.b16 %v874
        %v1008 = vpack.c.b16 %v1006, %v1006
        %v1009 = vpack.c.b16 %v1007, %v1007
        %v1011 = vunpack.c.l.b16 %v939
        %v1012 = vunpack.c.h.b16 %v939
        %v1013 = vpack.c.b16 %v1011, %v1011
        %v1014 = vpack.c.b16 %v1012, %v1012
        %v1016 = vunpack.c.l.b16 %v1004
        %v1017 = vunpack.c.h.b16 %v1004
        %v1018 = vpack.c.b16 %v1016, %v1016
        %v1019 = vpack.c.b16 %v1017, %v1017
        %v1022 = vlaneseq
        %v1023 = vshrl.u32 %v1022, 7
        %v1024 = vsub.s32 0, %v1023
        %v1025 = vrot.slane %v742, %v1024
        %v1026 = vlaneseq
        %v1027 = vshrl.u32 %v1026, 7
        %v1028 = vsub.s32 0, %v1027
        %v1029 = vrot.slane %v743, %v1028
        %vm1032 = vcmask 64512
        %v1034 = vsel %vm1032, %v1008, 0
        %v1037 = vsel %vm1032, %v1013, 0
        %1039 = vmatprep.subr.bf16.mxu0 0
        %1040 = vmatpush1.bf16.xpose.msra.mxu0 %v1037
        %1041 = vmatprep.subr.bf16.mxu0 0
        %1042 = vmatpush1.bf16.xpose.msra.mxu0 0
        %1043 = vmatprep.subr.bf16.mxu0 0
        %1044 = vmatpush1.bf16.xpose.msra.mxu0 0
        %1045 = vmatprep.subr.bf16.mxu0 0
        %1046 = vmatpush1.bf16.xpose.msra.mxu0 0
        %1047 = vmatprep.subr.bf16.mxu0 0
        %1048 = vmatpush1.bf16.xpose.msra.mxu0 0
        %1049 = vmatprep.subr.bf16.mxu0 0
        %1050 = vmatpush1.bf16.xpose.msra.mxu0 0
        %1051 = vmatprep.subr.bf16.mxu0 0
        %1052 = vmatpush1.bf16.xpose.msra.mxu0 0
        %1053 = vmatprep.subr.bf16.mxu0 0
        %1054 = vmatpush1.bf16.xpose.msra.mxu0 0
        %1055 = vmatprep.subr.bf16.mxu0 0
        %1056 = vmatpush1.bf16.xpose.msra.mxu0 0
        %1057 = vmatprep.subr.bf16.mxu0 0
        %1058 = vmatpush1.bf16.xpose.msra.mxu0 0
        %1059 = vmatprep.subr.bf16.mxu0 0
        %1060 = vmatpush1.bf16.xpose.msra.mxu0 0
        %1061 = vmatprep.subr.bf16.mxu0 0
        %1062 = vmatpush1.bf16.xpose.msra.mxu0 0
        %1063 = vmatprep.subr.bf16.mxu0 0
        %1064 = vmatpush1.bf16.xpose.msra.mxu0 0
        %1065 = vmatprep.subr.bf16.mxu0 0
        %1066 = vmatpush1.bf16.xpose.msra.mxu0 0
        %1067 = vmatprep.subr.bf16.mxu0 0
        %1068 = vmatpush1.bf16.xpose.msra.mxu0 0
        %1069 = vmatprep.subr.bf16.mxu0 0
        %1070 = vmatpush1.bf16.xpose.msra.mxu0 0
        %1071 = vmatprep.mubr.bf16.mxu0 0
        %1072 = vmatmul.mubr.bf16.gmra.mrb[0].mxu0 %v1034
        %v1073 = vpop.f32.mrb[0].mxu0
        %v1074 = vadd.f32 %v1025, %v1073
        %v1075 = vpop.f32.mrb[0].mxu0
        %v1076 = vpop.f32.mrb[0].mxu0
        %v1077 = vpop.f32.mrb[0].mxu0
        %1078 = vdwg.mxu0
        %v1080 = vsel %vm1032, %v1009, 0
        %v1083 = vsel %vm1032, %v1014, 0
        %1085 = vmatprep.subr.bf16.mxu0 0
        %1086 = vmatpush1.bf16.xpose.msra.mxu0 %v1083
        %1087 = vmatprep.subr.bf16.mxu0 0
        %1088 = vmatpush1.bf16.xpose.msra.mxu0 0
        %1089 = vmatprep.subr.bf16.mxu0 0
        %1090 = vmatpush1.bf16.xpose.msra.mxu0 0
        %1091 = vmatprep.subr.bf16.mxu0 0
        %1092 = vmatpush1.bf16.xpose.msra.mxu0 0
        %1093 = vmatprep.subr.bf16.mxu0 0
        %1094 = vmatpush1.bf16.xpose.msra.mxu0 0
        %1095 = vmatprep.subr.bf16.mxu0 0
        %1096 = vmatpush1.bf16.xpose.msra.mxu0 0
        %1097 = vmatprep.subr.bf16.mxu0 0
        %1098 = vmatpush1.bf16.xpose.msra.mxu0 0
        %1099 = vmatprep.subr.bf16.mxu0 0
        %1100 = vmatpush1.bf16.xpose.msra.mxu0 0
        %1101 = vmatprep.subr.bf16.mxu0 0
        %1102 = vmatpush1.bf16.xpose.msra.mxu0 0
        %1103 = vmatprep.subr.bf16.mxu0 0
        %1104 = vmatpush1.bf16.xpose.msra.mxu0 0
        %1105 = vmatprep.subr.bf16.mxu0 0
        %1106 = vmatpush1.bf16.xpose.msra.mxu0 0
        %1107 = vmatprep.subr.bf16.mxu0 0
        %1108 = vmatpush1.bf16.xpose.msra.mxu0 0
        %1109 = vmatprep.subr.bf16.mxu0 0
        %1110 = vmatpush1.bf16.xpose.msra.mxu0 0
        %1111 = vmatprep.subr.bf16.mxu0 0
        %1112 = vmatpush1.bf16.xpose.msra.mxu0 0
        %1113 = vmatprep.subr.bf16.mxu0 0
        %1114 = vmatpush1.bf16.xpose.msra.mxu0 0
        %1115 = vmatprep.subr.bf16.mxu0 0
        %1116 = vmatpush1.bf16.xpose.msra.mxu0 0
        %1117 = vmatprep.mubr.bf16.mxu0 0
        %1118 = vmatmul.mubr.bf16.gmra.mrb[0].mxu0 %v1080
        %v1119 = vpop.f32.mrb[0].mxu0
        %v1120 = vadd.f32 %v1029, %v1119
        %v1121 = vpop.f32.mrb[0].mxu0
        %v1122 = vpop.f32.mrb[0].mxu0
        %v1123 = vpop.f32.mrb[0].mxu0
        %1124 = vdwg.mxu0
        %v1125 = vsel %vm1032, %v1074, -inf
        %1126 = vmax.xlane.f32.xlu0 %v1125
        %v1127 = vpop.xlane.xlu0 %1126
        %v1128 = vsel %vm1032, %v1120, -inf
        %1129 = vmax.xlane.f32.xlu0 %v1128
        %v1130 = vpop.xlane.xlu0 %1129
        %v1131 = vsub.f32 %v1074, %v1127
        %v1132 = vsub.f32 %v1120, %v1130
        %v1133 = vmul.f32 %v1131, 1.442695
        %v1134 = vpow.pop %v1133
        %v1135 = vmul.f32 %v1132, 1.442695
        %v1136 = vpow.pop %v1135
        %v1137 = vsel %vm1032, %v1134, 0.0
        %1138 = vadd.xlane.f32.xlu0 %v1137
        %v1139 = vpop.xlane.xlu0 %1138
        %v1140 = vsel %vm1032, %v1136, 0.0
        %1141 = vadd.xlane.f32.xlu0 %v1140
        %v1142 = vpop.xlane.xlu0 %1141
        %v1143 = vrcp.pop %v1139
        %v1144 = vrcp.pop %v1142
        %v1145 = vmul.f32 %v1134, %v1143
        %v1146 = vmul.f32 %v1136, %v1144
        %v1147 = vpack.c.bf16 %v1145, %v1145
        %v1148 = vpack.c.bf16 %v1146, %v1146
        %v1150 = vsel %vm1032, %v1147, 0
        %vm1152 = vcmask 1043456
        %v1154 = vsel %vm1152, %v1018, 0
        %1156 = vmatprep.subr.bf16.mxu0 0
        %1157 = vmatpush1.bf16.msra.mxu0 %v1154
        %1158 = vmatprep.subr.bf16.mxu0 0
        %1159 = vmatpush1.bf16.msra.mxu0 0
        %1160 = vmatprep.subr.bf16.mxu0 0
        %1161 = vmatpush1.bf16.msra.mxu0 0
        %1162 = vmatprep.subr.bf16.mxu0 0
        %1163 = vmatpush1.bf16.msra.mxu0 0
        %1164 = vmatprep.subr.bf16.mxu0 0
        %1165 = vmatpush1.bf16.msra.mxu0 0
        %1166 = vmatprep.subr.bf16.mxu0 0
        %1167 = vmatpush1.bf16.msra.mxu0 0
        %1168 = vmatprep.subr.bf16.mxu0 0
        %1169 = vmatpush1.bf16.msra.mxu0 0
        %1170 = vmatprep.subr.bf16.mxu0 0
        %1171 = vmatpush1.bf16.msra.mxu0 0
        %1172 = vmatprep.subr.bf16.mxu0 0
        %1173 = vmatpush1.bf16.msra.mxu0 0
        %1174 = vmatprep.subr.bf16.mxu0 0
        %1175 = vmatpush1.bf16.msra.mxu0 0
        %1176 = vmatprep.subr.bf16.mxu0 0
        %1177 = vmatpush1.bf16.msra.mxu0 0
        %1178 = vmatprep.subr.bf16.mxu0 0
        %1179 = vmatpush1.bf16.msra.mxu0 0
        %1180 = vmatprep.subr.bf16.mxu0 0
        %1181 = vmatpush1.bf16.msra.mxu0 0
        %1182 = vmatprep.subr.bf16.mxu0 0
        %1183 = vmatpush1.bf16.msra.mxu0 0
        %1184 = vmatprep.subr.bf16.mxu0 0
        %1185 = vmatpush1.bf16.msra.mxu0 0
        %1186 = vmatprep.subr.bf16.mxu0 0
        %1187 = vmatpush1.bf16.msra.mxu0 0
        %1188 = vmatprep.mubr.bf16.mxu0 0
        %1189 = vmatmul.mubr.bf16.gmra.mrb[0].mxu0 %v1150
        %v1190 = vpop.f32.mrb[0].mxu0
        %v1191 = vadd.f32 0.0, %v1190
        %v1192 = vpop.f32.mrb[0].mxu0
        %v1193 = vpop.f32.mrb[0].mxu0
        %v1194 = vpop.f32.mrb[0].mxu0
        %1195 = vdwg.mxu0
        %v1197 = vsel %vm1032, %v1148, 0
        %v1200 = vsel %vm1152, %v1019, 0
        %1202 = vmatprep.subr.bf16.mxu0 0
        %1203 = vmatpush1.bf16.msra.mxu0 %v1200
        %1204 = vmatprep.subr.bf16.mxu0 0
        %1205 = vmatpush1.bf16.msra.mxu0 0
        %1206 = vmatprep.subr.bf16.mxu0 0
        %1207 = vmatpush1.bf16.msra.mxu0 0
        %1208 = vmatprep.subr.bf16.mxu0 0
        %1209 = vmatpush1.bf16.msra.mxu0 0
        %1210 = vmatprep.subr.bf16.mxu0 0
        %1211 = vmatpush1.bf16.msra.mxu0 0
        %1212 = vmatprep.subr.bf16.mxu0 0
        %1213 = vmatpush1.bf16.msra.mxu0 0
        %1214 = vmatprep.subr.bf16.mxu0 0
        %1215 = vmatpush1.bf16.msra.mxu0 0
        %1216 = vmatprep.subr.bf16.mxu0 0
        %1217 = vmatpush1.bf16.msra.mxu0 0
        %1218 = vmatprep.subr.bf16.mxu0 0
        %1219 = vmatpush1.bf16.msra.mxu0 0
        %1220 = vmatprep.subr.bf16.mxu0 0
        %1221 = vmatpush1.bf16.msra.mxu0 0
        %1222 = vmatprep.subr.bf16.mxu0 0
        %1223 = vmatpush1.bf16.msra.mxu0 0
        %1224 = vmatprep.subr.bf16.mxu0 0
        %1225 = vmatpush1.bf16.msra.mxu0 0
        %1226 = vmatprep.subr.bf16.mxu0 0
        %1227 = vmatpush1.bf16.msra.mxu0 0
        %1228 = vmatprep.subr.bf16.mxu0 0
        %1229 = vmatpush1.bf16.msra.mxu0 0
        %1230 = vmatprep.subr.bf16.mxu0 0
        %1231 = vmatpush1.bf16.msra.mxu0 0
        %1232 = vmatprep.subr.bf16.mxu0 0
        %1233 = vmatpush1.bf16.msra.mxu0 0
        %1234 = vmatprep.mubr.bf16.mxu0 0
        %1235 = vmatmul.mubr.bf16.gmra.mrb[0].mxu0 %v1197
        %v1236 = vpop.f32.mrb[0].mxu0
        %v1237 = vadd.f32 0.0, %v1236
        %v1238 = vpop.f32.mrb[0].mxu0
        %v1239 = vpop.f32.mrb[0].mxu0
        %v1240 = vpop.f32.mrb[0].mxu0
        %1241 = vdwg.mxu0
        %v1242 = vpack.c.bf16 %v1237, %v1191
        %1243 = vrot.lane.b32.xlu0 %v1008, 120
        %v1244 = vpop.permute.xlu0 %1243
        %1245 = vrot.lane.b32.xlu0 %v1013, 120
        %v1246 = vpop.permute.xlu0 %1245
        %v1248 = vsel %vm1032, %v1244, 0
        %v1251 = vsel %vm1032, %v1246, 0
        %1253 = vmatprep.subr.bf16.mxu0 0
        %1254 = vmatpush1.bf16.xpose.msra.mxu0 %v1251
        %1255 = vmatprep.subr.bf16.mxu0 0
        %1256 = vmatpush1.bf16.xpose.msra.mxu0 0
        %1257 = vmatprep.subr.bf16.mxu0 0
        %1258 = vmatpush1.bf16.xpose.msra.mxu0 0
        %1259 = vmatprep.subr.bf16.mxu0 0
        %1260 = vmatpush1.bf16.xpose.msra.mxu0 0
        %1261 = vmatprep.subr.bf16.mxu0 0
        %1262 = vmatpush1.bf16.xpose.msra.mxu0 0
        %1263 = vmatprep.subr.bf16.mxu0 0
        %1264 = vmatpush1.bf16.xpose.msra.mxu0 0
        %1265 = vmatprep.subr.bf16.mxu0 0
        %1266 = vmatpush1.bf16.xpose.msra.mxu0 0
        %1267 = vmatprep.subr.bf16.mxu0 0
        %1268 = vmatpush1.bf16.xpose.msra.mxu0 0
        %1269 = vmatprep.subr.bf16.mxu0 0
        %1270 = vmatpush1.bf16.xpose.msra.mxu0 0
        %1271 = vmatprep.subr.bf16.mxu0 0
        %1272 = vmatpush1.bf16.xpose.msra.mxu0 0
        %1273 = vmatprep.subr.bf16.mxu0 0
        %1274 = vmatpush1.bf16.xpose.msra.mxu0 0
        %1275 = vmatprep.subr.bf16.mxu0 0
        %1276 = vmatpush1.bf16.xpose.msra.mxu0 0
        %1277 = vmatprep.subr.bf16.mxu0 0
        %1278 = vmatpush1.bf16.xpose.msra.mxu0 0
        %1279 = vmatprep.subr.bf16.mxu0 0
        %1280 = vmatpush1.bf16.xpose.msra.mxu0 0
        %1281 = vmatprep.subr.bf16.mxu0 0
        %1282 = vmatpush1.bf16.xpose.msra.mxu0 0
        %1283 = vmatprep.subr.bf16.mxu0 0
        %1284 = vmatpush1.bf16.xpose.msra.mxu0 0
        %1285 = vmatprep.mubr.bf16.mxu0 0
        %1286 = vmatmul.mubr.bf16.gmra.mrb[0].mxu0 %v1248
        %v1287 = vpop.f32.mrb[0].mxu0
        %v1288 = vadd.f32 %v1025, %v1287
        %v1289 = vpop.f32.mrb[0].mxu0
        %v1290 = vpop.f32.mrb[0].mxu0
        %v1291 = vpop.f32.mrb[0].mxu0
        %1292 = vdwg.mxu0
        %1293 = vrot.lane.b32.xlu0 %v1009, 120
        %v1294 = vpop.permute.xlu0 %1293
        %1295 = vrot.lane.b32.xlu0 %v1014, 120
        %v1296 = vpop.permute.xlu0 %1295
        %v1298 = vsel %vm1032, %v1294, 0
        %v1301 = vsel %vm1032, %v1296, 0
        %1303 = vmatprep.subr.bf16.mxu0 0
        %1304 = vmatpush1.bf16.xpose.msra.mxu0 %v1301
        %1305 = vmatprep.subr.bf16.mxu0 0
        %1306 = vmatpush1.bf16.xpose.msra.mxu0 0
        %1307 = vmatprep.subr.bf16.mxu0 0
        %1308 = vmatpush1.bf16.xpose.msra.mxu0 0
        %1309 = vmatprep.subr.bf16.mxu0 0
        %1310 = vmatpush1.bf16.xpose.msra.mxu0 0
        %1311 = vmatprep.subr.bf16.mxu0 0
        %1312 = vmatpush1.bf16.xpose.msra.mxu0 0
        %1313 = vmatprep.subr.bf16.mxu0 0
        %1314 = vmatpush1.bf16.xpose.msra.mxu0 0
        %1315 = vmatprep.subr.bf16.mxu0 0
        %1316 = vmatpush1.bf16.xpose.msra.mxu0 0
        %1317 = vmatprep.subr.bf16.mxu0 0
        %1318 = vmatpush1.bf16.xpose.msra.mxu0 0
        %1319 = vmatprep.subr.bf16.mxu0 0
        %1320 = vmatpush1.bf16.xpose.msra.mxu0 0
        %1321 = vmatprep.subr.bf16.mxu0 0
        %1322 = vmatpush1.bf16.xpose.msra.mxu0 0
        %1323 = vmatprep.subr.bf16.mxu0 0
        %1324 = vmatpush1.bf16.xpose.msra.mxu0 0
        %1325 = vmatprep.subr.bf16.mxu0 0
        %1326 = vmatpush1.bf16.xpose.msra.mxu0 0
        %1327 = vmatprep.subr.bf16.mxu0 0
        %1328 = vmatpush1.bf16.xpose.msra.mxu0 0
        %1329 = vmatprep.subr.bf16.mxu0 0
        %1330 = vmatpush1.bf16.xpose.msra.mxu0 0
        %1331 = vmatprep.subr.bf16.mxu0 0
        %1332 = vmatpush1.bf16.xpose.msra.mxu0 0
        %1333 = vmatprep.subr.bf16.mxu0 0
        %1334 = vmatpush1.bf16.xpose.msra.mxu0 0
        %1335 = vmatprep.mubr.bf16.mxu0 0
        %1336 = vmatmul.mubr.bf16.gmra.mrb[0].mxu0 %v1298
        %v1337 = vpop.f32.mrb[0].mxu0
        %v1338 = vadd.f32 %v1029, %v1337
        %v1339 = vpop.f32.mrb[0].mxu0
        %v1340 = vpop.f32.mrb[0].mxu0
        %v1341 = vpop.f32.mrb[0].mxu0
        %1342 = vdwg.mxu0
        %v1343 = vsel %vm1032, %v1288, -inf
        %1344 = vmax.xlane.f32.xlu0 %v1343
        %v1345 = vpop.xlane.xlu0 %1344
        %v1346 = vsel %vm1032, %v1338, -inf
        %1347 = vmax.xlane.f32.xlu0 %v1346
        %v1348 = vpop.xlane.xlu0 %1347
        %v1349 = vsub.f32 %v1288, %v1345
        %v1350 = vsub.f32 %v1338, %v1348
        %v1351 = vmul.f32 %v1349, 1.442695
        %v1352 = vpow.pop %v1351
        %v1353 = vmul.f32 %v1350, 1.442695
        %v1354 = vpow.pop %v1353
        %v1355 = vsel %vm1032, %v1352, 0.0
        %1356 = vadd.xlane.f32.xlu0 %v1355
        %v1357 = vpop.xlane.xlu0 %1356
        %v1358 = vsel %vm1032, %v1354, 0.0
        %1359 = vadd.xlane.f32.xlu0 %v1358
        %v1360 = vpop.xlane.xlu0 %1359
        %v1361 = vrcp.pop %v1357
        %v1362 = vrcp.pop %v1360
        %v1363 = vmul.f32 %v1352, %v1361
        %v1364 = vmul.f32 %v1354, %v1362
        %v1365 = vpack.c.bf16 %v1363, %v1363
        %v1366 = vpack.c.bf16 %v1364, %v1364
        %1367 = vrot.lane.b32.xlu0 %v1018, 120
        %v1368 = vpop.permute.xlu0 %1367
        %v1370 = vsel %vm1032, %v1365, 0
        %v1373 = vsel %vm1152, %v1368, 0
        %1375 = vmatprep.subr.bf16.mxu0 0
        %1376 = vmatpush1.bf16.msra.mxu0 %v1373
        %1377 = vmatprep.subr.bf16.mxu0 0
        %1378 = vmatpush1.bf16.msra.mxu0 0
        %1379 = vmatprep.subr.bf16.mxu0 0
        %1380 = vmatpush1.bf16.msra.mxu0 0
        %1381 = vmatprep.subr.bf16.mxu0 0
        %1382 = vmatpush1.bf16.msra.mxu0 0
        %1383 = vmatprep.subr.bf16.mxu0 0
        %1384 = vmatpush1.bf16.msra.mxu0 0
        %1385 = vmatprep.subr.bf16.mxu0 0
        %1386 = vmatpush1.bf16.msra.mxu0 0
        %1387 = vmatprep.subr.bf16.mxu0 0
        %1388 = vmatpush1.bf16.msra.mxu0 0
        %1389 = vmatprep.subr.bf16.mxu0 0
        %1390 = vmatpush1.bf16.msra.mxu0 0
        %1391 = vmatprep.subr.bf16.mxu0 0
        %1392 = vmatpush1.bf16.msra.mxu0 0
        %1393 = vmatprep.subr.bf16.mxu0 0
        %1394 = vmatpush1.bf16.msra.mxu0 0
        %1395 = vmatprep.subr.bf16.mxu0 0
        %1396 = vmatpush1.bf16.msra.mxu0 0
        %1397 = vmatprep.subr.bf16.mxu0 0
        %1398 = vmatpush1.bf16.msra.mxu0 0
        %1399 = vmatprep.subr.bf16.mxu0 0
        %1400 = vmatpush1.bf16.msra.mxu0 0
        %1401 = vmatprep.subr.bf16.mxu0 0
        %1402 = vmatpush1.bf16.msra.mxu0 0
        %1403 = vmatprep.subr.bf16.mxu0 0
        %1404 = vmatpush1.bf16.msra.mxu0 0
        %1405 = vmatprep.subr.bf16.mxu0 0
        %1406 = vmatpush1.bf16.msra.mxu0 0
        %1407 = vmatprep.mubr.bf16.mxu0 0
        %1408 = vmatmul.mubr.bf16.gmra.mrb[0].mxu0 %v1370
        %v1409 = vpop.f32.mrb[0].mxu0
        %v1410 = vadd.f32 0.0, %v1409
        %v1411 = vpop.f32.mrb[0].mxu0
        %v1412 = vpop.f32.mrb[0].mxu0
        %v1413 = vpop.f32.mrb[0].mxu0
        %1414 = vdwg.mxu0
        %1415 = vrot.lane.b32.xlu0 %v1019, 120
        %v1416 = vpop.permute.xlu0 %1415
        %v1418 = vsel %vm1032, %v1366, 0
        %v1421 = vsel %vm1152, %v1416, 0
        %1423 = vmatprep.subr.bf16.mxu0 0
        %1424 = vmatpush1.bf16.msra.mxu0 %v1421
        %1425 = vmatprep.subr.bf16.mxu0 0
        %1426 = vmatpush1.bf16.msra.mxu0 0
        %1427 = vmatprep.subr.bf16.mxu0 0
        %1428 = vmatpush1.bf16.msra.mxu0 0
        %1429 = vmatprep.subr.bf16.mxu0 0
        %1430 = vmatpush1.bf16.msra.mxu0 0
        %1431 = vmatprep.subr.bf16.mxu0 0
        %1432 = vmatpush1.bf16.msra.mxu0 0
        %1433 = vmatprep.subr.bf16.mxu0 0
        %1434 = vmatpush1.bf16.msra.mxu0 0
        %1435 = vmatprep.subr.bf16.mxu0 0
        %1436 = vmatpush1.bf16.msra.mxu0 0
        %1437 = vmatprep.subr.bf16.mxu0 0
        %1438 = vmatpush1.bf16.msra.mxu0 0
        %1439 = vmatprep.subr.bf16.mxu0 0
        %1440 = vmatpush1.bf16.msra.mxu0 0
        %1441 = vmatprep.subr.bf16.mxu0 0
        %1442 = vmatpush1.bf16.msra.mxu0 0
        %1443 = vmatprep.subr.bf16.mxu0 0
        %1444 = vmatpush1.bf16.msra.mxu0 0
        %1445 = vmatprep.subr.bf16.mxu0 0
        %1446 = vmatpush1.bf16.msra.mxu0 0
        %1447 = vmatprep.subr.bf16.mxu0 0
        %1448 = vmatpush1.bf16.msra.mxu0 0
        %1449 = vmatprep.subr.bf16.mxu0 0
        %1450 = vmatpush1.bf16.msra.mxu0 0
        %1451 = vmatprep.subr.bf16.mxu0 0
        %1452 = vmatpush1.bf16.msra.mxu0 0
        %1453 = vmatprep.subr.bf16.mxu0 0
        %1454 = vmatpush1.bf16.msra.mxu0 0
        %1455 = vmatprep.mubr.bf16.mxu0 0
        %1456 = vmatmul.mubr.bf16.gmra.mrb[0].mxu0 %v1418
        %v1457 = vpop.f32.mrb[0].mxu0
        %v1458 = vadd.f32 0.0, %v1457
        %v1459 = vpop.f32.mrb[0].mxu0
        %v1460 = vpop.f32.mrb[0].mxu0
        %v1461 = vpop.f32.mrb[0].mxu0
        %1462 = vdwg.mxu0
        %v1463 = vpack.c.bf16 %v1458, %v1410
        %1464 = vrot.lane.b32.xlu0 %v1008, 112
        %v1465 = vpop.permute.xlu0 %1464
        %1466 = vrot.lane.b32.xlu0 %v1013, 112
        %v1467 = vpop.permute.xlu0 %1466
        %v1469 = vsel %vm1032, %v1465, 0
        %v1472 = vsel %vm1032, %v1467, 0
        %1474 = vmatprep.subr.bf16.mxu0 0
        %1475 = vmatpush1.bf16.xpose.msra.mxu0 %v1472
        %1476 = vmatprep.subr.bf16.mxu0 0
        %1477 = vmatpush1.bf16.xpose.msra.mxu0 0
        %1478 = vmatprep.subr.bf16.mxu0 0
        %1479 = vmatpush1.bf16.xpose.msra.mxu0 0
        %1480 = vmatprep.subr.bf16.mxu0 0
        %1481 = vmatpush1.bf16.xpose.msra.mxu0 0
        %1482 = vmatprep.subr.bf16.mxu0 0
        %1483 = vmatpush1.bf16.xpose.msra.mxu0 0
        %1484 = vmatprep.subr.bf16.mxu0 0
        %1485 = vmatpush1.bf16.xpose.msra.mxu0 0
        %1486 = vmatprep.subr.bf16.mxu0 0
        %1487 = vmatpush1.bf16.xpose.msra.mxu0 0
        %1488 = vmatprep.subr.bf16.mxu0 0
        %1489 = vmatpush1.bf16.xpose.msra.mxu0 0
        %1490 = vmatprep.subr.bf16.mxu0 0
        %1491 = vmatpush1.bf16.xpose.msra.mxu0 0
        %1492 = vmatprep.subr.bf16.mxu0 0
        %1493 = vmatpush1.bf16.xpose.msra.mxu0 0
        %1494 = vmatprep.subr.bf16.mxu0 0
        %1495 = vmatpush1.bf16.xpose.msra.mxu0 0
        %1496 = vmatprep.subr.bf16.mxu0 0
        %1497 = vmatpush1.bf16.xpose.msra.mxu0 0
        %1498 = vmatprep.subr.bf16.mxu0 0
        %1499 = vmatpush1.bf16.xpose.msra.mxu0 0
        %1500 = vmatprep.subr.bf16.mxu0 0
        %1501 = vmatpush1.bf16.xpose.msra.mxu0 0
        %1502 = vmatprep.subr.bf16.mxu0 0
        %1503 = vmatpush1.bf16.xpose.msra.mxu0 0
        %1504 = vmatprep.subr.bf16.mxu0 0
        %1505 = vmatpush1.bf16.xpose.msra.mxu0 0
        %1506 = vmatprep.mubr.bf16.mxu0 0
        %1507 = vmatmul.mubr.bf16.gmra.mrb[0].mxu0 %v1469
        %v1508 = vpop.f32.mrb[0].mxu0
        %v1509 = vadd.f32 %v1025, %v1508
        %v1510 = vpop.f32.mrb[0].mxu0
        %v1511 = vpop.f32.mrb[0].mxu0
        %v1512 = vpop.f32.mrb[0].mxu0
        %1513 = vdwg.mxu0
        %1514 = vrot.lane.b32.xlu0 %v1009, 112
        %v1515 = vpop.permute.xlu0 %1514
        %1516 = vrot.lane.b32.xlu0 %v1014, 112
        %v1517 = vpop.permute.xlu0 %1516
        %v1519 = vsel %vm1032, %v1515, 0
        %v1522 = vsel %vm1032, %v1517, 0
        %1524 = vmatprep.subr.bf16.mxu0 0
        %1525 = vmatpush1.bf16.xpose.msra.mxu0 %v1522
        %1526 = vmatprep.subr.bf16.mxu0 0
        %1527 = vmatpush1.bf16.xpose.msra.mxu0 0
        %1528 = vmatprep.subr.bf16.mxu0 0
        %1529 = vmatpush1.bf16.xpose.msra.mxu0 0
        %1530 = vmatprep.subr.bf16.mxu0 0
        %1531 = vmatpush1.bf16.xpose.msra.mxu0 0
        %1532 = vmatprep.subr.bf16.mxu0 0
        %1533 = vmatpush1.bf16.xpose.msra.mxu0 0
        %1534 = vmatprep.subr.bf16.mxu0 0
        %1535 = vmatpush1.bf16.xpose.msra.mxu0 0
        %1536 = vmatprep.subr.bf16.mxu0 0
        %1537 = vmatpush1.bf16.xpose.msra.mxu0 0
        %1538 = vmatprep.subr.bf16.mxu0 0
        %1539 = vmatpush1.bf16.xpose.msra.mxu0 0
        %1540 = vmatprep.subr.bf16.mxu0 0
        %1541 = vmatpush1.bf16.xpose.msra.mxu0 0
        %1542 = vmatprep.subr.bf16.mxu0 0
        %1543 = vmatpush1.bf16.xpose.msra.mxu0 0
        %1544 = vmatprep.subr.bf16.mxu0 0
        %1545 = vmatpush1.bf16.xpose.msra.mxu0 0
        %1546 = vmatprep.subr.bf16.mxu0 0
        %1547 = vmatpush1.bf16.xpose.msra.mxu0 0
        %1548 = vmatprep.subr.bf16.mxu0 0
        %1549 = vmatpush1.bf16.xpose.msra.mxu0 0
        %1550 = vmatprep.subr.bf16.mxu0 0
        %1551 = vmatpush1.bf16.xpose.msra.mxu0 0
        %1552 = vmatprep.subr.bf16.mxu0 0
        %1553 = vmatpush1.bf16.xpose.msra.mxu0 0
        %1554 = vmatprep.subr.bf16.mxu0 0
        %1555 = vmatpush1.bf16.xpose.msra.mxu0 0
        %1556 = vmatprep.mubr.bf16.mxu0 0
        %1557 = vmatmul.mubr.bf16.gmra.mrb[0].mxu0 %v1519
        %v1558 = vpop.f32.mrb[0].mxu0
        %v1559 = vadd.f32 %v1029, %v1558
        %v1560 = vpop.f32.mrb[0].mxu0
        %v1561 = vpop.f32.mrb[0].mxu0
        %v1562 = vpop.f32.mrb[0].mxu0
        %1563 = vdwg.mxu0
        %v1564 = vsel %vm1032, %v1509, -inf
        %1565 = vmax.xlane.f32.xlu0 %v1564
        %v1566 = vpop.xlane.xlu0 %1565
        %v1567 = vsel %vm1032, %v1559, -inf
        %1568 = vmax.xlane.f32.xlu0 %v1567
        %v1569 = vpop.xlane.xlu0 %1568
        %v1570 = vsub.f32 %v1509, %v1566
        %v1571 = vsub.f32 %v1559, %v1569
        %v1572 = vmul.f32 %v1570, 1.442695
        %v1573 = vpow.pop %v1572
        %v1574 = vmul.f32 %v1571, 1.442695
        %v1575 = vpow.pop %v1574
        %v1576 = vsel %vm1032, %v1573, 0.0
        %1577 = vadd.xlane.f32.xlu0 %v1576
        %v1578 = vpop.xlane.xlu0 %1577
        %v1579 = vsel %vm1032, %v1575, 0.0
        %1580 = vadd.xlane.f32.xlu0 %v1579
        %v1581 = vpop.xlane.xlu0 %1580
        %v1582 = vrcp.pop %v1578
        %v1583 = vrcp.pop %v1581
        %v1584 = vmul.f32 %v1573, %v1582
        %v1585 = vmul.f32 %v1575, %v1583
        %v1586 = vpack.c.bf16 %v1584, %v1584
        %v1587 = vpack.c.bf16 %v1585, %v1585
        %1588 = vrot.lane.b32.xlu0 %v1018, 112
        %v1589 = vpop.permute.xlu0 %1588
        %v1591 = vsel %vm1032, %v1586, 0
        %v1594 = vsel %vm1152, %v1589, 0
        %1596 = vmatprep.subr.bf16.mxu0 0
        %1597 = vmatpush1.bf16.msra.mxu0 %v1594
        %1598 = vmatprep.subr.bf16.mxu0 0
        %1599 = vmatpush1.bf16.msra.mxu0 0
        %1600 = vmatprep.subr.bf16.mxu0 0
        %1601 = vmatpush1.bf16.msra.mxu0 0
        %1602 = vmatprep.subr.bf16.mxu0 0
        %1603 = vmatpush1.bf16.msra.mxu0 0
        %1604 = vmatprep.subr.bf16.mxu0 0
        %1605 = vmatpush1.bf16.msra.mxu0 0
        %1606 = vmatprep.subr.bf16.mxu0 0
        %1607 = vmatpush1.bf16.msra.mxu0 0
        %1608 = vmatprep.subr.bf16.mxu0 0
        %1609 = vmatpush1.bf16.msra.mxu0 0
        %1610 = vmatprep.subr.bf16.mxu0 0
        %1611 = vmatpush1.bf16.msra.mxu0 0
        %1612 = vmatprep.subr.bf16.mxu0 0
        %1613 = vmatpush1.bf16.msra.mxu0 0
        %1614 = vmatprep.subr.bf16.mxu0 0
        %1615 = vmatpush1.bf16.msra.mxu0 0
        %1616 = vmatprep.subr.bf16.mxu0 0
        %1617 = vmatpush1.bf16.msra.mxu0 0
        %1618 = vmatprep.subr.bf16.mxu0 0
        %1619 = vmatpush1.bf16.msra.mxu0 0
        %1620 = vmatprep.subr.bf16.mxu0 0
        %1621 = vmatpush1.bf16.msra.mxu0 0
        %1622 = vmatprep.subr.bf16.mxu0 0
        %1623 = vmatpush1.bf16.msra.mxu0 0
        %1624 = vmatprep.subr.bf16.mxu0 0
        %1625 = vmatpush1.bf16.msra.mxu0 0
        %1626 = vmatprep.subr.bf16.mxu0 0
        %1627 = vmatpush1.bf16.msra.mxu0 0
        %1628 = vmatprep.mubr.bf16.mxu0 0
        %1629 = vmatmul.mubr.bf16.gmra.mrb[0].mxu0 %v1591
        %v1630 = vpop.f32.mrb[0].mxu0
        %v1631 = vadd.f32 0.0, %v1630
        %v1632 = vpop.f32.mrb[0].mxu0
        %v1633 = vpop.f32.mrb[0].mxu0
        %v1634 = vpop.f32.mrb[0].mxu0
        %1635 = vdwg.mxu0
        %1636 = vrot.lane.b32.xlu0 %v1019, 112
        %v1637 = vpop.permute.xlu0 %1636
        %v1639 = vsel %vm1032, %v1587, 0
        %v1642 = vsel %vm1152, %v1637, 0
        %1644 = vmatprep.subr.bf16.mxu0 0
        %1645 = vmatpush1.bf16.msra.mxu0 %v1642
        %1646 = vmatprep.subr.bf16.mxu0 0
        %1647 = vmatpush1.bf16.msra.mxu0 0
        %1648 = vmatprep.subr.bf16.mxu0 0
        %1649 = vmatpush1.bf16.msra.mxu0 0
        %1650 = vmatprep.subr.bf16.mxu0 0
        %1651 = vmatpush1.bf16.msra.mxu0 0
        %1652 = vmatprep.subr.bf16.mxu0 0
        %1653 = vmatpush1.bf16.msra.mxu0 0
        %1654 = vmatprep.subr.bf16.mxu0 0
        %1655 = vmatpush1.bf16.msra.mxu0 0
        %1656 = vmatprep.subr.bf16.mxu0 0
        %1657 = vmatpush1.bf16.msra.mxu0 0
        %1658 = vmatprep.subr.bf16.mxu0 0
        %1659 = vmatpush1.bf16.msra.mxu0 0
        %1660 = vmatprep.subr.bf16.mxu0 0
        %1661 = vmatpush1.bf16.msra.mxu0 0
        %1662 = vmatprep.subr.bf16.mxu0 0
        %1663 = vmatpush1.bf16.msra.mxu0 0
        %1664 = vmatprep.subr.bf16.mxu0 0
        %1665 = vmatpush1.bf16.msra.mxu0 0
        %1666 = vmatprep.subr.bf16.mxu0 0
        %1667 = vmatpush1.bf16.msra.mxu0 0
        %1668 = vmatprep.subr.bf16.mxu0 0
        %1669 = vmatpush1.bf16.msra.mxu0 0
        %1670 = vmatprep.subr.bf16.mxu0 0
        %1671 = vmatpush1.bf16.msra.mxu0 0
        %1672 = vmatprep.subr.bf16.mxu0 0
        %1673 = vmatpush1.bf16.msra.mxu0 0
        %1674 = vmatprep.subr.bf16.mxu0 0
        %1675 = vmatpush1.bf16.msra.mxu0 0
        %1676 = vmatprep.mubr.bf16.mxu0 0
        %1677 = vmatmul.mubr.bf16.gmra.mrb[0].mxu0 %v1639
        %v1678 = vpop.f32.mrb[0].mxu0
        %v1679 = vadd.f32 0.0, %v1678
        %v1680 = vpop.f32.mrb[0].mxu0
        %v1681 = vpop.f32.mrb[0].mxu0
        %v1682 = vpop.f32.mrb[0].mxu0
        %1683 = vdwg.mxu0
        %v1684 = vpack.c.bf16 %v1679, %v1631
        %1685 = vrot.lane.b32.xlu0 %v1008, 104
        %v1686 = vpop.permute.xlu0 %1685
        %1687 = vrot.lane.b32.xlu0 %v1013, 104
        %v1688 = vpop.permute.xlu0 %1687
        %v1690 = vsel %vm1032, %v1686, 0
        %v1693 = vsel %vm1032, %v1688, 0
        %1695 = vmatprep.subr.bf16.mxu0 0
        %1696 = vmatpush1.bf16.xpose.msra.mxu0 %v1693
        %1697 = vmatprep.subr.bf16.mxu0 0
        %1698 = vmatpush1.bf16.xpose.msra.mxu0 0
        %1699 = vmatprep.subr.bf16.mxu0 0
        %1700 = vmatpush1.bf16.xpose.msra.mxu0 0
        %1701 = vmatprep.subr.bf16.mxu0 0
        %1702 = vmatpush1.bf16.xpose.msra.mxu0 0
        %1703 = vmatprep.subr.bf16.mxu0 0
        %1704 = vmatpush1.bf16.xpose.msra.mxu0 0
        %1705 = vmatprep.subr.bf16.mxu0 0
        %1706 = vmatpush1.bf16.xpose.msra.mxu0 0
        %1707 = vmatprep.subr.bf16.mxu0 0
        %1708 = vmatpush1.bf16.xpose.msra.mxu0 0
        %1709 = vmatprep.subr.bf16.mxu0 0
        %1710 = vmatpush1.bf16.xpose.msra.mxu0 0
        %1711 = vmatprep.subr.bf16.mxu0 0
        %1712 = vmatpush1.bf16.xpose.msra.mxu0 0
        %1713 = vmatprep.subr.bf16.mxu0 0
        %1714 = vmatpush1.bf16.xpose.msra.mxu0 0
        %1715 = vmatprep.subr.bf16.mxu0 0
        %1716 = vmatpush1.bf16.xpose.msra.mxu0 0
        %1717 = vmatprep.subr.bf16.mxu0 0
        %1718 = vmatpush1.bf16.xpose.msra.mxu0 0
        %1719 = vmatprep.subr.bf16.mxu0 0
        %1720 = vmatpush1.bf16.xpose.msra.mxu0 0
        %1721 = vmatprep.subr.bf16.mxu0 0
        %1722 = vmatpush1.bf16.xpose.msra.mxu0 0
        %1723 = vmatprep.subr.bf16.mxu0 0
        %1724 = vmatpush1.bf16.xpose.msra.mxu0 0
        %1725 = vmatprep.subr.bf16.mxu0 0
        %1726 = vmatpush1.bf16.xpose.msra.mxu0 0
        %1727 = vmatprep.mubr.bf16.mxu0 0
        %1728 = vmatmul.mubr.bf16.gmra.mrb[0].mxu0 %v1690
        %v1729 = vpop.f32.mrb[0].mxu0
        %v1730 = vadd.f32 %v1025, %v1729
        %v1731 = vpop.f32.mrb[0].mxu0
        %v1732 = vpop.f32.mrb[0].mxu0
        %v1733 = vpop.f32.mrb[0].mxu0
        %1734 = vdwg.mxu0
        %1735 = vrot.lane.b32.xlu0 %v1009, 104
        %v1736 = vpop.permute.xlu0 %1735
        %1737 = vrot.lane.b32.xlu0 %v1014, 104
        %v1738 = vpop.permute.xlu0 %1737
        %v1740 = vsel %vm1032, %v1736, 0
        %v1743 = vsel %vm1032, %v1738, 0
        %1745 = vmatprep.subr.bf16.mxu0 0
        %1746 = vmatpush1.bf16.xpose.msra.mxu0 %v1743
        %1747 = vmatprep.subr.bf16.mxu0 0
        %1748 = vmatpush1.bf16.xpose.msra.mxu0 0
        %1749 = vmatprep.subr.bf16.mxu0 0
        %1750 = vmatpush1.bf16.xpose.msra.mxu0 0
        %1751 = vmatprep.subr.bf16.mxu0 0
        %1752 = vmatpush1.bf16.xpose.msra.mxu0 0
        %1753 = vmatprep.subr.bf16.mxu0 0
        %1754 = vmatpush1.bf16.xpose.msra.mxu0 0
        %1755 = vmatprep.subr.bf16.mxu0 0
        %1756 = vmatpush1.bf16.xpose.msra.mxu0 0
        %1757 = vmatprep.subr.bf16.mxu0 0
        %1758 = vmatpush1.bf16.xpose.msra.mxu0 0
        %1759 = vmatprep.subr.bf16.mxu0 0
        %1760 = vmatpush1.bf16.xpose.msra.mxu0 0
        %1761 = vmatprep.subr.bf16.mxu0 0
        %1762 = vmatpush1.bf16.xpose.msra.mxu0 0
        %1763 = vmatprep.subr.bf16.mxu0 0
        %1764 = vmatpush1.bf16.xpose.msra.mxu0 0
        %1765 = vmatprep.subr.bf16.mxu0 0
        %1766 = vmatpush1.bf16.xpose.msra.mxu0 0
        %1767 = vmatprep.subr.bf16.mxu0 0
        %1768 = vmatpush1.bf16.xpose.msra.mxu0 0
        %1769 = vmatprep.subr.bf16.mxu0 0
        %1770 = vmatpush1.bf16.xpose.msra.mxu0 0
        %1771 = vmatprep.subr.bf16.mxu0 0
        %1772 = vmatpush1.bf16.xpose.msra.mxu0 0
        %1773 = vmatprep.subr.bf16.mxu0 0
        %1774 = vmatpush1.bf16.xpose.msra.mxu0 0
        %1775 = vmatprep.subr.bf16.mxu0 0
        %1776 = vmatpush1.bf16.xpose.msra.mxu0 0
        %1777 = vmatprep.mubr.bf16.mxu0 0
        %1778 = vmatmul.mubr.bf16.gmra.mrb[0].mxu0 %v1740
        %v1779 = vpop.f32.mrb[0].mxu0
        %v1780 = vadd.f32 %v1029, %v1779
        %v1781 = vpop.f32.mrb[0].mxu0
        %v1782 = vpop.f32.mrb[0].mxu0
        %v1783 = vpop.f32.mrb[0].mxu0
        %1784 = vdwg.mxu0
        %v1785 = vsel %vm1032, %v1730, -inf
        %1786 = vmax.xlane.f32.xlu0 %v1785
        %v1787 = vpop.xlane.xlu0 %1786
        %v1788 = vsel %vm1032, %v1780, -inf
        %1789 = vmax.xlane.f32.xlu0 %v1788
        %v1790 = vpop.xlane.xlu0 %1789
        %v1791 = vsub.f32 %v1730, %v1787
        %v1792 = vsub.f32 %v1780, %v1790
        %v1793 = vmul.f32 %v1791, 1.442695
        %v1794 = vpow.pop %v1793
        %v1795 = vmul.f32 %v1792, 1.442695
        %v1796 = vpow.pop %v1795
        %v1797 = vsel %vm1032, %v1794, 0.0
        %1798 = vadd.xlane.f32.xlu0 %v1797
        %v1799 = vpop.xlane.xlu0 %1798
        %v1800 = vsel %vm1032, %v1796, 0.0
        %1801 = vadd.xlane.f32.xlu0 %v1800
        %v1802 = vpop.xlane.xlu0 %1801
        %v1803 = vrcp.pop %v1799
        %v1804 = vrcp.pop %v1802
        %v1805 = vmul.f32 %v1794, %v1803
        %v1806 = vmul.f32 %v1796, %v1804
        %v1807 = vpack.c.bf16 %v1805, %v1805
        %v1808 = vpack.c.bf16 %v1806, %v1806
        %1809 = vrot.lane.b32.xlu0 %v1018, 104
        %v1810 = vpop.permute.xlu0 %1809
        %v1812 = vsel %vm1032, %v1807, 0
        %v1815 = vsel %vm1152, %v1810, 0
        %1817 = vmatprep.subr.bf16.mxu0 0
        %1818 = vmatpush1.bf16.msra.mxu0 %v1815
        %1819 = vmatprep.subr.bf16.mxu0 0
        %1820 = vmatpush1.bf16.msra.mxu0 0
        %1821 = vmatprep.subr.bf16.mxu0 0
        %1822 = vmatpush1.bf16.msra.mxu0 0
        %1823 = vmatprep.subr.bf16.mxu0 0
        %1824 = vmatpush1.bf16.msra.mxu0 0
        %1825 = vmatprep.subr.bf16.mxu0 0
        %1826 = vmatpush1.bf16.msra.mxu0 0
        %1827 = vmatprep.subr.bf16.mxu0 0
        %1828 = vmatpush1.bf16.msra.mxu0 0
        %1829 = vmatprep.subr.bf16.mxu0 0
        %1830 = vmatpush1.bf16.msra.mxu0 0
        %1831 = vmatprep.subr.bf16.mxu0 0
        %1832 = vmatpush1.bf16.msra.mxu0 0
        %1833 = vmatprep.subr.bf16.mxu0 0
        %1834 = vmatpush1.bf16.msra.mxu0 0
        %1835 = vmatprep.subr.bf16.mxu0 0
        %1836 = vmatpush1.bf16.msra.mxu0 0
        %1837 = vmatprep.subr.bf16.mxu0 0
        %1838 = vmatpush1.bf16.msra.mxu0 0
        %1839 = vmatprep.subr.bf16.mxu0 0
        %1840 = vmatpush1.bf16.msra.mxu0 0
        %1841 = vmatprep.subr.bf16.mxu0 0
        %1842 = vmatpush1.bf16.msra.mxu0 0
        %1843 = vmatprep.subr.bf16.mxu0 0
        %1844 = vmatpush1.bf16.msra.mxu0 0
        %1845 = vmatprep.subr.bf16.mxu0 0
        %1846 = vmatpush1.bf16.msra.mxu0 0
        %1847 = vmatprep.subr.bf16.mxu0 0
        %1848 = vmatpush1.bf16.msra.mxu0 0
        %1849 = vmatprep.mubr.bf16.mxu0 0
        %1850 = vmatmul.mubr.bf16.gmra.mrb[0].mxu0 %v1812
        %v1851 = vpop.f32.mrb[0].mxu0
        %v1852 = vadd.f32 0.0, %v1851
        %v1853 = vpop.f32.mrb[0].mxu0
        %v1854 = vpop.f32.mrb[0].mxu0
        %v1855 = vpop.f32.mrb[0].mxu0
        %1856 = vdwg.mxu0
        %1857 = vrot.lane.b32.xlu0 %v1019, 104
        %v1858 = vpop.permute.xlu0 %1857
        %v1860 = vsel %vm1032, %v1808, 0
        %v1863 = vsel %vm1152, %v1858, 0
        %1865 = vmatprep.subr.bf16.mxu0 0
        %1866 = vmatpush1.bf16.msra.mxu0 %v1863
        %1867 = vmatprep.subr.bf16.mxu0 0
        %1868 = vmatpush1.bf16.msra.mxu0 0
        %1869 = vmatprep.subr.bf16.mxu0 0
        %1870 = vmatpush1.bf16.msra.mxu0 0
        %1871 = vmatprep.subr.bf16.mxu0 0
        %1872 = vmatpush1.bf16.msra.mxu0 0
        %1873 = vmatprep.subr.bf16.mxu0 0
        %1874 = vmatpush1.bf16.msra.mxu0 0
        %1875 = vmatprep.subr.bf16.mxu0 0
        %1876 = vmatpush1.bf16.msra.mxu0 0
        %1877 = vmatprep.subr.bf16.mxu0 0
        %1878 = vmatpush1.bf16.msra.mxu0 0
        %1879 = vmatprep.subr.bf16.mxu0 0
        %1880 = vmatpush1.bf16.msra.mxu0 0
        %1881 = vmatprep.subr.bf16.mxu0 0
        %1882 = vmatpush1.bf16.msra.mxu0 0
        %1883 = vmatprep.subr.bf16.mxu0 0
        %1884 = vmatpush1.bf16.msra.mxu0 0
        %1885 = vmatprep.subr.bf16.mxu0 0
        %1886 = vmatpush1.bf16.msra.mxu0 0
        %1887 = vmatprep.subr.bf16.mxu0 0
        %1888 = vmatpush1.bf16.msra.mxu0 0
        %1889 = vmatprep.subr.bf16.mxu0 0
        %1890 = vmatpush1.bf16.msra.mxu0 0
        %1891 = vmatprep.subr.bf16.mxu0 0
        %1892 = vmatpush1.bf16.msra.mxu0 0
        %1893 = vmatprep.subr.bf16.mxu0 0
        %1894 = vmatpush1.bf16.msra.mxu0 0
        %1895 = vmatprep.subr.bf16.mxu0 0
        %1896 = vmatpush1.bf16.msra.mxu0 0
        %1897 = vmatprep.mubr.bf16.mxu0 0
        %1898 = vmatmul.mubr.bf16.gmra.mrb[0].mxu0 %v1860
        %v1899 = vpop.f32.mrb[0].mxu0
        %v1900 = vadd.f32 0.0, %v1899
        %v1901 = vpop.f32.mrb[0].mxu0
        %v1902 = vpop.f32.mrb[0].mxu0
        %v1903 = vpop.f32.mrb[0].mxu0
        %1904 = vdwg.mxu0
        %v1905 = vpack.c.bf16 %v1900, %v1852
        %1907 = vrot.lane.b32.xlu0 %v1463, 8
        %v1908 = vpop.permute.xlu0 %1907
        %1910 = vrot.lane.b32.xlu0 %v1684, 16
        %v1911 = vpop.permute.xlu0 %1910
        %1913 = vrot.lane.b32.xlu0 %v1905, 24
        %v1914 = vpop.permute.xlu0 %1913
        %v1917 = vsel %vm1032, %v1242, %v1908
        %vm1918 = vcmask 130048
        %v1920 = vsel %vm1918, %v1917, %v1911
        %vm1921 = vcmask 195584
        %v1923 = vsel %vm1921, %v1920, %v1914
        %v1924 = vld [vmem:[%s10] sm:$0xf]
        %v1925 = vld [vmem:[%s10 + $0x4] sm:$0xf]
        %v1926 = vld [vmem:[%s10 + $0x8] sm:$0xf]
        %v1927 = vld [vmem:[%s10 + $0xc] sm:$0xf]
        %v1928 = vld [vmem:[#allocation14] sm:$0x1]
        %v1930 = vlaneseq
        %v1931 = vshrl.u32 %v1930, 7
        %v1932 = vsub.s32 0, %v1931
        %v1933 = vrot.slane %v1928, %v1932
        %v1939 = vunpack.c.l.b16 %v1924
        %v1940 = vunpack.c.l.b16 %v1925
        %v1941 = vunpack.c.l.b16 %v1926
        %v1942 = vunpack.c.l.b16 %v1927
        %v1943 = vpack.c.b16 %v1940, %v1939
        %v1944 = vpack.c.b16 %v1942, %v1941
        %v1947 = vsel %vm746, %v1923, 0
        %1949 = vmatprep.subr.bf16.mxu0 0
        %1950 = vmatpush1.bf16.msra.mxu0 %v1943
        %1951 = vmatprep.subr.bf16.mxu0 0
        %1952 = vmatpush1.bf16.msra.mxu0 %v1944
        %1953 = vmatprep.subr.bf16.mxu0 0
        %1954 = vmatpush1.bf16.msra.mxu0 0
        %1955 = vmatprep.subr.bf16.mxu0 0
        %1956 = vmatpush1.bf16.msra.mxu0 0
        %1957 = vmatprep.subr.bf16.mxu0 0
        %1958 = vmatpush1.bf16.msra.mxu0 0
        %1959 = vmatprep.subr.bf16.mxu0 0
        %1960 = vmatpush1.bf16.msra.mxu0 0
        %1961 = vmatprep.subr.bf16.mxu0 0
        %1962 = vmatpush1.bf16.msra.mxu0 0
        %1963 = vmatprep.subr.bf16.mxu0 0
        %1964 = vmatpush1.bf16.msra.mxu0 0
        %1965 = vmatprep.subr.bf16.mxu0 0
        %1966 = vmatpush1.bf16.msra.mxu0 0
        %1967 = vmatprep.subr.bf16.mxu0 0
        %1968 = vmatpush1.bf16.msra.mxu0 0
        %1969 = vmatprep.subr.bf16.mxu0 0
        %1970 = vmatpush1.bf16.msra.mxu0 0
        %1971 = vmatprep.subr.bf16.mxu0 0
        %1972 = vmatpush1.bf16.msra.mxu0 0
        %1973 = vmatprep.subr.bf16.mxu0 0
        %1974 = vmatpush1.bf16.msra.mxu0 0
        %1975 = vmatprep.subr.bf16.mxu0 0
        %1976 = vmatpush1.bf16.msra.mxu0 0
        %1977 = vmatprep.subr.bf16.mxu0 0
        %1978 = vmatpush1.bf16.msra.mxu0 0
        %1979 = vmatprep.subr.bf16.mxu0 0
        %1980 = vmatpush1.bf16.msra.mxu0 0
        %1981 = vmatprep.mubr.bf16.mxu0 0
        %1982 = vmatmul.mubr.bf16.gmra.mrb[0].mxu0 %v1947
        %v1983 = vpop.f32.mrb[0].mxu0
        %v1984 = vadd.f32 %v1933, %v1983
        %v1985 = vpop.f32.mrb[0].mxu0
        %v1986 = vpop.f32.mrb[0].mxu0
        %v1987 = vadd.f32 %v1933, %v1986
        %v1988 = vpop.f32.mrb[0].mxu0
        %1989 = vdwg.mxu0
        %v1990 = vadd.f32 %v736, %v1984
        %v1991 = vadd.f32 %v737, %v1987
        %v1992 = vld [vmem:[#allocation16] sm:$0x1]
        %v1993 = vld [vmem:[#allocation17] sm:$0x1]
        %v1994 = vsel %vm746, %v1990, 0.0
        %1995 = vadd.xlane.f32.xlu0 %v1994
        %v1996 = vpop.xlane.xlu0 %1995
        %v1997 = vsel %vm746, %v1991, 0.0
        %1998 = vadd.xlane.f32.xlu0 %v1997
        %v1999 = vpop.xlane.xlu0 %1998
        %v2000 = vmul.f32 %v1996, %v753
        %v2001 = vmul.f32 %v1999, %v753
        %v2002 = vsub.f32 %v1990, %v2000
        %v2003 = vsub.f32 %v1991, %v2001
        %v2004 = vmul.f32 %v2002, %v2002
        %v2005 = vmul.f32 %v2003, %v2003
        %v2006 = vsel %vm746, %v2004, 0.0
        %2007 = vadd.xlane.f32.xlu0 %v2006
        %v2008 = vpop.xlane.xlu0 %2007
        %v2009 = vsel %vm746, %v2005, 0.0
        %2010 = vadd.xlane.f32.xlu0 %v2009
        %v2011 = vpop.xlane.xlu0 %2010
        %v2012 = vmul.f32 %v2008, 0.032258064
        %v2013 = vmul.f32 %v2011, 0.032258064
        %v2014 = vrsqrt.pop %v2012
        %v2015 = vmul.f32 %v2012, %v2014
        %vm2016 = vcmp.eq.f32.partialorder %v2012, inf
        %v2017 = vsel %vm2016, %v2012, %v2015
        %vm2018 = vcmp.eq.f32.partialorder %v2012, 0.0
        %v2019 = vand.u32 %v2012, 2147483648
        %v2020 = vsel %vm2018, %v2019, %v2017
        %v2021 = vrsqrt.pop %v2013
        %v2022 = vmul.f32 %v2013, %v2021
        %vm2023 = vcmp.eq.f32.partialorder %v2013, inf
        %v2024 = vsel %vm2023, %v2013, %v2022
        %vm2025 = vcmp.eq.f32.partialorder %v2013, 0.0
        %v2026 = vand.u32 %v2013, 2147483648
        %v2027 = vsel %vm2025, %v2026, %v2024
        %v2029 = vlaneseq
        %v2030 = vshrl.u32 %v2029, 7
        %v2031 = vsub.s32 0, %v2030
        %v2032 = vrot.slane %v1992, %v2031
        %v2034 = vmul.f32 %v2032, %v2002
        %v2035 = vmul.f32 %v2032, %v2003
        %v2036 = vadd.f32 %v2020, 1e-06
        %v2037 = vadd.f32 %v2027, 1e-06
        %v2038 = vrcp.pop %v2036
        %v2039 = vmul.f32 %v2034, %v2038
        %v2040 = vrcp.pop %v2037
        %v2041 = vmul.f32 %v2035, %v2040
        %v2043 = vlaneseq
        %v2044 = vshrl.u32 %v2043, 7
        %v2045 = vsub.s32 0, %v2044
        %v2046 = vrot.slane %v1993, %v2045
        %v2048 = vadd.f32 %v2039, %v2046
        %v2049 = vadd.f32 %v2041, %v2046
        %v2050 = vpack.c.bf16 %v2049, %v2048
        %v2051 = vld [vmem:[%s14] sm:$0xf]
        %v2052 = vld [vmem:[%s14 + $0x4] sm:$0xf]
        %v2053 = vld [vmem:[%s14 + $0x8] sm:$0xf]
        %v2054 = vld [vmem:[%s14 + $0xc] sm:$0xf]
        %v2055 = vld [vmem:[%s15] sm:$0x1]
        %v2057 = vlaneseq
        %v2058 = vshrl.u32 %v2057, 7
        %v2059 = vsub.s32 0, %v2058
        %v2060 = vrot.slane %v2055, %v2059
        %v2066 = vunpack.c.l.b16 %v2051
        %v2067 = vunpack.c.l.b16 %v2052
        %v2068 = vunpack.c.l.b16 %v2053
        %v2069 = vunpack.c.l.b16 %v2054
        %v2070 = vpack.c.b16 %v2067, %v2066
        %v2071 = vpack.c.b16 %v2069, %v2068
        %v2075 = vsel %vm746, %v2050, 0
        %2077 = vmatprep.subr.bf16.mxu0 0
        %2078 = vmatpush1.bf16.msra.mxu0 %v2070
        %2079 = vmatprep.subr.bf16.mxu0 0
        %2080 = vmatpush1.bf16.msra.mxu0 %v2071
        %2081 = vmatprep.subr.bf16.mxu0 0
        %2082 = vmatpush1.bf16.msra.mxu0 0
        %2083 = vmatprep.subr.bf16.mxu0 0
        %2084 = vmatpush1.bf16.msra.mxu0 0
        %2085 = vmatprep.subr.bf16.mxu0 0
        %2086 = vmatpush1.bf16.msra.mxu0 0
        %2087 = vmatprep.subr.bf16.mxu0 0
        %2088 = vmatpush1.bf16.msra.mxu0 0
        %2089 = vmatprep.subr.bf16.mxu0 0
        %2090 = vmatpush1.bf16.msra.mxu0 0
        %2091 = vmatprep.subr.bf16.mxu0 0
        %2092 = vmatpush1.bf16.msra.mxu0 0
        %2093 = vmatprep.subr.bf16.mxu0 0
        %2094 = vmatpush1.bf16.msra.mxu0 0
        %2095 = vmatprep.subr.bf16.mxu0 0
        %2096 = vmatpush1.bf16.msra.mxu0 0
        %2097 = vmatprep.subr.bf16.mxu0 0
        %2098 = vmatpush1.bf16.msra.mxu0 0
        %2099 = vmatprep.subr.bf16.mxu0 0
        %2100 = vmatpush1.bf16.msra.mxu0 0
        %2101 = vmatprep.subr.bf16.mxu0 0
        %2102 = vmatpush1.bf16.msra.mxu0 0
        %2103 = vmatprep.subr.bf16.mxu0 0
        %2104 = vmatpush1.bf16.msra.mxu0 0
        %2105 = vmatprep.subr.bf16.mxu0 0
        %2106 = vmatpush1.bf16.msra.mxu0 0
        %2107 = vmatprep.subr.bf16.mxu0 0
        %2108 = vmatpush1.bf16.msra.mxu0 0
        %2109 = vmatprep.mubr.bf16.mxu0 0
        %2110 = vmatmul.mubr.bf16.gmra.mrb[0].mxu0 %v2075
        %v2111 = vpop.f32.mrb[0].mxu0
        %v2112 = vadd.f32 %v2060, %v2111
        %v2113 = vpop.f32.mrb[0].mxu0
        %v2114 = vpop.f32.mrb[0].mxu0
        %v2115 = vadd.f32 %v2060, %v2114
        %v2116 = vpop.f32.mrb[0].mxu0
        %2117 = vdwg.mxu0
        %v2118 = vmax.f32 %v2112, 0.0
        %v2119 = vmax.f32 %v2115, 0.0
        %v2120 = vpack.c.bf16 %v2119, %v2118
        %v2121 = vld [vmem:[%s16] sm:$0xf]
        %v2122 = vld [vmem:[%s16 + $0x4] sm:$0xf]
        %v2123 = vld [vmem:[%s16 + $0x8] sm:$0xf]
        %v2124 = vld [vmem:[%s16 + $0xc] sm:$0xf]
        %v2125 = vld [vmem:[%s16 + $0x10] sm:$0xf]
        %v2126 = vld [vmem:[%s16 + $0x14] sm:$0xf]
        %v2127 = vld [vmem:[%s16 + $0x18] sm:$0xf]
        %v2128 = vld [vmem:[%s16 + $0x1c] sm:$0xf]
        %v2129 = vld [vmem:[%s17] sm:$0x1]
        %v2131 = vlaneseq
        %v2132 = vshrl.u32 %v2131, 7
        %v2133 = vsub.s32 0, %v2132
        %v2134 = vrot.slane %v2129, %v2133
        %v2144 = vunpack.c.l.b16 %v2121
        %v2145 = vunpack.c.l.b16 %v2122
        %v2146 = vunpack.c.l.b16 %v2123
        %v2147 = vunpack.c.l.b16 %v2124
        %v2148 = vunpack.c.l.b16 %v2125
        %v2149 = vunpack.c.l.b16 %v2126
        %v2150 = vunpack.c.l.b16 %v2127
        %v2151 = vunpack.c.l.b16 %v2128
        %v2152 = vpack.c.b16 %v2145, %v2144
        %v2153 = vpack.c.b16 %v2147, %v2146
        %v2154 = vpack.c.b16 %v2149, %v2148
        %v2155 = vpack.c.b16 %v2151, %v2150
        %vm2160 = vcmask 523264
        %v2162 = vsel %vm2160, %v2120, 0
        %2164 = vmatprep.subr.bf16.mxu0 0
        %2165 = vmatpush1.bf16.msra.mxu0 %v2152
        %2166 = vmatprep.subr.bf16.mxu0 0
        %2167 = vmatpush1.bf16.msra.mxu0 %v2153
        %2168 = vmatprep.subr.bf16.mxu0 0
        %2169 = vmatpush1.bf16.msra.mxu0 %v2154
        %2170 = vmatprep.subr.bf16.mxu0 0
        %2171 = vmatpush1.bf16.msra.mxu0 %v2155
        %2172 = vmatprep.subr.bf16.mxu0 0
        %2173 = vmatpush1.bf16.msra.mxu0 0
        %2174 = vmatprep.subr.bf16.mxu0 0
        %2175 = vmatpush1.bf16.msra.mxu0 0
        %2176 = vmatprep.subr.bf16.mxu0 0
        %2177 = vmatpush1.bf16.msra.mxu0 0
        %2178 = vmatprep.subr.bf16.mxu0 0
        %2179 = vmatpush1.bf16.msra.mxu0 0
        %2180 = vmatprep.subr.bf16.mxu0 0
        %2181 = vmatpush1.bf16.msra.mxu0 0
        %2182 = vmatprep.subr.bf16.mxu0 0
        %2183 = vmatpush1.bf16.msra.mxu0 0
        %2184 = vmatprep.subr.bf16.mxu0 0
        %2185 = vmatpush1.bf16.msra.mxu0 0
        %2186 = vmatprep.subr.bf16.mxu0 0
        %2187 = vmatpush1.bf16.msra.mxu0 0
        %2188 = vmatprep.subr.bf16.mxu0 0
        %2189 = vmatpush1.bf16.msra.mxu0 0
        %2190 = vmatprep.subr.bf16.mxu0 0
        %2191 = vmatpush1.bf16.msra.mxu0 0
        %2192 = vmatprep.subr.bf16.mxu0 0
        %2193 = vmatpush1.bf16.msra.mxu0 0
        %2194 = vmatprep.subr.bf16.mxu0 0
        %2195 = vmatpush1.bf16.msra.mxu0 0
        %2196 = vmatprep.mubr.bf16.mxu0 0
        %2197 = vmatmul.mubr.bf16.gmra.mrb[0].mxu0 %v2162
        %v2198 = vpop.f32.mrb[0].mxu0
        %v2199 = vadd.f32 %v2134, %v2198
        %v2200 = vpop.f32.mrb[0].mxu0
        %v2201 = vpop.f32.mrb[0].mxu0
        %v2202 = vadd.f32 %v2134, %v2201
        %v2203 = vpop.f32.mrb[0].mxu0
        %2204 = vdwg.mxu0
        %v2205 = vadd.f32 %v1990, %v2199
        %v2206 = vadd.f32 %v1991, %v2202
        %2207 = vst.msk [vmem:[%s726] sm:$0xff] %vm746, %v2205
        %2208 = vst.msk [vmem:[%s726 + $0x8] sm:$0xff] %vm746, %v2206
        %s2209 = sand.u32 %s436, 1
        %s2210 = scalar_lea.sflag [#allocation4], %s2209
        %s2211 = sand.u32 %s436, 1
        %s2212 = smul.addr %s2211, 16
        %s2213 = scalar_lea.vmem [#allocation19], %s2212
        // Predicated region
        $region133: #{tpu_custom_call.1} parent=91 // pred_check
          %p2214 = pneg %p446
        $region134: #{tpu_custom_call.1} parent=91 // pred_check_branch
          %2216 = sbr.rel (%p2214) target = $region136
        $region135: #{tpu_custom_call.1} parent=91 // pred_region
          %s2217 = smul.u32 2, %s40
          %s2219 = ssub.s32 256, 256
          %2220 = vsyncadd %s2210, %s2219
          %s2221 = smul.addr %s2217, 128
          %s2222 = scalar_lea.hbm %s18, %s2221
          %s2223 = sshll.u32 %s2213, 4
          %s2224 = int_to_ptr.vmem [resolvable:$true] %s2223
          %2229 = dma.vmem_to_hbm [thread:$0]  %s2224, 256, %s2222, %s2210, 128, 128, 8
        $region136: #{tpu_custom_call.1} parent=91 // pred_fallthru
          _
      $region92: #{tpu_custom_call.1} parent=5 // pred_fallthru
        _
      %p2230 = scmp.le.s32.totalorder 2, %s35
      // Predicated region
      $region137: #{tpu_custom_call.1} parent=5 // pred_check
        %p2231 = pneg %p2230
      $region138: #{tpu_custom_call.1} parent=5 // pred_check_branch
        %2233 = sbr.rel (%p2231) target = $region140
      $region139: #{tpu_custom_call.1} parent=5 // pred_region
        %s2234 = ssub.s32 %s35, 2
        // Predicated region
        $region141: #{tpu_custom_call.1} parent=139 // pred_check
          %p2235 = pneg %p452
        $region142: #{tpu_custom_call.1} parent=139 // pred_check_branch
          %2237 = sbr.rel (%p2235) target = $region144
        $region143: #{tpu_custom_call.1} parent=139 // pred_region
          %s2238 = sand.u32 %s437, 1
          %s2239 = scalar_lea.sflag [#allocation4], %s2238
          %s2240 = sand.u32 %s437, 1
          %s2241 = smul.addr %s2240, 16
          %s2242 = scalar_lea.vmem [#allocation19], %s2241
          %2243 = dma.done %s2239, 256
        $region144: #{tpu_custom_call.1} parent=139 // pred_fallthru
          _
      $region140: #{tpu_custom_call.1} parent=5 // pred_fallthru
        _
    $region6: #{tpu_custom_call.1} parent=1 // loop_footer
      %s39 = sadd.s32 1, %s35
    $region7: #{tpu_custom_call.1} parent=1 // loop_footer_branch
      %34 = sbr.rel target = $region3
    $region8: #{tpu_custom_call.1} parent=1 // loop_exit
      _
    %2244 = vsyncpa [#allocation3], 1
    %s2245 = scalar_lea.sflag [#allocation3], 1
    %2246 = vsyncpa %s2245, 1
    %2247 = vsyncpa [#allocation6], 1
    %2248 = vsyncpa [#allocation9], 1
    %2249 = vsyncpa [#allocation12], 1
    %2250 = vsyncpa [#allocation15], 1
    %2251 = vsyncpa [#allocation18], 1
    %2252 = vsyncpa [#allocation4], 1
    %s2253 = scalar_lea.sflag [#allocation4], 1
    %2254 = vsyncpa %s2253, 1

</llo_original>
